<compile_context>
chip_gen: v7x
topology: tpu7x:2x2x1
jax: 0.10.0
libtpu: 0.0.40
codegen_flags: <defaults>
</compile_context>

<pallas_src>
import functools
import numpy as np
import jax
import jax.numpy as jnp
from jax.experimental import pallas as pl
from jax.experimental.pallas import tpu as pltpu

EPS = 1e-5  # matches nn.LayerNorm(eps=1e-05)

# rows of the packed small-vector parameter slab (each row padded to the slab width)
_VEC_ROWS = ('b_emb', 'g_emb', 'be_emb', 'g_ao', 'b_ao',
             'g1', 'b1', 'b_ff2', 'g2', 'b2', 'b_ff1', 'b_out')
_R = {n: i for i, n in enumerate(_VEC_ROWS)}


def _ln(x, g, b):
    """PyTorch-style LayerNorm over the last axis (biased variance), f32 math."""
    m = jnp.mean(x, axis=-1, keepdims=True)
    v = jnp.mean(jnp.square(x - m), axis=-1, keepdims=True)
    return (x - m) * jax.lax.rsqrt(v + EPS) * g + b


def transformer_kernel(x_ref, w_emb_ref, pe_ref, wqkv_ref, rel_bias_ref,
                       w_ff1_ref, w_ff2_ref, w_out_ref, vec_ref, o_ref,
                       *, num_heads):
    TB, L, C = x_ref.shape
    E = w_emb_ref.shape[1]
    F = w_ff1_ref.shape[1]
    NCP = w_out_ref.shape[1]
    H = num_heads
    hd = E // H
    M = TB * L
    bf16 = jnp.bfloat16

    vec = vec_ref[...]                      # (12, W) f32 slab of small vectors

    def vrow(name, width):                  # keep (1, width) so broadcasts stay 2D
        r = _R[name]
        return vec[r:r + 1, :width]

    b_emb, g_emb, be_emb = vrow('b_emb', E), vrow('g_emb', E), vrow('be_emb', E)
    g_ao, b_ao = vrow('g_ao', E), vrow('b_ao', E)
    g1, b1 = vrow('g1', E), vrow('b1', E)
    g2, b2 = vrow('g2', E), vrow('b2', E)
    b_ff1 = vrow('b_ff1', F)
    b_ff2 = vrow('b_ff2', E)
    b_out = vrow('b_out', NCP)

    # ---- embed_layer: Linear(C, E) + LayerNorm (f32 vector math) ----
    x2 = x_ref[...].reshape(M, C).astype(jnp.float32)
    if C == 1:
        h = x2 * w_emb_ref[...]             # (M,1)*(1,E) broadcast, no reduce needed
    else:
        h = jnp.dot(x2.astype(bf16), w_emb_ref[...].astype(bf16),
                    preferred_element_type=jnp.float32)
    h = _ln(h + b_emb, g_emb, be_emb)       # (M, E) f32

    # ---- tAPE fixed positional encoding ----
    h3 = h.reshape(TB, L, E) + pe_ref[...]
    # TODO(synk): dropout (p=0.1) layers are identity in eval mode; not implemented.

    # ---- Attention_Rel_Scl: fused QKV projection (softmax scale folded into Q cols) ----
    qkv = jnp.dot(h3.reshape(M, E).astype(bf16), wqkv_ref[...],
                  preferred_element_type=jnp.float32)            # (M, 3E) f32

    # Head split with only batched last-2-dim transposes + tile-aligned reshapes
    # (hd is a multiple of the f32 sublane tile at these sizes): ~3 layout ops
    # for all of Q/K/V instead of 12 lane slices + 3 concats.
    qkv_t = jnp.swapaxes(qkv.reshape(TB, L, 3 * E), 1, 2)        # (TB, 3E, L)
    qkv_t = jnp.swapaxes(qkv_t.reshape(TB, 3 * H, hd, L), 2, 3)  # (TB, 3H, L, hd)
    q3 = qkv_t[:, 0:H].reshape(TB * H, L, hd)                    # batch = b*H + h
    k3 = qkv_t[:, H:2 * H].reshape(TB * H, L, hd)
    v3 = qkv_t[:, 2 * H:3 * H].reshape(TB * H, L, hd)

    s = jnp.einsum('bqd,bkd->bqk', q3.astype(bf16), k3.astype(bf16),
                   preferred_element_type=jnp.float32)           # (TB*H, L, L) f32
    s = s - jnp.max(s, axis=-1, keepdims=True)
    e = jnp.exp(s)
    p = e * pl.reciprocal(jnp.sum(e, axis=-1, keepdims=True), approx=True)
    # ConvTran adds the learned relative scalar bias AFTER the softmax (no renorm).
    # Fuse the add with the bf16 cast so no second full-size score copy stays live.
    p_b = (p.reshape(TB, H, L, L) + rel_bias_ref[...][None]).astype(bf16)
    ctx = jnp.einsum('bqk,bkd->bqd', p_b.reshape(TB * H, L, L), v3.astype(bf16),
                     preferred_element_type=jnp.float32)         # (TB*H, L, hd)

    # heads -> E lanes (reverse of the split path: 2 minor transposes)
    ctx_t = jnp.swapaxes(ctx.reshape(TB, H, L, hd), 2, 3)        # (TB, H, hd, L)
    attn = jnp.swapaxes(ctx_t.reshape(TB, E, L), 1, 2)           # (TB, L, E)
    attn = _ln(attn, g_ao, b_ao)            # attention's to_out = LayerNorm

    # ---- residual + LayerNorm1 ----
    att = _ln(h3 + attn, g1, b1).reshape(M, E)

    # ---- FeedForward: Linear(E, F) -> ReLU -> Linear(F, E) ----
    ff = jnp.dot(att.astype(bf16), w_ff1_ref[...],
                 preferred_element_type=jnp.float32) + b_ff1
    ff = jnp.maximum(ff, 0.0)
    ff = jnp.dot(ff.astype(bf16), w_ff2_ref[...],
                 preferred_element_type=jnp.float32) + b_ff2

    # ---- residual + LayerNorm2 ----
    out = _ln(att + ff, g2, b2)                                  # (M, E) f32

    # ---- permute + AdaptiveAvgPool1d(1) + Flatten == mean over L ----
    pooled = jnp.mean(out.reshape(TB, L, E), axis=1)             # (TB, E) f32

    # ---- classifier head (lane-dense, padded to NCP lanes) ----
    logits = jnp.dot(pooled.astype(bf16), w_out_ref[...],
                     preferred_element_type=jnp.float32) + b_out  # (TB, NCP)
    o_ref[...] = logits


def _broadcast_spec(shape):
    """Full-array block, same block for every grid step."""
    n = len(shape)
    return pl.BlockSpec(shape, lambda b, _n=n: (0,) * _n)


def _step_bytes(tb, L, E, F, H):
    """Rough per-grid-step resident f32 activation bytes (everything lives at once)."""
    m = tb * L
    return (8 * m * E + 3 * H * tb * L * L + 2 * m * F) * 4


def _pick_batch_block(B, L, E, F, H, num_cores):
    """Default: one grid step (each step costs ~0.35us and halves the matmul M dim).
    Split only if the working set would blow VMEM, or 2-way on a multi-TensorCore
    part when each block still keeps M = TB*L >= 256 (full MXU M fill)."""
    budget = 20 << 20                        # conservative per-step activation budget
    tb = B
    while tb > 1 and _step_bytes(tb, L, E, F, H) > budget:
        tb = -(-tb // 2)
    if tb == B and num_cores >= 2 and B >= 2 and (B // 2) * L >= 256:
        tb = -(-B // 2)
    nb = -(-B // tb)
    if nb > 1 and tb % 8:                    # keep (TB, 128) output block 8-aligned
        tb8 = 8 * (-(-tb // 8))
        tb = B if tb8 >= B else tb8
        nb = -(-B // tb)
    return tb, nb


@functools.partial(jax.jit, static_argnames=("num_heads", "block_b"))
def transformer_forward(x_ncl, params, num_heads, block_b=None):
    B, C, L = x_ncl.shape
    E = params['w_emb'].shape[1]
    F = params['w_ff1'].shape[1]
    NC = params['w_out'].shape[1]
    NCP = 128 * (-(-NC // 128))             # lane-dense padded logits width

    x = jnp.transpose(x_ncl, (0, 2, 1)).astype(jnp.float32)   # (B, L, C) == permute(0,2,1)

    num_cores = 1
    try:
        num_cores = max(1, int(getattr(jax.devices()[0], 'num_cores', 1)))
    except Exception:
        pass

    if block_b is not None:
        TB = max(1, min(block_b, B))
        nb = -(-B // TB)
        if nb > 1 and TB % 8:
            TB8 = 8 * (-(-TB // 8))
            TB = B if TB8 >= B else TB8
            nb = -(-B // TB)
    else:
        TB, nb = _pick_batch_block(B, L, E, F, num_heads, num_cores)

    B_pad = nb * TB
    if B_pad != B:
        x = jnp.pad(x, ((0, B_pad - B), (0, 0), (0, 0)))

    # ---- pack matmul weights (bf16 for the MXU) and tiny vectors (one f32 slab) ----
    scale = float(E) ** -0.5                 # ConvTran scales by emb_size**-0.5
    wqkv = jnp.concatenate([params['wq'] * scale, params['wk'], params['wv']],
                           axis=1).astype(jnp.bfloat16)                    # (E, 3E)
    w_ff1 = params['w_ff1'].astype(jnp.bfloat16)
    w_ff2 = params['w_ff2'].astype(jnp.bfloat16)
    w_out = jnp.pad(params['w_out'], ((0, 0), (0, NCP - NC))).astype(jnp.bfloat16)

    W = max(128, E, F, NCP)

    def row(v):
        v = jnp.reshape(v, (-1,)).astype(jnp.float32)
        return jnp.pad(v, (0, W - v.shape[0]))

    vec = jnp.stack([row(params[n]) for n in _VEC_ROWS], axis=0)           # (12, W)

    w_emb = params['w_emb'].astype(jnp.float32)        # kept f32 (elementwise when C==1)
    pe = params['pe'].astype(jnp.float32)
    # NOTE: rel_bias is dense (H, L, L); fine at this L.  For large L it should be
    # generated in-kernel from the (2L-1, H) table or tiled per (q, k) block.
    rel_bias = params['rel_bias'].astype(jnp.float32)

    consts = [w_emb, pe, wqkv, rel_bias, w_ff1, w_ff2, w_out, vec]
    in_specs = [pl.BlockSpec((TB, L, C), lambda b: (b, 0, 0))]
    in_specs += [_broadcast_spec(tuple(c.shape)) for c in consts]

    # Explicit scoped-VMEM limit (v5e default is only 16 MiB); stays well inside
    # every generation's physical VMEM at these working-set sizes.
    vmem_limit = int(min(max(32 << 20, 4 * _step_bytes(TB, L, E, F, num_heads)),
                         56 << 20))

    out = pl.pallas_call(
        functools.partial(transformer_kernel, num_heads=num_heads),
        out_shape=jax.ShapeDtypeStruct((B_pad, NCP), jnp.float32),
        grid=(nb,),
        in_specs=in_specs,
        out_specs=pl.BlockSpec((TB, NCP), lambda b: (b, 0)),
        compiler_params=pltpu.CompilerParams(
            dimension_semantics=("parallel",),
            vmem_limit_bytes=vmem_limit),
    )(x, *consts)
    return out[:B, :NC]                     # (B, num_classes)


def init_params(key, C, L, E, H, F, NC):
    ks = jax.random.split(key, 12)

    def lin_w(k, fan_in, fan_out):
        s = 1.0 / np.sqrt(fan_in)
        return jax.random.uniform(k, (fan_in, fan_out), jnp.float32, -s, s)

    def lin_b(k, fan_in, fan_out):
        s = 1.0 / np.sqrt(fan_in)
        return jax.random.uniform(k, (1, fan_out), jnp.float32, -s, s)

    p = {}
    # embed_layer
    p['w_emb'] = lin_w(ks[0], C, E)
    p['b_emb'] = lin_b(ks[1], C, E)
    p['g_emb'] = jnp.ones((1, E), jnp.float32)
    p['be_emb'] = jnp.zeros((1, E), jnp.float32)

    # tAPE positional encoding (scaled sinusoid, max_len = seq_len)
    pos = np.arange(L, dtype=np.float64)[:, None]
    div = np.exp(np.arange(0, E, 2, dtype=np.float64) * (-np.log(10000.0) / E))
    pe = np.zeros((L, E), dtype=np.float64)
    pe[:, 0::2] = np.sin((pos * div) * (E / L))
    pe[:, 1::2] = np.cos((pos * div) * (E / L))
    p['pe'] = jnp.asarray(pe, jnp.float32)

    # Attention_Rel_Scl projections (no bias)
    p['wq'] = lin_w(ks[2], E, E)
    p['wk'] = lin_w(ks[3], E, E)
    p['wv'] = lin_w(ks[4], E, E)

    # relative scalar bias: table (2L-1, H) gathered with index (i - j + L - 1)
    # (torch inits the table to zeros; use small deterministic values to exercise the path)
    table = 0.01 * jax.random.normal(ks[5], (2 * L - 1, H), jnp.float32)
    idx = (np.arange(L)[:, None] - np.arange(L)[None, :]) + (L - 1)       # (L, L)
    p['rel_bias'] = jnp.transpose(table[idx], (2, 0, 1))                  # (H, L, L)

    # attention to_out LayerNorm
    p['g_ao'] = jnp.ones((1, E), jnp.float32)
    p['b_ao'] = jnp.zeros((1, E), jnp.float32)

    # LayerNorm1 / FeedForward / LayerNorm2
    p['g1'] = jnp.ones((1, E), jnp.float32)
    p['b1'] = jnp.zeros((1, E), jnp.float32)
    p['w_ff1'] = lin_w(ks[6], E, F)
    p['b_ff1'] = lin_b(ks[7], E, F)
    p['w_ff2'] = lin_w(ks[8], F, E)
    p['b_ff2'] = lin_b(ks[9], F, E)
    p['g2'] = jnp.ones((1, E), jnp.float32)
    p['b2'] = jnp.zeros((1, E), jnp.float32)

    # classifier head
    p['w_out'] = lin_w(ks[10], E, NC)
    p['b_out'] = lin_b(ks[11], E, NC)
    return p


if __name__ == "__main__":
    # config: Data_shape=(B, 1, seq_len), emb_size=32, num_heads=4, dim_ff=64, num_labels=5
    B, C, L = 2, 1, 16
    E, H, F, NC = 32, 4, 64, 5

    key = jax.random.PRNGKey(0)
    kx, kp = jax.random.split(key)
    x = jax.random.normal(kx, (B, C, L), jnp.float32)     # == X.unsqueeze(1) layout (NCL)
    params = init_params(kp, C, L, E, H, F, NC)

    logits = transformer_forward(x, params, num_heads=H)
    jax.block_until_ready(logits)
    assert logits.shape == (B, NC), logits.shape
    assert bool(jnp.all(jnp.isfinite(logits)))
    print("KERNEL_OK")
</pallas_src>

<mosaic_0001>
module attributes {stable_mosaic.version = 11 : i64} {
  func.func @transformer_kernel(%arg0: i32, %arg1: memref<2x16x1xf32, #tpu.memory_space<vmem>>, %arg2: memref<1x32xf32, #tpu.memory_space<vmem>>, %arg3: memref<16x32xf32, #tpu.memory_space<vmem>>, %arg4: memref<32x96xbf16, #tpu.memory_space<vmem>>, %arg5: memref<4x16x16xf32, #tpu.memory_space<vmem>>, %arg6: memref<32x64xbf16, #tpu.memory_space<vmem>>, %arg7: memref<64x32xbf16, #tpu.memory_space<vmem>>, %arg8: memref<32x128xbf16, #tpu.memory_space<vmem>>, %arg9: memref<12x128xf32, #tpu.memory_space<vmem>>, %arg10: memref<2x128xf32, #tpu.memory_space<vmem>>) attributes {dimension_semantics = [#tpu.dimension_semantics<parallel>], iteration_bounds = array<i64: 1>, scalar_prefetch = 0 : i64, scratch_operands = 0 : i64, tpu.core_type = #tpu.core_type<tc>, window_params = [{transform_indices = @transform_0, window_bounds = array<i64: 2, 16, 1>}, {pipeline_mode = #tpu.pipeline_mode<synchronous>, transform_indices = @transform_1, window_bounds = array<i64: 1, 32>}, {pipeline_mode = #tpu.pipeline_mode<synchronous>, transform_indices = @transform_2, window_bounds = array<i64: 16, 32>}, {pipeline_mode = #tpu.pipeline_mode<synchronous>, transform_indices = @transform_3, window_bounds = array<i64: 32, 96>}, {pipeline_mode = #tpu.pipeline_mode<synchronous>, transform_indices = @transform_4, window_bounds = array<i64: 4, 16, 16>}, {pipeline_mode = #tpu.pipeline_mode<synchronous>, transform_indices = @transform_5, window_bounds = array<i64: 32, 64>}, {pipeline_mode = #tpu.pipeline_mode<synchronous>, transform_indices = @transform_6, window_bounds = array<i64: 64, 32>}, {pipeline_mode = #tpu.pipeline_mode<synchronous>, transform_indices = @transform_7, window_bounds = array<i64: 32, 128>}, {pipeline_mode = #tpu.pipeline_mode<synchronous>, transform_indices = @transform_8, window_bounds = array<i64: 12, 128>}, {transform_indices = @transform_9, window_bounds = array<i64: 2, 128>}]} {
    %c0 = arith.constant 0 : index
    %c0_0 = arith.constant 0 : index
    %0 = vector.load %arg9[%c0, %c0_0] : memref<12x128xf32, #tpu.memory_space<vmem>>, vector<12x128xf32>
    %1 = vector.extract_strided_slice %0 {offsets = [0, 0], sizes = [1, 32], strides = [1, 1]} : vector<12x128xf32> to vector<1x32xf32>
    %2 = vector.extract_strided_slice %0 {offsets = [1, 0], sizes = [1, 32], strides = [1, 1]} : vector<12x128xf32> to vector<1x32xf32>
    %3 = vector.extract_strided_slice %0 {offsets = [2, 0], sizes = [1, 32], strides = [1, 1]} : vector<12x128xf32> to vector<1x32xf32>
    %4 = vector.extract_strided_slice %0 {offsets = [3, 0], sizes = [1, 32], strides = [1, 1]} : vector<12x128xf32> to vector<1x32xf32>
    %5 = vector.extract_strided_slice %0 {offsets = [4, 0], sizes = [1, 32], strides = [1, 1]} : vector<12x128xf32> to vector<1x32xf32>
    %6 = vector.extract_strided_slice %0 {offsets = [5, 0], sizes = [1, 32], strides = [1, 1]} : vector<12x128xf32> to vector<1x32xf32>
    %7 = vector.extract_strided_slice %0 {offsets = [6, 0], sizes = [1, 32], strides = [1, 1]} : vector<12x128xf32> to vector<1x32xf32>
    %8 = vector.extract_strided_slice %0 {offsets = [8, 0], sizes = [1, 32], strides = [1, 1]} : vector<12x128xf32> to vector<1x32xf32>
    %9 = vector.extract_strided_slice %0 {offsets = [9, 0], sizes = [1, 32], strides = [1, 1]} : vector<12x128xf32> to vector<1x32xf32>
    %10 = vector.extract_strided_slice %0 {offsets = [10, 0], sizes = [1, 64], strides = [1, 1]} : vector<12x128xf32> to vector<1x64xf32>
    %11 = vector.extract_strided_slice %0 {offsets = [7, 0], sizes = [1, 32], strides = [1, 1]} : vector<12x128xf32> to vector<1x32xf32>
    %12 = vector.extract_strided_slice %0 {offsets = [11, 0], sizes = [1, 128], strides = [1, 1]} : vector<12x128xf32> to vector<1x128xf32>
    %c0_1 = arith.constant 0 : index
    %c0_2 = arith.constant 0 : index
    %c0_3 = arith.constant 0 : index
    %13 = vector.load %arg1[%c0_1, %c0_2, %c0_3] : memref<2x16x1xf32, #tpu.memory_space<vmem>>, vector<2x16x1xf32>
    %14 = vector.shape_cast %13 : vector<2x16x1xf32> to vector<32x1xf32>
    %c0_4 = arith.constant 0 : index
    %c0_5 = arith.constant 0 : index
    %15 = vector.load %arg2[%c0_4, %c0_5] : memref<1x32xf32, #tpu.memory_space<vmem>>, vector<1x32xf32>
    %16 = vector.broadcast %14 : vector<32x1xf32> to vector<32x32xf32>
    %17 = vector.broadcast %15 : vector<1x32xf32> to vector<32x32xf32>
    %18 = arith.mulf %16, %17 : vector<32x32xf32>
    %19 = vector.broadcast %1 : vector<1x32xf32> to vector<32x32xf32>
    %20 = arith.addf %18, %19 : vector<32x32xf32>
    %cst = arith.constant dense<0.000000e+00> : vector<32xf32>
    %21 = vector.multi_reduction <add>, %20, %cst [1] : vector<32x32xf32> to vector<32xf32>
    %22 = vector.shape_cast %21 : vector<32xf32> to vector<32x1xf32>
    %cst_6 = arith.constant 3.200000e+01 : f32
    %23 = vector.broadcast %cst_6 : f32 to vector<32x1xf32>
    %24 = arith.divf %22, %23 : vector<32x1xf32>
    %25 = vector.broadcast %24 : vector<32x1xf32> to vector<32x32xf32>
    %26 = arith.subf %20, %25 : vector<32x32xf32>
    %27 = arith.mulf %26, %26 : vector<32x32xf32>
    %cst_7 = arith.constant dense<0.000000e+00> : vector<32xf32>
    %28 = vector.multi_reduction <add>, %27, %cst_7 [1] : vector<32x32xf32> to vector<32xf32>
    %29 = vector.shape_cast %28 : vector<32xf32> to vector<32x1xf32>
    %cst_8 = arith.constant 3.200000e+01 : f32
    %30 = vector.broadcast %cst_8 : f32 to vector<32x1xf32>
    %31 = arith.divf %29, %30 : vector<32x1xf32>
    %32 = vector.broadcast %24 : vector<32x1xf32> to vector<32x32xf32>
    %33 = arith.subf %20, %32 : vector<32x32xf32>
    %cst_9 = arith.constant 9.99999974E-6 : f32
    %34 = vector.broadcast %cst_9 : f32 to vector<32x1xf32>
    %35 = arith.addf %31, %34 : vector<32x1xf32>
    %36 = math.rsqrt %35 : vector<32x1xf32>
    %37 = vector.broadcast %36 : vector<32x1xf32> to vector<32x32xf32>
    %38 = arith.mulf %33, %37 : vector<32x32xf32>
    %39 = vector.broadcast %2 : vector<1x32xf32> to vector<32x32xf32>
    %40 = arith.mulf %38, %39 : vector<32x32xf32>
    %41 = vector.broadcast %3 : vector<1x32xf32> to vector<32x32xf32>
    %42 = arith.addf %40, %41 : vector<32x32xf32>
    %43 = vector.shape_cast %42 : vector<32x32xf32> to vector<2x16x32xf32>
    %c0_10 = arith.constant 0 : index
    %c0_11 = arith.constant 0 : index
    %44 = vector.load %arg3[%c0_10, %c0_11] : memref<16x32xf32, #tpu.memory_space<vmem>>, vector<16x32xf32>
    %45 = vector.shape_cast %44 : vector<16x32xf32> to vector<1x16x32xf32>
    %46 = vector.broadcast %45 : vector<1x16x32xf32> to vector<2x16x32xf32>
    %47 = arith.addf %43, %46 : vector<2x16x32xf32>
    %48 = vector.shape_cast %47 : vector<2x16x32xf32> to vector<32x32xf32>
    %49 = arith.truncf %48 : vector<32x32xf32> to vector<32x32xbf16>
    %c0_12 = arith.constant 0 : index
    %c0_13 = arith.constant 0 : index
    %50 = vector.load %arg4[%c0_12, %c0_13] : memref<32x96xbf16, #tpu.memory_space<vmem>>, vector<32x96xbf16>
    %cst_14 = arith.constant dense<0.000000e+00> : vector<32x96xf32>
    %51 = tpu.matmul %49, %50, %cst_14 {dimension_numbers = #tpu.dot_dimension_numbers<[1], [0], [0], [1], [0, 0, 1, 1], [], []>} : vector<32x32xbf16>, vector<32x96xbf16>, vector<32x96xf32> -> vector<32x96xf32>
    %52 = vector.shape_cast %51 : vector<32x96xf32> to vector<2x16x96xf32>
    %53 = tpu.transpose %52, [0, 2, 1] : vector<2x16x96xf32> -> vector<2x96x16xf32>
    %54 = vector.shape_cast %53 : vector<2x96x16xf32> to vector<2x12x8x16xf32>
    %55 = tpu.transpose %54, [0, 1, 3, 2] : vector<2x12x8x16xf32> -> vector<2x12x16x8xf32>
    %56 = vector.extract_strided_slice %55 {offsets = [0, 0, 0, 0], sizes = [2, 4, 16, 8], strides = [1, 1, 1, 1]} : vector<2x12x16x8xf32> to vector<2x4x16x8xf32>
    %57 = vector.shape_cast %56 : vector<2x4x16x8xf32> to vector<8x16x8xf32>
    %58 = vector.extract_strided_slice %55 {offsets = [0, 4, 0, 0], sizes = [2, 4, 16, 8], strides = [1, 1, 1, 1]} : vector<2x12x16x8xf32> to vector<2x4x16x8xf32>
    %59 = vector.shape_cast %58 : vector<2x4x16x8xf32> to vector<8x16x8xf32>
    %60 = vector.extract_strided_slice %55 {offsets = [0, 8, 0, 0], sizes = [2, 4, 16, 8], strides = [1, 1, 1, 1]} : vector<2x12x16x8xf32> to vector<2x4x16x8xf32>
    %61 = vector.shape_cast %60 : vector<2x4x16x8xf32> to vector<8x16x8xf32>
    %62 = arith.truncf %57 : vector<8x16x8xf32> to vector<8x16x8xbf16>
    %63 = arith.truncf %59 : vector<8x16x8xf32> to vector<8x16x8xbf16>
    "tpu.trace_start"() <{level = 10 : i32, message = "bqd,bkd->bqk"}> : () -> ()
    %cst_15 = arith.constant dense<0.000000e+00> : vector<8x16x16xf32>
    %64 = tpu.matmul %62, %63, %cst_15 {dimension_numbers = #tpu.dot_dimension_numbers<[2], [2], [1], [1], [0, 0, 0, 1, 1, 1], [0], [0]>} : vector<8x16x8xbf16>, vector<8x16x8xbf16>, vector<8x16x16xf32> -> vector<8x16x16xf32>
    "tpu.trace_stop"() : () -> ()
    %cst_16 = arith.constant dense<0xFF800000> : vector<8x16xf32>
    %65 = vector.multi_reduction <maximumf>, %64, %cst_16 [2] : vector<8x16x16xf32> to vector<8x16xf32>
    %66 = vector.shape_cast %65 : vector<8x16xf32> to vector<8x16x1xf32>
    %67 = vector.broadcast %66 : vector<8x16x1xf32> to vector<8x16x16xf32>
    %68 = arith.subf %64, %67 : vector<8x16x16xf32>
    %69 = math.exp %68 : vector<8x16x16xf32>
    %cst_17 = arith.constant dense<0.000000e+00> : vector<8x16xf32>
    %70 = vector.multi_reduction <add>, %69, %cst_17 [2] : vector<8x16x16xf32> to vector<8x16xf32>
    %71 = vector.shape_cast %70 : vector<8x16xf32> to vector<8x16x1xf32>
    %72 = tpu.reciprocal %71 {approx = true} : vector<8x16x1xf32> -> vector<8x16x1xf32>
    %73 = vector.broadcast %72 : vector<8x16x1xf32> to vector<8x16x16xf32>
    %74 = arith.mulf %69, %73 : vector<8x16x16xf32>
    %75 = vector.shape_cast %74 : vector<8x16x16xf32> to vector<2x4x16x16xf32>
    %c0_18 = arith.constant 0 : index
    %c0_19 = arith.constant 0 : index
    %c0_20 = arith.constant 0 : index
    %76 = vector.load %arg5[%c0_18, %c0_19, %c0_20] : memref<4x16x16xf32, #tpu.memory_space<vmem>>, vector<4x16x16xf32>
    %77 = vector.shape_cast %76 : vector<4x16x16xf32> to vector<1x4x16x16xf32>
    %78 = vector.broadcast %77 : vector<1x4x16x16xf32> to vector<2x4x16x16xf32>
    %79 = arith.addf %75, %78 : vector<2x4x16x16xf32>
    %80 = arith.truncf %79 : vector<2x4x16x16xf32> to vector<2x4x16x16xbf16>
    %81 = vector.shape_cast %80 : vector<2x4x16x16xbf16> to vector<8x16x16xbf16>
    %82 = arith.truncf %61 : vector<8x16x8xf32> to vector<8x16x8xbf16>
    "tpu.trace_start"() <{level = 10 : i32, message = "bqk,bkd->bqd"}> : () -> ()
    %cst_21 = arith.constant dense<0.000000e+00> : vector<8x16x8xf32>
    %83 = tpu.matmul %81, %82, %cst_21 {dimension_numbers = #tpu.dot_dimension_numbers<[2], [1], [1], [2], [0, 0, 0, 1, 1, 2], [0], [0]>} : vector<8x16x16xbf16>, vector<8x16x8xbf16>, vector<8x16x8xf32> -> vector<8x16x8xf32>
    "tpu.trace_stop"() : () -> ()
    %84 = vector.shape_cast %83 : vector<8x16x8xf32> to vector<2x4x16x8xf32>
    %85 = tpu.transpose %84, [0, 1, 3, 2] : vector<2x4x16x8xf32> -> vector<2x4x8x16xf32>
    %86 = vector.shape_cast %85 : vector<2x4x8x16xf32> to vector<2x32x16xf32>
    %87 = tpu.transpose %86, [0, 2, 1] : vector<2x32x16xf32> -> vector<2x16x32xf32>
    %cst_22 = arith.constant dense<0.000000e+00> : vector<2x16xf32>
    %88 = vector.multi_reduction <add>, %87, %cst_22 [2] : vector<2x16x32xf32> to vector<2x16xf32>
    %89 = vector.shape_cast %88 : vector<2x16xf32> to vector<2x16x1xf32>
    %cst_23 = arith.constant 3.200000e+01 : f32
    %90 = vector.broadcast %cst_23 : f32 to vector<2x16x1xf32>
    %91 = arith.divf %89, %90 : vector<2x16x1xf32>
    %92 = vector.broadcast %91 : vector<2x16x1xf32> to vector<2x16x32xf32>
    %93 = arith.subf %87, %92 : vector<2x16x32xf32>
    %94 = arith.mulf %93, %93 : vector<2x16x32xf32>
    %cst_24 = arith.constant dense<0.000000e+00> : vector<2x16xf32>
    %95 = vector.multi_reduction <add>, %94, %cst_24 [2] : vector<2x16x32xf32> to vector<2x16xf32>
    %96 = vector.shape_cast %95 : vector<2x16xf32> to vector<2x16x1xf32>
    %cst_25 = arith.constant 3.200000e+01 : f32
    %97 = vector.broadcast %cst_25 : f32 to vector<2x16x1xf32>
    %98 = arith.divf %96, %97 : vector<2x16x1xf32>
    %99 = vector.broadcast %91 : vector<2x16x1xf32> to vector<2x16x32xf32>
    %100 = arith.subf %87, %99 : vector<2x16x32xf32>
    %cst_26 = arith.constant 9.99999974E-6 : f32
    %101 = vector.broadcast %cst_26 : f32 to vector<2x16x1xf32>
    %102 = arith.addf %98, %101 : vector<2x16x1xf32>
    %103 = math.rsqrt %102 : vector<2x16x1xf32>
    %104 = vector.broadcast %103 : vector<2x16x1xf32> to vector<2x16x32xf32>
    %105 = arith.mulf %100, %104 : vector<2x16x32xf32>
    %106 = vector.shape_cast %4 : vector<1x32xf32> to vector<1x1x32xf32>
    %107 = vector.broadcast %106 : vector<1x1x32xf32> to vector<2x16x32xf32>
    %108 = arith.mulf %105, %107 : vector<2x16x32xf32>
    %109 = vector.shape_cast %5 : vector<1x32xf32> to vector<1x1x32xf32>
    %110 = vector.broadcast %109 : vector<1x1x32xf32> to vector<2x16x32xf32>
    %111 = arith.addf %108, %110 : vector<2x16x32xf32>
    %112 = arith.addf %47, %111 : vector<2x16x32xf32>
    %cst_27 = arith.constant dense<0.000000e+00> : vector<2x16xf32>
    %113 = vector.multi_reduction <add>, %112, %cst_27 [2] : vector<2x16x32xf32> to vector<2x16xf32>
    %114 = vector.shape_cast %113 : vector<2x16xf32> to vector<2x16x1xf32>
    %cst_28 = arith.constant 3.200000e+01 : f32
    %115 = vector.broadcast %cst_28 : f32 to vector<2x16x1xf32>
    %116 = arith.divf %114, %115 : vector<2x16x1xf32>
    %117 = vector.broadcast %116 : vector<2x16x1xf32> to vector<2x16x32xf32>
    %118 = arith.subf %112, %117 : vector<2x16x32xf32>
    %119 = arith.mulf %118, %118 : vector<2x16x32xf32>
    %cst_29 = arith.constant dense<0.000000e+00> : vector<2x16xf32>
    %120 = vector.multi_reduction <add>, %119, %cst_29 [2] : vector<2x16x32xf32> to vector<2x16xf32>
    %121 = vector.shape_cast %120 : vector<2x16xf32> to vector<2x16x1xf32>
    %cst_30 = arith.constant 3.200000e+01 : f32
    %122 = vector.broadcast %cst_30 : f32 to vector<2x16x1xf32>
    %123 = arith.divf %121, %122 : vector<2x16x1xf32>
    %124 = vector.broadcast %116 : vector<2x16x1xf32> to vector<2x16x32xf32>
    %125 = arith.subf %112, %124 : vector<2x16x32xf32>
    %cst_31 = arith.constant 9.99999974E-6 : f32
    %126 = vector.broadcast %cst_31 : f32 to vector<2x16x1xf32>
    %127 = arith.addf %123, %126 : vector<2x16x1xf32>
    %128 = math.rsqrt %127 : vector<2x16x1xf32>
    %129 = vector.broadcast %128 : vector<2x16x1xf32> to vector<2x16x32xf32>
    %130 = arith.mulf %125, %129 : vector<2x16x32xf32>
    %131 = vector.shape_cast %6 : vector<1x32xf32> to vector<1x1x32xf32>
    %132 = vector.broadcast %131 : vector<1x1x32xf32> to vector<2x16x32xf32>
    %133 = arith.mulf %130, %132 : vector<2x16x32xf32>
    %134 = vector.shape_cast %7 : vector<1x32xf32> to vector<1x1x32xf32>
    %135 = vector.broadcast %134 : vector<1x1x32xf32> to vector<2x16x32xf32>
    %136 = arith.addf %133, %135 : vector<2x16x32xf32>
    %137 = vector.shape_cast %136 : vector<2x16x32xf32> to vector<32x32xf32>
    %138 = arith.truncf %137 : vector<32x32xf32> to vector<32x32xbf16>
    %c0_32 = arith.constant 0 : index
    %c0_33 = arith.constant 0 : index
    %139 = vector.load %arg6[%c0_32, %c0_33] : memref<32x64xbf16, #tpu.memory_space<vmem>>, vector<32x64xbf16>
    %cst_34 = arith.constant dense<0.000000e+00> : vector<32x64xf32>
    %140 = tpu.matmul %138, %139, %cst_34 {dimension_numbers = #tpu.dot_dimension_numbers<[1], [0], [0], [1], [0, 0, 1, 1], [], []>} : vector<32x32xbf16>, vector<32x64xbf16>, vector<32x64xf32> -> vector<32x64xf32>
    %141 = vector.broadcast %10 : vector<1x64xf32> to vector<32x64xf32>
    %142 = arith.addf %140, %141 : vector<32x64xf32>
    %cst_35 = arith.constant 0.000000e+00 : f32
    %143 = vector.broadcast %cst_35 : f32 to vector<32x64xf32>
    %144 = arith.maximumf %142, %143 : vector<32x64xf32>
    %145 = arith.truncf %144 : vector<32x64xf32> to vector<32x64xbf16>
    %c0_36 = arith.constant 0 : index
    %c0_37 = arith.constant 0 : index
    %146 = vector.load %arg7[%c0_36, %c0_37] : memref<64x32xbf16, #tpu.memory_space<vmem>>, vector<64x32xbf16>
    %cst_38 = arith.constant dense<0.000000e+00> : vector<32x32xf32>
    %147 = tpu.matmul %145, %146, %cst_38 {dimension_numbers = #tpu.dot_dimension_numbers<[1], [0], [0], [1], [0, 0, 1, 1], [], []>} : vector<32x64xbf16>, vector<64x32xbf16>, vector<32x32xf32> -> vector<32x32xf32>
    %148 = vector.broadcast %11 : vector<1x32xf32> to vector<32x32xf32>
    %149 = arith.addf %147, %148 : vector<32x32xf32>
    %150 = arith.addf %137, %149 : vector<32x32xf32>
    %cst_39 = arith.constant dense<0.000000e+00> : vector<32xf32>
    %151 = vector.multi_reduction <add>, %150, %cst_39 [1] : vector<32x32xf32> to vector<32xf32>
    %152 = vector.shape_cast %151 : vector<32xf32> to vector<32x1xf32>
    %cst_40 = arith.constant 3.200000e+01 : f32
    %153 = vector.broadcast %cst_40 : f32 to vector<32x1xf32>
    %154 = arith.divf %152, %153 : vector<32x1xf32>
    %155 = vector.broadcast %154 : vector<32x1xf32> to vector<32x32xf32>
    %156 = arith.subf %150, %155 : vector<32x32xf32>
    %157 = arith.mulf %156, %156 : vector<32x32xf32>
    %cst_41 = arith.constant dense<0.000000e+00> : vector<32xf32>
    %158 = vector.multi_reduction <add>, %157, %cst_41 [1] : vector<32x32xf32> to vector<32xf32>
    %159 = vector.shape_cast %158 : vector<32xf32> to vector<32x1xf32>
    %cst_42 = arith.constant 3.200000e+01 : f32
    %160 = vector.broadcast %cst_42 : f32 to vector<32x1xf32>
    %161 = arith.divf %159, %160 : vector<32x1xf32>
    %162 = vector.broadcast %154 : vector<32x1xf32> to vector<32x32xf32>
    %163 = arith.subf %150, %162 : vector<32x32xf32>
    %cst_43 = arith.constant 9.99999974E-6 : f32
    %164 = vector.broadcast %cst_43 : f32 to vector<32x1xf32>
    %165 = arith.addf %161, %164 : vector<32x1xf32>
    %166 = math.rsqrt %165 : vector<32x1xf32>
    %167 = vector.broadcast %166 : vector<32x1xf32> to vector<32x32xf32>
    %168 = arith.mulf %163, %167 : vector<32x32xf32>
    %169 = vector.broadcast %8 : vector<1x32xf32> to vector<32x32xf32>
    %170 = arith.mulf %168, %169 : vector<32x32xf32>
    %171 = vector.broadcast %9 : vector<1x32xf32> to vector<32x32xf32>
    %172 = arith.addf %170, %171 : vector<32x32xf32>
    %173 = vector.shape_cast %172 : vector<32x32xf32> to vector<2x16x32xf32>
    %cst_44 = arith.constant dense<0.000000e+00> : vector<2x32xf32>
    %174 = vector.multi_reduction <add>, %173, %cst_44 [1] : vector<2x16x32xf32> to vector<2x32xf32>
    %cst_45 = arith.constant 1.600000e+01 : f32
    %175 = vector.broadcast %cst_45 : f32 to vector<2x32xf32>
    %176 = arith.divf %174, %175 : vector<2x32xf32>
    %177 = arith.truncf %176 : vector<2x32xf32> to vector<2x32xbf16>
    %c0_46 = arith.constant 0 : index
    %c0_47 = arith.constant 0 : index
    %178 = vector.load %arg8[%c0_46, %c0_47] : memref<32x128xbf16, #tpu.memory_space<vmem>>, vector<32x128xbf16>
    %cst_48 = arith.constant dense<0.000000e+00> : vector<2x128xf32>
    %179 = tpu.matmul %177, %178, %cst_48 {dimension_numbers = #tpu.dot_dimension_numbers<[1], [0], [0], [1], [0, 0, 1, 1], [], []>} : vector<2x32xbf16>, vector<32x128xbf16>, vector<2x128xf32> -> vector<2x128xf32>
    %180 = vector.broadcast %12 : vector<1x128xf32> to vector<2x128xf32>
    %181 = arith.addf %179, %180 : vector<2x128xf32>
    %c0_49 = arith.constant 0 : index
    %c0_50 = arith.constant 0 : index
    %182 = vector.load %arg10[%c0_49, %c0_50] : memref<2x128xf32, #tpu.memory_space<vmem>>, vector<2x128xf32>
    tpu.vector_store %arg10[%c0_49, %c0_50], %181 {strides = array<i32>} : memref<2x128xf32, #tpu.memory_space<vmem>>, vector<2x128xf32>,
    return
  }
  func.func @transform_0(%arg0: i32) -> (i32, i32, i32) {
    %c0_i32 = arith.constant 0 : i32
    %c0_i32_0 = arith.constant 0 : i32
    %c0_i32_1 = arith.constant 0 : i32
    return %arg0, %c0_i32, %c0_i32_0 : i32, i32, i32
  }
  func.func @transform_1(%arg0: i32) -> (i32, i32) {
    %c0_i32 = arith.constant 0 : i32
    %c0_i32_0 = arith.constant 0 : i32
    %c0_i32_1 = arith.constant 0 : i32
    return %c0_i32, %c0_i32_0 : i32, i32
  }
  func.func @transform_2(%arg0: i32) -> (i32, i32) {
    %c0_i32 = arith.constant 0 : i32
    %c0_i32_0 = arith.constant 0 : i32
    %c0_i32_1 = arith.constant 0 : i32
    return %c0_i32, %c0_i32_0 : i32, i32
  }
  func.func @transform_3(%arg0: i32) -> (i32, i32) {
    %c0_i32 = arith.constant 0 : i32
    %c0_i32_0 = arith.constant 0 : i32
    %c0_i32_1 = arith.constant 0 : i32
    return %c0_i32, %c0_i32_0 : i32, i32
  }
  func.func @transform_4(%arg0: i32) -> (i32, i32, i32) {
    %c0_i32 = arith.constant 0 : i32
    %c0_i32_0 = arith.constant 0 : i32
    %c0_i32_1 = arith.constant 0 : i32
    %c0_i32_2 = arith.constant 0 : i32
    return %c0_i32, %c0_i32_0, %c0_i32_1 : i32, i32, i32
  }
  func.func @transform_5(%arg0: i32) -> (i32, i32) {
    %c0_i32 = arith.constant 0 : i32
    %c0_i32_0 = arith.constant 0 : i32
    %c0_i32_1 = arith.constant 0 : i32
    return %c0_i32, %c0_i32_0 : i32, i32
  }
  func.func @transform_6(%arg0: i32) -> (i32, i32) {
    %c0_i32 = arith.constant 0 : i32
    %c0_i32_0 = arith.constant 0 : i32
    %c0_i32_1 = arith.constant 0 : i32
    return %c0_i32, %c0_i32_0 : i32, i32
  }
  func.func @transform_7(%arg0: i32) -> (i32, i32) {
    %c0_i32 = arith.constant 0 : i32
    %c0_i32_0 = arith.constant 0 : i32
    %c0_i32_1 = arith.constant 0 : i32
    return %c0_i32, %c0_i32_0 : i32, i32
  }
  func.func @transform_8(%arg0: i32) -> (i32, i32) {
    %c0_i32 = arith.constant 0 : i32
    %c0_i32_0 = arith.constant 0 : i32
    %c0_i32_1 = arith.constant 0 : i32
    return %c0_i32, %c0_i32_0 : i32, i32
  }
  func.func @transform_9(%arg0: i32) -> (i32, i32) {
    %c0_i32 = arith.constant 0 : i32
    %c0_i32_0 = arith.constant 0 : i32
    return %arg0, %c0_i32 : i32, i32
  }
}

</mosaic_0001>

<llo_original>
// kernel: transformer_forward.1
$region0: #{transformer_forward.1}
  #allocation0 [shape = 'u32[]', space=smem, size = 0x4, offset = 0x4, fixed_abs, tag = 'smem constant byte address 0x4 - core index']
  #allocation1 [shape = 'u32[144,128]{1,0:T(1,128)}', space=vmem, size = 0x12000, scoped, tag = 'internal scratch']
  %s0 = inlined_call_operand.vmem [shape: f32[2,16,1], index: 0, kind: input, shape index: {}]
  %s1 = inlined_call_operand.vmem [shape: f32[1,32], index: 1, kind: input, shape index: {}]
  %s2 = inlined_call_operand.vmem [shape: f32[16,32], index: 2, kind: input, shape index: {}]
  %s3 = inlined_call_operand.vmem [shape: bf16[32,96], index: 3, kind: input, shape index: {}]
  %s4 = inlined_call_operand.vmem [shape: f32[4,16,16], index: 4, kind: input, shape index: {}]
  %s5 = inlined_call_operand.vmem [shape: bf16[32,64], index: 5, kind: input, shape index: {}]
  %s6 = inlined_call_operand.vmem [shape: bf16[64,32], index: 6, kind: input, shape index: {}]
  %s7 = inlined_call_operand.vmem [shape: bf16[32,128], index: 7, kind: input, shape index: {}]
  %s8 = inlined_call_operand.vmem [shape: f32[12,128], index: 8, kind: input, shape index: {}]
  %s9 = inlined_call_operand.hbm [shape: f32[2,128], index: 9, kind: output, shape index: {}]
  %s10 = sld [smem:[#allocation0]]
  $region46: #{transformer_forward.1} parent=0
    _
  %s12 = ssub.s32 1, %s10
  %s13 = scalar_select 0, %s12, %s10
  $region1: #{transformer_forward.1} parent=0
    #allocation2 [shape = 'u8[1024]{0}', space=vmem, size = 0x400, scoped, tag = 'output window, operand 0, single buffered']
    #allocation3 [shape = 's32[1]{0}', space=sflag, size = 0x4, scoped, tag = 'scoped memory for transformer_forward.1']
    %14 = vsyncpa [#allocation3], 0
    // Predicated region
    $region2: #{transformer_forward.1} parent=1 // pred_check
      _
    $region3: #{transformer_forward.1} parent=1 // pred_check_branch
      %16 = sbr.rel (0) target = $region5
    $region4: #{transformer_forward.1} parent=1 // pred_region
      _
    $region5: #{transformer_forward.1} parent=1 // pred_fallthru
      _
    // Predicated region
    $region6: #{transformer_forward.1} parent=1 // pred_check
      _
    $region7: #{transformer_forward.1} parent=1 // pred_check_branch
      %18 = sbr.rel (0) target = $region9
    $region8: #{transformer_forward.1} parent=1 // pred_region
      _
    $region9: #{transformer_forward.1} parent=1 // pred_fallthru
      _
    // Predicated region
    $region10: #{transformer_forward.1} parent=1 // pred_check
      _
    $region11: #{transformer_forward.1} parent=1 // pred_check_branch
      %20 = sbr.rel (0) target = $region13
    $region12: #{transformer_forward.1} parent=1 // pred_region
      _
    $region13: #{transformer_forward.1} parent=1 // pred_fallthru
      _
    // Predicated region
    $region14: #{transformer_forward.1} parent=1 // pred_check
      _
    $region15: #{transformer_forward.1} parent=1 // pred_check_branch
      %22 = sbr.rel (0) target = $region17
    $region16: #{transformer_forward.1} parent=1 // pred_region
      _
    $region17: #{transformer_forward.1} parent=1 // pred_fallthru
      _
    // Predicated region
    $region18: #{transformer_forward.1} parent=1 // pred_check
      _
    $region19: #{transformer_forward.1} parent=1 // pred_check_branch
      %24 = sbr.rel (0) target = $region21
    $region20: #{transformer_forward.1} parent=1 // pred_region
      _
    $region21: #{transformer_forward.1} parent=1 // pred_fallthru
      _
    // Predicated region
    $region22: #{transformer_forward.1} parent=1 // pred_check
      _
    $region23: #{transformer_forward.1} parent=1 // pred_check_branch
      %26 = sbr.rel (0) target = $region25
    $region24: #{transformer_forward.1} parent=1 // pred_region
      _
    $region25: #{transformer_forward.1} parent=1 // pred_fallthru
      _
    // Predicated region
    $region26: #{transformer_forward.1} parent=1 // pred_check
      _
    $region27: #{transformer_forward.1} parent=1 // pred_check_branch
      %28 = sbr.rel (0) target = $region29
    $region28: #{transformer_forward.1} parent=1 // pred_region
      _
    $region29: #{transformer_forward.1} parent=1 // pred_fallthru
      _
    // Predicated region
    $region30: #{transformer_forward.1} parent=1 // pred_check
      _
    $region31: #{transformer_forward.1} parent=1 // pred_check_branch
      %30 = sbr.rel (0) target = $region33
    $region32: #{transformer_forward.1} parent=1 // pred_region
      _
    $region33: #{transformer_forward.1} parent=1 // pred_fallthru
      _
    // Predicated region
    $region34: #{transformer_forward.1} parent=1 // pred_check
      _
    $region35: #{transformer_forward.1} parent=1 // pred_check_branch
      %32 = sbr.rel (0) target = $region37
    $region36: #{transformer_forward.1} parent=1 // pred_region
      _
    $region37: #{transformer_forward.1} parent=1 // pred_fallthru
      _
    %v34 = vld [vmem:[%s8] sm:$0xff]
    %v35 = vld [vmem:[%s8 + $0x8] sm:$0xf]
    %v36 = vld [vmem:[%s0] sm:$0xff]
    %v37 = vld [vmem:[%s0 + $0x8] sm:$0xff]
    %v38 = vld [vmem:[%s0 + $0x10] sm:$0xff]
    %v39 = vld [vmem:[%s0 + $0x18] sm:$0xff]
    %v40 = vld [vmem:[%s1] sm:$0x1]
    %42 = vset.pattern.permute.xlu0 0
    %43 = vperm.xlu0 %42, %v36
    %v44 = vpop.permute.xlu0 %43
    %47 = vset.pattern.permute.xlu0 0
    %48 = vperm.xlu0 %47, %v37
    %v49 = vpop.permute.xlu0 %48
    %52 = vset.pattern.permute.xlu0 0
    %53 = vperm.xlu0 %52, %v38
    %v54 = vpop.permute.xlu0 %53
    %57 = vset.pattern.permute.xlu0 0
    %58 = vperm.xlu0 %57, %v39
    %v59 = vpop.permute.xlu0 %58
    %v62 = vlaneseq
    %v63 = vshrl.u32 %v62, 7
    %v64 = vsub.s32 0, %v63
    %v65 = vrot.slane %v40, %v64
    %v67 = vmul.f32 %v44, %v65
    %v68 = vmul.f32 %v49, %v65
    %v69 = vmul.f32 %v54, %v65
    %v70 = vmul.f32 %v59, %v65
    %v71 = vlaneseq
    %v72 = vshrl.u32 %v71, 7
    %v73 = vsub.s32 0, %v72
    %v74 = vrot.slane %v34, %v73
    %v75 = vadd.f32 %v67, %v74
    %v76 = vadd.f32 %v68, %v74
    %v77 = vadd.f32 %v69, %v74
    %v78 = vadd.f32 %v70, %v74
    %vm79 = vcmask 261120
    %v80 = vsel %vm79, %v75, 0.0
    %81 = vadd.xlane.f32.xlu0 %v80
    %v82 = vpop.xlane.xlu0 %81
    %v83 = vsel %vm79, %v76, 0.0
    %84 = vadd.xlane.f32.xlu0 %v83
    %v85 = vpop.xlane.xlu0 %84
    %v86 = vsel %vm79, %v77, 0.0
    %87 = vadd.xlane.f32.xlu0 %v86
    %v88 = vpop.xlane.xlu0 %87
    %v89 = vsel %vm79, %v78, 0.0
    %90 = vadd.xlane.f32.xlu0 %v89
    %v91 = vpop.xlane.xlu0 %90
    %v92 = vrcp.pop 32.0
    %v93 = vmul.f32 %v82, %v92
    %v94 = vmul.f32 %v85, %v92
    %v95 = vmul.f32 %v88, %v92
    %v96 = vmul.f32 %v91, %v92
    %v97 = vsub.f32 %v75, %v93
    %v98 = vsub.f32 %v76, %v94
    %v99 = vsub.f32 %v77, %v95
    %v100 = vsub.f32 %v78, %v96
    %v101 = vmul.f32 %v97, %v97
    %v102 = vmul.f32 %v98, %v98
    %v103 = vmul.f32 %v99, %v99
    %v104 = vmul.f32 %v100, %v100
    %v105 = vsel %vm79, %v101, 0.0
    %106 = vadd.xlane.f32.xlu0 %v105
    %v107 = vpop.xlane.xlu0 %106
    %v108 = vsel %vm79, %v102, 0.0
    %109 = vadd.xlane.f32.xlu0 %v108
    %v110 = vpop.xlane.xlu0 %109
    %v111 = vsel %vm79, %v103, 0.0
    %112 = vadd.xlane.f32.xlu0 %v111
    %v113 = vpop.xlane.xlu0 %112
    %v114 = vsel %vm79, %v104, 0.0
    %115 = vadd.xlane.f32.xlu0 %v114
    %v116 = vpop.xlane.xlu0 %115
    %v117 = vmul.f32 %v107, %v92
    %v118 = vmul.f32 %v110, %v92
    %v119 = vmul.f32 %v113, %v92
    %v120 = vmul.f32 %v116, %v92
    %v121 = vadd.f32 %v117, 1e-05
    %v122 = vadd.f32 %v118, 1e-05
    %v123 = vadd.f32 %v119, 1e-05
    %v124 = vadd.f32 %v120, 1e-05
    %v125 = vrsqrt.pop %v121
    %v126 = vrsqrt.pop %v122
    %v127 = vrsqrt.pop %v123
    %v128 = vrsqrt.pop %v124
    %v129 = vmul.f32 %v97, %v125
    %v130 = vmul.f32 %v98, %v126
    %v131 = vmul.f32 %v99, %v127
    %v132 = vmul.f32 %v100, %v128
    %v133 = vlaneseq
    %v134 = vshrl.u32 %v133, 7
    %v135 = vsub.s32 1, %v134
    %v136 = vrot.slane %v34, %v135
    %v137 = vmul.f32 %v129, %v136
    %v138 = vmul.f32 %v130, %v136
    %v139 = vmul.f32 %v131, %v136
    %v140 = vmul.f32 %v132, %v136
    %v141 = vlaneseq
    %v142 = vshrl.u32 %v141, 7
    %v143 = vsub.s32 2, %v142
    %v144 = vrot.slane %v34, %v143
    %v145 = vadd.f32 %v137, %v144
    %v146 = vadd.f32 %v138, %v144
    %v147 = vadd.f32 %v139, %v144
    %v148 = vadd.f32 %v140, %v144
    %v149 = vld [vmem:[%s2] sm:$0xff]
    %v150 = vld [vmem:[%s2 + $0x8] sm:$0xff]
    %v151 = vadd.f32 %v145, %v149
    %v152 = vadd.f32 %v146, %v150
    %v153 = vadd.f32 %v147, %v149
    %v154 = vadd.f32 %v148, %v150
    %v155 = vpack.c.bf16 %v152, %v151
    %v156 = vpack.c.bf16 %v154, %v153
    %v157 = vld [vmem:[%s3] sm:$0xf]
    %v158 = vld [vmem:[%s3 + $0x4] sm:$0xf]
    %v159 = vld [vmem:[%s3 + $0x8] sm:$0xf]
    %v160 = vld [vmem:[%s3 + $0xc] sm:$0xf]
    %v165 = vunpack.c.l.b16 %v157
    %v166 = vunpack.c.l.b16 %v158
    %v167 = vunpack.c.l.b16 %v159
    %v168 = vunpack.c.l.b16 %v160
    %v169 = vpack.c.b16 %v166, %v165
    %v170 = vpack.c.b16 %v168, %v167
    %v174 = vsel %vm79, %v155, 0
    %v177 = vsel %vm79, %v156, 0
    %179 = vmatprep.subr.bf16.mxu0 0
    %180 = vmatpush1.bf16.msra.mxu0 %v169
    %181 = vmatprep.subr.bf16.mxu0 0
    %182 = vmatpush1.bf16.msra.mxu0 %v170
    %183 = vmatprep.subr.bf16.mxu0 0
    %184 = vmatpush1.bf16.msra.mxu0 0
    %185 = vmatprep.subr.bf16.mxu0 0
    %186 = vmatpush1.bf16.msra.mxu0 0
    %187 = vmatprep.subr.bf16.mxu0 0
    %188 = vmatpush1.bf16.msra.mxu0 0
    %189 = vmatprep.subr.bf16.mxu0 0
    %190 = vmatpush1.bf16.msra.mxu0 0
    %191 = vmatprep.subr.bf16.mxu0 0
    %192 = vmatpush1.bf16.msra.mxu0 0
    %193 = vmatprep.subr.bf16.mxu0 0
    %194 = vmatpush1.bf16.msra.mxu0 0
    %195 = vmatprep.subr.bf16.mxu0 0
    %196 = vmatpush1.bf16.msra.mxu0 0
    %197 = vmatprep.subr.bf16.mxu0 0
    %198 = vmatpush1.bf16.msra.mxu0 0
    %199 = vmatprep.subr.bf16.mxu0 0
    %200 = vmatpush1.bf16.msra.mxu0 0
    %201 = vmatprep.subr.bf16.mxu0 0
    %202 = vmatpush1.bf16.msra.mxu0 0
    %203 = vmatprep.subr.bf16.mxu0 0
    %204 = vmatpush1.bf16.msra.mxu0 0
    %205 = vmatprep.subr.bf16.mxu0 0
    %206 = vmatpush1.bf16.msra.mxu0 0
    %207 = vmatprep.subr.bf16.mxu0 0
    %208 = vmatpush1.bf16.msra.mxu0 0
    %209 = vmatprep.subr.bf16.mxu0 0
    %210 = vmatpush1.bf16.msra.mxu0 0
    %211 = vmatprep.mubr.bf16.mxu0 0
    %212 = vmatmul.mubr.bf16.gmra.mrb[0].mxu0 %v174
    %v213 = vpop.f32.mrb[0].mxu0
    %v214 = vadd.f32 0.0, %v213
    %v215 = vpop.f32.mrb[0].mxu0
    %v216 = vpop.f32.mrb[0].mxu0
    %v217 = vadd.f32 0.0, %v216
    %v218 = vpop.f32.mrb[0].mxu0
    %219 = vmatprep.mubr.bf16.mxu0 0
    %220 = vmatmul.mubr.bf16.gmra.mrb[0].mxu0 %v177
    %v221 = vpop.f32.mrb[0].mxu0
    %v222 = vadd.f32 0.0, %v221
    %v223 = vpop.f32.mrb[0].mxu0
    %v224 = vpop.f32.mrb[0].mxu0
    %v225 = vadd.f32 0.0, %v224
    %v226 = vpop.f32.mrb[0].mxu0
    %227 = vdwg.mxu0
    %228 = vxpose.xlu0.b32.start [1/16] %v214, 128
    %229 = vxpose.xlu0.b32.cont [2/16] %v217, 128
    %230 = vxpose.xlu0.b32.cont [3/16] 0.0, 128
    %231 = vxpose.xlu0.b32.cont [4/16] 0.0, 128
    %232 = vxpose.xlu0.b32.cont [5/16] 0.0, 128
    %233 = vxpose.xlu0.b32.cont [6/16] 0.0, 128
    %234 = vxpose.xlu0.b32.cont [7/16] 0.0, 128
    %235 = vxpose.xlu0.b32.cont [8/16] 0.0, 128
    %236 = vxpose.xlu0.b32.cont [9/16] 0.0, 128
    %237 = vxpose.xlu0.b32.cont [10/16] 0.0, 128
    %238 = vxpose.xlu0.b32.cont [11/16] 0.0, 128
    %239 = vxpose.xlu0.b32.cont [12/16] 0.0, 128
    %240 = vxpose.xlu0.b32.cont [13/16] 0.0, 128
    %241 = vxpose.xlu0.b32.cont [14/16] 0.0, 128
    %242 = vxpose.xlu0.b32.cont [15/16] 0.0, 128
    %243 = vxpose.xlu0.b32.end [16/16] 0.0, 128
    %v244 = vpop.trf.xlu0
    %v245 = vpop.trf.xlu0
    %v246 = vpop.trf.xlu0
    %v247 = vpop.trf.xlu0
    %v248 = vpop.trf.xlu0
    %v249 = vpop.trf.xlu0
    %v250 = vpop.trf.xlu0
    %v251 = vpop.trf.xlu0
    %v252 = vpop.trf.xlu0
    %v253 = vpop.trf.xlu0
    %v254 = vpop.trf.xlu0
    %v255 = vpop.trf.xlu0
    %v256 = vpop.trf.xlu0
    %v257 = vpop.trf.xlu0
    %v258 = vpop.trf.xlu0
    %v259 = vpop.trf.xlu0
    %260 = vxpose.xlu0.b32.start [1/16] %v222, 128
    %261 = vxpose.xlu0.b32.cont [2/16] %v225, 128
    %262 = vxpose.xlu0.b32.cont [3/16] 0.0, 128
    %263 = vxpose.xlu0.b32.cont [4/16] 0.0, 128
    %264 = vxpose.xlu0.b32.cont [5/16] 0.0, 128
    %265 = vxpose.xlu0.b32.cont [6/16] 0.0, 128
    %266 = vxpose.xlu0.b32.cont [7/16] 0.0, 128
    %267 = vxpose.xlu0.b32.cont [8/16] 0.0, 128
    %268 = vxpose.xlu0.b32.cont [9/16] 0.0, 128
    %269 = vxpose.xlu0.b32.cont [10/16] 0.0, 128
    %270 = vxpose.xlu0.b32.cont [11/16] 0.0, 128
    %271 = vxpose.xlu0.b32.cont [12/16] 0.0, 128
    %272 = vxpose.xlu0.b32.cont [13/16] 0.0, 128
    %273 = vxpose.xlu0.b32.cont [14/16] 0.0, 128
    %274 = vxpose.xlu0.b32.cont [15/16] 0.0, 128
    %275 = vxpose.xlu0.b32.end [16/16] 0.0, 128
    %v276 = vpop.trf.xlu0
    %v277 = vpop.trf.xlu0
    %v278 = vpop.trf.xlu0
    %v279 = vpop.trf.xlu0
    %v280 = vpop.trf.xlu0
    %v281 = vpop.trf.xlu0
    %v282 = vpop.trf.xlu0
    %v283 = vpop.trf.xlu0
    %v284 = vpop.trf.xlu0
    %v285 = vpop.trf.xlu0
    %v286 = vpop.trf.xlu0
    %v287 = vpop.trf.xlu0
    %v288 = vpop.trf.xlu0
    %v289 = vpop.trf.xlu0
    %v290 = vpop.trf.xlu0
    %v291 = vpop.trf.xlu0
    %292 = vxpose.xlu0.b32.start [1/16] %v244, 128
    %293 = vxpose.xlu0.b32.cont [2/16] 0.0, 128
    %294 = vxpose.xlu0.b32.cont [3/16] 0.0, 128
    %295 = vxpose.xlu0.b32.cont [4/16] 0.0, 128
    %296 = vxpose.xlu0.b32.cont [5/16] 0.0, 128
    %297 = vxpose.xlu0.b32.cont [6/16] 0.0, 128
    %298 = vxpose.xlu0.b32.cont [7/16] 0.0, 128
    %299 = vxpose.xlu0.b32.cont [8/16] 0.0, 128
    %300 = vxpose.xlu0.b32.cont [9/16] 0.0, 128
    %301 = vxpose.xlu0.b32.cont [10/16] 0.0, 128
    %302 = vxpose.xlu0.b32.cont [11/16] 0.0, 128
    %303 = vxpose.xlu0.b32.cont [12/16] 0.0, 128
    %304 = vxpose.xlu0.b32.cont [13/16] 0.0, 128
    %305 = vxpose.xlu0.b32.cont [14/16] 0.0, 128
    %306 = vxpose.xlu0.b32.cont [15/16] 0.0, 128
    %307 = vxpose.xlu0.b32.end [16/16] 0.0, 128
    %v308 = vpop.trf.xlu0
    %v309 = vpop.trf.xlu0
    %v310 = vpop.trf.xlu0
    %v311 = vpop.trf.xlu0
    %v312 = vpop.trf.xlu0
    %v313 = vpop.trf.xlu0
    %v314 = vpop.trf.xlu0
    %v315 = vpop.trf.xlu0
    %v316 = vpop.trf.xlu0
    %v317 = vpop.trf.xlu0
    %v318 = vpop.trf.xlu0
    %v319 = vpop.trf.xlu0
    %v320 = vpop.trf.xlu0
    %v321 = vpop.trf.xlu0
    %v322 = vpop.trf.xlu0
    %v323 = vpop.trf.xlu0
    %324 = vxpose.xlu0.b32.start [1/16] %v245, 128
    %325 = vxpose.xlu0.b32.cont [2/16] 0.0, 128
    %326 = vxpose.xlu0.b32.cont [3/16] 0.0, 128
    %327 = vxpose.xlu0.b32.cont [4/16] 0.0, 128
    %328 = vxpose.xlu0.b32.cont [5/16] 0.0, 128
    %329 = vxpose.xlu0.b32.cont [6/16] 0.0, 128
    %330 = vxpose.xlu0.b32.cont [7/16] 0.0, 128
    %331 = vxpose.xlu0.b32.cont [8/16] 0.0, 128
    %332 = vxpose.xlu0.b32.cont [9/16] 0.0, 128
    %333 = vxpose.xlu0.b32.cont [10/16] 0.0, 128
    %334 = vxpose.xlu0.b32.cont [11/16] 0.0, 128
    %335 = vxpose.xlu0.b32.cont [12/16] 0.0, 128
    %336 = vxpose.xlu0.b32.cont [13/16] 0.0, 128
    %337 = vxpose.xlu0.b32.cont [14/16] 0.0, 128
    %338 = vxpose.xlu0.b32.cont [15/16] 0.0, 128
    %339 = vxpose.xlu0.b32.end [16/16] 0.0, 128
    %v340 = vpop.trf.xlu0
    %v341 = vpop.trf.xlu0
    %v342 = vpop.trf.xlu0
    %v343 = vpop.trf.xlu0
    %v344 = vpop.trf.xlu0
    %v345 = vpop.trf.xlu0
    %v346 = vpop.trf.xlu0
    %v347 = vpop.trf.xlu0
    %v348 = vpop.trf.xlu0
    %v349 = vpop.trf.xlu0
    %v350 = vpop.trf.xlu0
    %v351 = vpop.trf.xlu0
    %v352 = vpop.trf.xlu0
    %v353 = vpop.trf.xlu0
    %v354 = vpop.trf.xlu0
    %v355 = vpop.trf.xlu0
    %356 = vxpose.xlu0.b32.start [1/16] %v246, 128
    %357 = vxpose.xlu0.b32.cont [2/16] 0.0, 128
    %358 = vxpose.xlu0.b32.cont [3/16] 0.0, 128
    %359 = vxpose.xlu0.b32.cont [4/16] 0.0, 128
    %360 = vxpose.xlu0.b32.cont [5/16] 0.0, 128
    %361 = vxpose.xlu0.b32.cont [6/16] 0.0, 128
    %362 = vxpose.xlu0.b32.cont [7/16] 0.0, 128
    %363 = vxpose.xlu0.b32.cont [8/16] 0.0, 128
    %364 = vxpose.xlu0.b32.cont [9/16] 0.0, 128
    %365 = vxpose.xlu0.b32.cont [10/16] 0.0, 128
    %366 = vxpose.xlu0.b32.cont [11/16] 0.0, 128
    %367 = vxpose.xlu0.b32.cont [12/16] 0.0, 128
    %368 = vxpose.xlu0.b32.cont [13/16] 0.0, 128
    %369 = vxpose.xlu0.b32.cont [14/16] 0.0, 128
    %370 = vxpose.xlu0.b32.cont [15/16] 0.0, 128
    %371 = vxpose.xlu0.b32.end [16/16] 0.0, 128
    %v372 = vpop.trf.xlu0
    %v373 = vpop.trf.xlu0
    %v374 = vpop.trf.xlu0
    %v375 = vpop.trf.xlu0
    %v376 = vpop.trf.xlu0
    %v377 = vpop.trf.xlu0
    %v378 = vpop.trf.xlu0
    %v379 = vpop.trf.xlu0
    %v380 = vpop.trf.xlu0
    %v381 = vpop.trf.xlu0
    %v382 = vpop.trf.xlu0
    %v383 = vpop.trf.xlu0
    %v384 = vpop.trf.xlu0
    %v385 = vpop.trf.xlu0
    %v386 = vpop.trf.xlu0
    %v387 = vpop.trf.xlu0
    %388 = vxpose.xlu0.b32.start [1/16] %v247, 128
    %389 = vxpose.xlu0.b32.cont [2/16] 0.0, 128
    %390 = vxpose.xlu0.b32.cont [3/16] 0.0, 128
    %391 = vxpose.xlu0.b32.cont [4/16] 0.0, 128
    %392 = vxpose.xlu0.b32.cont [5/16] 0.0, 128
    %393 = vxpose.xlu0.b32.cont [6/16] 0.0, 128
    %394 = vxpose.xlu0.b32.cont [7/16] 0.0, 128
    %395 = vxpose.xlu0.b32.cont [8/16] 0.0, 128
    %396 = vxpose.xlu0.b32.cont [9/16] 0.0, 128
    %397 = vxpose.xlu0.b32.cont [10/16] 0.0, 128
    %398 = vxpose.xlu0.b32.cont [11/16] 0.0, 128
    %399 = vxpose.xlu0.b32.cont [12/16] 0.0, 128
    %400 = vxpose.xlu0.b32.cont [13/16] 0.0, 128
    %401 = vxpose.xlu0.b32.cont [14/16] 0.0, 128
    %402 = vxpose.xlu0.b32.cont [15/16] 0.0, 128
    %403 = vxpose.xlu0.b32.end [16/16] 0.0, 128
    %v404 = vpop.trf.xlu0
    %v405 = vpop.trf.xlu0
    %v406 = vpop.trf.xlu0
    %v407 = vpop.trf.xlu0
    %v408 = vpop.trf.xlu0
    %v409 = vpop.trf.xlu0
    %v410 = vpop.trf.xlu0
    %v411 = vpop.trf.xlu0
    %v412 = vpop.trf.xlu0
    %v413 = vpop.trf.xlu0
    %v414 = vpop.trf.xlu0
    %v415 = vpop.trf.xlu0
    %v416 = vpop.trf.xlu0
    %v417 = vpop.trf.xlu0
    %v418 = vpop.trf.xlu0
    %v419 = vpop.trf.xlu0
    %420 = vxpose.xlu0.b32.start [1/16] %v248, 128
    %421 = vxpose.xlu0.b32.cont [2/16] 0.0, 128
    %422 = vxpose.xlu0.b32.cont [3/16] 0.0, 128
    %423 = vxpose.xlu0.b32.cont [4/16] 0.0, 128
    %424 = vxpose.xlu0.b32.cont [5/16] 0.0, 128
    %425 = vxpose.xlu0.b32.cont [6/16] 0.0, 128
    %426 = vxpose.xlu0.b32.cont [7/16] 0.0, 128
    %427 = vxpose.xlu0.b32.cont [8/16] 0.0, 128
    %428 = vxpose.xlu0.b32.cont [9/16] 0.0, 128
    %429 = vxpose.xlu0.b32.cont [10/16] 0.0, 128
    %430 = vxpose.xlu0.b32.cont [11/16] 0.0, 128
    %431 = vxpose.xlu0.b32.cont [12/16] 0.0, 128
    %432 = vxpose.xlu0.b32.cont [13/16] 0.0, 128
    %433 = vxpose.xlu0.b32.cont [14/16] 0.0, 128
    %434 = vxpose.xlu0.b32.cont [15/16] 0.0, 128
    %435 = vxpose.xlu0.b32.end [16/16] 0.0, 128
    %v436 = vpop.trf.xlu0
    %v437 = vpop.trf.xlu0
    %v438 = vpop.trf.xlu0
    %v439 = vpop.trf.xlu0
    %v440 = vpop.trf.xlu0
    %v441 = vpop.trf.xlu0
    %v442 = vpop.trf.xlu0
    %v443 = vpop.trf.xlu0
    %v444 = vpop.trf.xlu0
    %v445 = vpop.trf.xlu0
    %v446 = vpop.trf.xlu0
    %v447 = vpop.trf.xlu0
    %v448 = vpop.trf.xlu0
    %v449 = vpop.trf.xlu0
    %v450 = vpop.trf.xlu0
    %v451 = vpop.trf.xlu0
    %452 = vxpose.xlu0.b32.start [1/16] %v249, 128
    %453 = vxpose.xlu0.b32.cont [2/16] 0.0, 128
    %454 = vxpose.xlu0.b32.cont [3/16] 0.0, 128
    %455 = vxpose.xlu0.b32.cont [4/16] 0.0, 128
    %456 = vxpose.xlu0.b32.cont [5/16] 0.0, 128
    %457 = vxpose.xlu0.b32.cont [6/16] 0.0, 128
    %458 = vxpose.xlu0.b32.cont [7/16] 0.0, 128
    %459 = vxpose.xlu0.b32.cont [8/16] 0.0, 128
    %460 = vxpose.xlu0.b32.cont [9/16] 0.0, 128
    %461 = vxpose.xlu0.b32.cont [10/16] 0.0, 128
    %462 = vxpose.xlu0.b32.cont [11/16] 0.0, 128
    %463 = vxpose.xlu0.b32.cont [12/16] 0.0, 128
    %464 = vxpose.xlu0.b32.cont [13/16] 0.0, 128
    %465 = vxpose.xlu0.b32.cont [14/16] 0.0, 128
    %466 = vxpose.xlu0.b32.cont [15/16] 0.0, 128
    %467 = vxpose.xlu0.b32.end [16/16] 0.0, 128
    %v468 = vpop.trf.xlu0
    %v469 = vpop.trf.xlu0
    %v470 = vpop.trf.xlu0
    %v471 = vpop.trf.xlu0
    %v472 = vpop.trf.xlu0
    %v473 = vpop.trf.xlu0
    %v474 = vpop.trf.xlu0
    %v475 = vpop.trf.xlu0
    %v476 = vpop.trf.xlu0
    %v477 = vpop.trf.xlu0
    %v478 = vpop.trf.xlu0
    %v479 = vpop.trf.xlu0
    %v480 = vpop.trf.xlu0
    %v481 = vpop.trf.xlu0
    %v482 = vpop.trf.xlu0
    %v483 = vpop.trf.xlu0
    %484 = vxpose.xlu0.b32.start [1/16] %v250, 128
    %485 = vxpose.xlu0.b32.cont [2/16] 0.0, 128
    %486 = vxpose.xlu0.b32.cont [3/16] 0.0, 128
    %487 = vxpose.xlu0.b32.cont [4/16] 0.0, 128
    %488 = vxpose.xlu0.b32.cont [5/16] 0.0, 128
    %489 = vxpose.xlu0.b32.cont [6/16] 0.0, 128
    %490 = vxpose.xlu0.b32.cont [7/16] 0.0, 128
    %491 = vxpose.xlu0.b32.cont [8/16] 0.0, 128
    %492 = vxpose.xlu0.b32.cont [9/16] 0.0, 128
    %493 = vxpose.xlu0.b32.cont [10/16] 0.0, 128
    %494 = vxpose.xlu0.b32.cont [11/16] 0.0, 128
    %495 = vxpose.xlu0.b32.cont [12/16] 0.0, 128
    %496 = vxpose.xlu0.b32.cont [13/16] 0.0, 128
    %497 = vxpose.xlu0.b32.cont [14/16] 0.0, 128
    %498 = vxpose.xlu0.b32.cont [15/16] 0.0, 128
    %499 = vxpose.xlu0.b32.end [16/16] 0.0, 128
    %v500 = vpop.trf.xlu0
    %v501 = vpop.trf.xlu0
    %v502 = vpop.trf.xlu0
    %v503 = vpop.trf.xlu0
    %v504 = vpop.trf.xlu0
    %v505 = vpop.trf.xlu0
    %v506 = vpop.trf.xlu0
    %v507 = vpop.trf.xlu0
    %v508 = vpop.trf.xlu0
    %v509 = vpop.trf.xlu0
    %v510 = vpop.trf.xlu0
    %v511 = vpop.trf.xlu0
    %v512 = vpop.trf.xlu0
    %v513 = vpop.trf.xlu0
    %v514 = vpop.trf.xlu0
    %v515 = vpop.trf.xlu0
    %516 = vxpose.xlu0.b32.start [1/16] %v251, 128
    %517 = vxpose.xlu0.b32.cont [2/16] 0.0, 128
    %518 = vxpose.xlu0.b32.cont [3/16] 0.0, 128
    %519 = vxpose.xlu0.b32.cont [4/16] 0.0, 128
    %520 = vxpose.xlu0.b32.cont [5/16] 0.0, 128
    %521 = vxpose.xlu0.b32.cont [6/16] 0.0, 128
    %522 = vxpose.xlu0.b32.cont [7/16] 0.0, 128
    %523 = vxpose.xlu0.b32.cont [8/16] 0.0, 128
    %524 = vxpose.xlu0.b32.cont [9/16] 0.0, 128
    %525 = vxpose.xlu0.b32.cont [10/16] 0.0, 128
    %526 = vxpose.xlu0.b32.cont [11/16] 0.0, 128
    %527 = vxpose.xlu0.b32.cont [12/16] 0.0, 128
    %528 = vxpose.xlu0.b32.cont [13/16] 0.0, 128
    %529 = vxpose.xlu0.b32.cont [14/16] 0.0, 128
    %530 = vxpose.xlu0.b32.cont [15/16] 0.0, 128
    %531 = vxpose.xlu0.b32.end [16/16] 0.0, 128
    %v532 = vpop.trf.xlu0
    %v533 = vpop.trf.xlu0
    %v534 = vpop.trf.xlu0
    %v535 = vpop.trf.xlu0
    %v536 = vpop.trf.xlu0
    %v537 = vpop.trf.xlu0
    %v538 = vpop.trf.xlu0
    %v539 = vpop.trf.xlu0
    %v540 = vpop.trf.xlu0
    %v541 = vpop.trf.xlu0
    %v542 = vpop.trf.xlu0
    %v543 = vpop.trf.xlu0
    %v544 = vpop.trf.xlu0
    %v545 = vpop.trf.xlu0
    %v546 = vpop.trf.xlu0
    %v547 = vpop.trf.xlu0
    %548 = vxpose.xlu0.b32.start [1/16] %v252, 128
    %549 = vxpose.xlu0.b32.cont [2/16] 0.0, 128
    %550 = vxpose.xlu0.b32.cont [3/16] 0.0, 128
    %551 = vxpose.xlu0.b32.cont [4/16] 0.0, 128
    %552 = vxpose.xlu0.b32.cont [5/16] 0.0, 128
    %553 = vxpose.xlu0.b32.cont [6/16] 0.0, 128
    %554 = vxpose.xlu0.b32.cont [7/16] 0.0, 128
    %555 = vxpose.xlu0.b32.cont [8/16] 0.0, 128
    %556 = vxpose.xlu0.b32.cont [9/16] 0.0, 128
    %557 = vxpose.xlu0.b32.cont [10/16] 0.0, 128
    %558 = vxpose.xlu0.b32.cont [11/16] 0.0, 128
    %559 = vxpose.xlu0.b32.cont [12/16] 0.0, 128
    %560 = vxpose.xlu0.b32.cont [13/16] 0.0, 128
    %561 = vxpose.xlu0.b32.cont [14/16] 0.0, 128
    %562 = vxpose.xlu0.b32.cont [15/16] 0.0, 128
    %563 = vxpose.xlu0.b32.end [16/16] 0.0, 128
    %v564 = vpop.trf.xlu0
    %v565 = vpop.trf.xlu0
    %v566 = vpop.trf.xlu0
    %v567 = vpop.trf.xlu0
    %v568 = vpop.trf.xlu0
    %v569 = vpop.trf.xlu0
    %v570 = vpop.trf.xlu0
    %v571 = vpop.trf.xlu0
    %v572 = vpop.trf.xlu0
    %v573 = vpop.trf.xlu0
    %v574 = vpop.trf.xlu0
    %v575 = vpop.trf.xlu0
    %v576 = vpop.trf.xlu0
    %v577 = vpop.trf.xlu0
    %v578 = vpop.trf.xlu0
    %v579 = vpop.trf.xlu0
    %580 = vxpose.xlu0.b32.start [1/16] %v253, 128
    %581 = vxpose.xlu0.b32.cont [2/16] 0.0, 128
    %582 = vxpose.xlu0.b32.cont [3/16] 0.0, 128
    %583 = vxpose.xlu0.b32.cont [4/16] 0.0, 128
    %584 = vxpose.xlu0.b32.cont [5/16] 0.0, 128
    %585 = vxpose.xlu0.b32.cont [6/16] 0.0, 128
    %586 = vxpose.xlu0.b32.cont [7/16] 0.0, 128
    %587 = vxpose.xlu0.b32.cont [8/16] 0.0, 128
    %588 = vxpose.xlu0.b32.cont [9/16] 0.0, 128
    %589 = vxpose.xlu0.b32.cont [10/16] 0.0, 128
    %590 = vxpose.xlu0.b32.cont [11/16] 0.0, 128
    %591 = vxpose.xlu0.b32.cont [12/16] 0.0, 128
    %592 = vxpose.xlu0.b32.cont [13/16] 0.0, 128
    %593 = vxpose.xlu0.b32.cont [14/16] 0.0, 128
    %594 = vxpose.xlu0.b32.cont [15/16] 0.0, 128
    %595 = vxpose.xlu0.b32.end [16/16] 0.0, 128
    %v596 = vpop.trf.xlu0
    %v597 = vpop.trf.xlu0
    %v598 = vpop.trf.xlu0
    %v599 = vpop.trf.xlu0
    %v600 = vpop.trf.xlu0
    %v601 = vpop.trf.xlu0
    %v602 = vpop.trf.xlu0
    %v603 = vpop.trf.xlu0
    %v604 = vpop.trf.xlu0
    %v605 = vpop.trf.xlu0
    %v606 = vpop.trf.xlu0
    %v607 = vpop.trf.xlu0
    %v608 = vpop.trf.xlu0
    %v609 = vpop.trf.xlu0
    %v610 = vpop.trf.xlu0
    %v611 = vpop.trf.xlu0
    %612 = vxpose.xlu0.b32.start [1/16] %v254, 128
    %613 = vxpose.xlu0.b32.cont [2/16] 0.0, 128
    %614 = vxpose.xlu0.b32.cont [3/16] 0.0, 128
    %615 = vxpose.xlu0.b32.cont [4/16] 0.0, 128
    %616 = vxpose.xlu0.b32.cont [5/16] 0.0, 128
    %617 = vxpose.xlu0.b32.cont [6/16] 0.0, 128
    %618 = vxpose.xlu0.b32.cont [7/16] 0.0, 128
    %619 = vxpose.xlu0.b32.cont [8/16] 0.0, 128
    %620 = vxpose.xlu0.b32.cont [9/16] 0.0, 128
    %621 = vxpose.xlu0.b32.cont [10/16] 0.0, 128
    %622 = vxpose.xlu0.b32.cont [11/16] 0.0, 128
    %623 = vxpose.xlu0.b32.cont [12/16] 0.0, 128
    %624 = vxpose.xlu0.b32.cont [13/16] 0.0, 128
    %625 = vxpose.xlu0.b32.cont [14/16] 0.0, 128
    %626 = vxpose.xlu0.b32.cont [15/16] 0.0, 128
    %627 = vxpose.xlu0.b32.end [16/16] 0.0, 128
    %v628 = vpop.trf.xlu0
    %v629 = vpop.trf.xlu0
    %v630 = vpop.trf.xlu0
    %v631 = vpop.trf.xlu0
    %v632 = vpop.trf.xlu0
    %v633 = vpop.trf.xlu0
    %v634 = vpop.trf.xlu0
    %v635 = vpop.trf.xlu0
    %v636 = vpop.trf.xlu0
    %v637 = vpop.trf.xlu0
    %v638 = vpop.trf.xlu0
    %v639 = vpop.trf.xlu0
    %v640 = vpop.trf.xlu0
    %v641 = vpop.trf.xlu0
    %v642 = vpop.trf.xlu0
    %v643 = vpop.trf.xlu0
    %644 = vxpose.xlu0.b32.start [1/16] %v255, 128
    %645 = vxpose.xlu0.b32.cont [2/16] 0.0, 128
    %646 = vxpose.xlu0.b32.cont [3/16] 0.0, 128
    %647 = vxpose.xlu0.b32.cont [4/16] 0.0, 128
    %648 = vxpose.xlu0.b32.cont [5/16] 0.0, 128
    %649 = vxpose.xlu0.b32.cont [6/16] 0.0, 128
    %650 = vxpose.xlu0.b32.cont [7/16] 0.0, 128
    %651 = vxpose.xlu0.b32.cont [8/16] 0.0, 128
    %652 = vxpose.xlu0.b32.cont [9/16] 0.0, 128
    %653 = vxpose.xlu0.b32.cont [10/16] 0.0, 128
    %654 = vxpose.xlu0.b32.cont [11/16] 0.0, 128
    %655 = vxpose.xlu0.b32.cont [12/16] 0.0, 128
    %656 = vxpose.xlu0.b32.cont [13/16] 0.0, 128
    %657 = vxpose.xlu0.b32.cont [14/16] 0.0, 128
    %658 = vxpose.xlu0.b32.cont [15/16] 0.0, 128
    %659 = vxpose.xlu0.b32.end [16/16] 0.0, 128
    %v660 = vpop.trf.xlu0
    %v661 = vpop.trf.xlu0
    %v662 = vpop.trf.xlu0
    %v663 = vpop.trf.xlu0
    %v664 = vpop.trf.xlu0
    %v665 = vpop.trf.xlu0
    %v666 = vpop.trf.xlu0
    %v667 = vpop.trf.xlu0
    %v668 = vpop.trf.xlu0
    %v669 = vpop.trf.xlu0
    %v670 = vpop.trf.xlu0
    %v671 = vpop.trf.xlu0
    %v672 = vpop.trf.xlu0
    %v673 = vpop.trf.xlu0
    %v674 = vpop.trf.xlu0
    %v675 = vpop.trf.xlu0
    %676 = vxpose.xlu0.b32.start [1/16] %v276, 128
    %677 = vxpose.xlu0.b32.cont [2/16] 0.0, 128
    %678 = vxpose.xlu0.b32.cont [3/16] 0.0, 128
    %679 = vxpose.xlu0.b32.cont [4/16] 0.0, 128
    %680 = vxpose.xlu0.b32.cont [5/16] 0.0, 128
    %681 = vxpose.xlu0.b32.cont [6/16] 0.0, 128
    %682 = vxpose.xlu0.b32.cont [7/16] 0.0, 128
    %683 = vxpose.xlu0.b32.cont [8/16] 0.0, 128
    %684 = vxpose.xlu0.b32.cont [9/16] 0.0, 128
    %685 = vxpose.xlu0.b32.cont [10/16] 0.0, 128
    %686 = vxpose.xlu0.b32.cont [11/16] 0.0, 128
    %687 = vxpose.xlu0.b32.cont [12/16] 0.0, 128
    %688 = vxpose.xlu0.b32.cont [13/16] 0.0, 128
    %689 = vxpose.xlu0.b32.cont [14/16] 0.0, 128
    %690 = vxpose.xlu0.b32.cont [15/16] 0.0, 128
    %691 = vxpose.xlu0.b32.end [16/16] 0.0, 128
    %v692 = vpop.trf.xlu0
    %v693 = vpop.trf.xlu0
    %v694 = vpop.trf.xlu0
    %v695 = vpop.trf.xlu0
    %v696 = vpop.trf.xlu0
    %v697 = vpop.trf.xlu0
    %v698 = vpop.trf.xlu0
    %v699 = vpop.trf.xlu0
    %v700 = vpop.trf.xlu0
    %v701 = vpop.trf.xlu0
    %v702 = vpop.trf.xlu0
    %v703 = vpop.trf.xlu0
    %v704 = vpop.trf.xlu0
    %v705 = vpop.trf.xlu0
    %v706 = vpop.trf.xlu0
    %v707 = vpop.trf.xlu0
    %708 = vxpose.xlu0.b32.start [1/16] %v277, 128
    %709 = vxpose.xlu0.b32.cont [2/16] 0.0, 128
    %710 = vxpose.xlu0.b32.cont [3/16] 0.0, 128
    %711 = vxpose.xlu0.b32.cont [4/16] 0.0, 128
    %712 = vxpose.xlu0.b32.cont [5/16] 0.0, 128
    %713 = vxpose.xlu0.b32.cont [6/16] 0.0, 128
    %714 = vxpose.xlu0.b32.cont [7/16] 0.0, 128
    %715 = vxpose.xlu0.b32.cont [8/16] 0.0, 128
    %716 = vxpose.xlu0.b32.cont [9/16] 0.0, 128
    %717 = vxpose.xlu0.b32.cont [10/16] 0.0, 128
    %718 = vxpose.xlu0.b32.cont [11/16] 0.0, 128
    %719 = vxpose.xlu0.b32.cont [12/16] 0.0, 128
    %720 = vxpose.xlu0.b32.cont [13/16] 0.0, 128
    %721 = vxpose.xlu0.b32.cont [14/16] 0.0, 128
    %722 = vxpose.xlu0.b32.cont [15/16] 0.0, 128
    %723 = vxpose.xlu0.b32.end [16/16] 0.0, 128
    %v724 = vpop.trf.xlu0
    %v725 = vpop.trf.xlu0
    %v726 = vpop.trf.xlu0
    %v727 = vpop.trf.xlu0
    %v728 = vpop.trf.xlu0
    %v729 = vpop.trf.xlu0
    %v730 = vpop.trf.xlu0
    %v731 = vpop.trf.xlu0
    %v732 = vpop.trf.xlu0
    %v733 = vpop.trf.xlu0
    %v734 = vpop.trf.xlu0
    %v735 = vpop.trf.xlu0
    %v736 = vpop.trf.xlu0
    %v737 = vpop.trf.xlu0
    %v738 = vpop.trf.xlu0
    %v739 = vpop.trf.xlu0
    %740 = vxpose.xlu0.b32.start [1/16] %v278, 128
    %741 = vxpose.xlu0.b32.cont [2/16] 0.0, 128
    %742 = vxpose.xlu0.b32.cont [3/16] 0.0, 128
    %743 = vxpose.xlu0.b32.cont [4/16] 0.0, 128
    %744 = vxpose.xlu0.b32.cont [5/16] 0.0, 128
    %745 = vxpose.xlu0.b32.cont [6/16] 0.0, 128
    %746 = vxpose.xlu0.b32.cont [7/16] 0.0, 128
    %747 = vxpose.xlu0.b32.cont [8/16] 0.0, 128
    %748 = vxpose.xlu0.b32.cont [9/16] 0.0, 128
    %749 = vxpose.xlu0.b32.cont [10/16] 0.0, 128
    %750 = vxpose.xlu0.b32.cont [11/16] 0.0, 128
    %751 = vxpose.xlu0.b32.cont [12/16] 0.0, 128
    %752 = vxpose.xlu0.b32.cont [13/16] 0.0, 128
    %753 = vxpose.xlu0.b32.cont [14/16] 0.0, 128
    %754 = vxpose.xlu0.b32.cont [15/16] 0.0, 128
    %755 = vxpose.xlu0.b32.end [16/16] 0.0, 128
    %v756 = vpop.trf.xlu0
    %v757 = vpop.trf.xlu0
    %v758 = vpop.trf.xlu0
    %v759 = vpop.trf.xlu0
    %v760 = vpop.trf.xlu0
    %v761 = vpop.trf.xlu0
    %v762 = vpop.trf.xlu0
    %v763 = vpop.trf.xlu0
    %v764 = vpop.trf.xlu0
    %v765 = vpop.trf.xlu0
    %v766 = vpop.trf.xlu0
    %v767 = vpop.trf.xlu0
    %v768 = vpop.trf.xlu0
    %v769 = vpop.trf.xlu0
    %v770 = vpop.trf.xlu0
    %v771 = vpop.trf.xlu0
    %772 = vxpose.xlu0.b32.start [1/16] %v279, 128
    %773 = vxpose.xlu0.b32.cont [2/16] 0.0, 128
    %774 = vxpose.xlu0.b32.cont [3/16] 0.0, 128
    %775 = vxpose.xlu0.b32.cont [4/16] 0.0, 128
    %776 = vxpose.xlu0.b32.cont [5/16] 0.0, 128
    %777 = vxpose.xlu0.b32.cont [6/16] 0.0, 128
    %778 = vxpose.xlu0.b32.cont [7/16] 0.0, 128
    %779 = vxpose.xlu0.b32.cont [8/16] 0.0, 128
    %780 = vxpose.xlu0.b32.cont [9/16] 0.0, 128
    %781 = vxpose.xlu0.b32.cont [10/16] 0.0, 128
    %782 = vxpose.xlu0.b32.cont [11/16] 0.0, 128
    %783 = vxpose.xlu0.b32.cont [12/16] 0.0, 128
    %784 = vxpose.xlu0.b32.cont [13/16] 0.0, 128
    %785 = vxpose.xlu0.b32.cont [14/16] 0.0, 128
    %786 = vxpose.xlu0.b32.cont [15/16] 0.0, 128
    %787 = vxpose.xlu0.b32.end [16/16] 0.0, 128
    %v788 = vpop.trf.xlu0
    %v789 = vpop.trf.xlu0
    %v790 = vpop.trf.xlu0
    %v791 = vpop.trf.xlu0
    %v792 = vpop.trf.xlu0
    %v793 = vpop.trf.xlu0
    %v794 = vpop.trf.xlu0
    %v795 = vpop.trf.xlu0
    %v796 = vpop.trf.xlu0
    %v797 = vpop.trf.xlu0
    %v798 = vpop.trf.xlu0
    %v799 = vpop.trf.xlu0
    %v800 = vpop.trf.xlu0
    %v801 = vpop.trf.xlu0
    %v802 = vpop.trf.xlu0
    %v803 = vpop.trf.xlu0
    %804 = vxpose.xlu0.b32.start [1/16] %v280, 128
    %805 = vxpose.xlu0.b32.cont [2/16] 0.0, 128
    %806 = vxpose.xlu0.b32.cont [3/16] 0.0, 128
    %807 = vxpose.xlu0.b32.cont [4/16] 0.0, 128
    %808 = vxpose.xlu0.b32.cont [5/16] 0.0, 128
    %809 = vxpose.xlu0.b32.cont [6/16] 0.0, 128
    %810 = vxpose.xlu0.b32.cont [7/16] 0.0, 128
    %811 = vxpose.xlu0.b32.cont [8/16] 0.0, 128
    %812 = vxpose.xlu0.b32.cont [9/16] 0.0, 128
    %813 = vxpose.xlu0.b32.cont [10/16] 0.0, 128
    %814 = vxpose.xlu0.b32.cont [11/16] 0.0, 128
    %815 = vxpose.xlu0.b32.cont [12/16] 0.0, 128
    %816 = vxpose.xlu0.b32.cont [13/16] 0.0, 128
    %817 = vxpose.xlu0.b32.cont [14/16] 0.0, 128
    %818 = vxpose.xlu0.b32.cont [15/16] 0.0, 128
    %819 = vxpose.xlu0.b32.end [16/16] 0.0, 128
    %v820 = vpop.trf.xlu0
    %v821 = vpop.trf.xlu0
    %v822 = vpop.trf.xlu0
    %v823 = vpop.trf.xlu0
    %v824 = vpop.trf.xlu0
    %v825 = vpop.trf.xlu0
    %v826 = vpop.trf.xlu0
    %v827 = vpop.trf.xlu0
    %v828 = vpop.trf.xlu0
    %v829 = vpop.trf.xlu0
    %v830 = vpop.trf.xlu0
    %v831 = vpop.trf.xlu0
    %v832 = vpop.trf.xlu0
    %v833 = vpop.trf.xlu0
    %v834 = vpop.trf.xlu0
    %v835 = vpop.trf.xlu0
    %836 = vxpose.xlu0.b32.start [1/16] %v281, 128
    %837 = vxpose.xlu0.b32.cont [2/16] 0.0, 128
    %838 = vxpose.xlu0.b32.cont [3/16] 0.0, 128
    %839 = vxpose.xlu0.b32.cont [4/16] 0.0, 128
    %840 = vxpose.xlu0.b32.cont [5/16] 0.0, 128
    %841 = vxpose.xlu0.b32.cont [6/16] 0.0, 128
    %842 = vxpose.xlu0.b32.cont [7/16] 0.0, 128
    %843 = vxpose.xlu0.b32.cont [8/16] 0.0, 128
    %844 = vxpose.xlu0.b32.cont [9/16] 0.0, 128
    %845 = vxpose.xlu0.b32.cont [10/16] 0.0, 128
    %846 = vxpose.xlu0.b32.cont [11/16] 0.0, 128
    %847 = vxpose.xlu0.b32.cont [12/16] 0.0, 128
    %848 = vxpose.xlu0.b32.cont [13/16] 0.0, 128
    %849 = vxpose.xlu0.b32.cont [14/16] 0.0, 128
    %850 = vxpose.xlu0.b32.cont [15/16] 0.0, 128
    %851 = vxpose.xlu0.b32.end [16/16] 0.0, 128
    %v852 = vpop.trf.xlu0
    %v853 = vpop.trf.xlu0
    %v854 = vpop.trf.xlu0
    %v855 = vpop.trf.xlu0
    %v856 = vpop.trf.xlu0
    %v857 = vpop.trf.xlu0
    %v858 = vpop.trf.xlu0
    %v859 = vpop.trf.xlu0
    %v860 = vpop.trf.xlu0
    %v861 = vpop.trf.xlu0
    %v862 = vpop.trf.xlu0
    %v863 = vpop.trf.xlu0
    %v864 = vpop.trf.xlu0
    %v865 = vpop.trf.xlu0
    %v866 = vpop.trf.xlu0
    %v867 = vpop.trf.xlu0
    %868 = vxpose.xlu0.b32.start [1/16] %v282, 128
    %869 = vxpose.xlu0.b32.cont [2/16] 0.0, 128
    %870 = vxpose.xlu0.b32.cont [3/16] 0.0, 128
    %871 = vxpose.xlu0.b32.cont [4/16] 0.0, 128
    %872 = vxpose.xlu0.b32.cont [5/16] 0.0, 128
    %873 = vxpose.xlu0.b32.cont [6/16] 0.0, 128
    %874 = vxpose.xlu0.b32.cont [7/16] 0.0, 128
    %875 = vxpose.xlu0.b32.cont [8/16] 0.0, 128
    %876 = vxpose.xlu0.b32.cont [9/16] 0.0, 128
    %877 = vxpose.xlu0.b32.cont [10/16] 0.0, 128
    %878 = vxpose.xlu0.b32.cont [11/16] 0.0, 128
    %879 = vxpose.xlu0.b32.cont [12/16] 0.0, 128
    %880 = vxpose.xlu0.b32.cont [13/16] 0.0, 128
    %881 = vxpose.xlu0.b32.cont [14/16] 0.0, 128
    %882 = vxpose.xlu0.b32.cont [15/16] 0.0, 128
    %883 = vxpose.xlu0.b32.end [16/16] 0.0, 128
    %v884 = vpop.trf.xlu0
    %v885 = vpop.trf.xlu0
    %v886 = vpop.trf.xlu0
    %v887 = vpop.trf.xlu0
    %v888 = vpop.trf.xlu0
    %v889 = vpop.trf.xlu0
    %v890 = vpop.trf.xlu0
    %v891 = vpop.trf.xlu0
    %v892 = vpop.trf.xlu0
    %v893 = vpop.trf.xlu0
    %v894 = vpop.trf.xlu0
    %v895 = vpop.trf.xlu0
    %v896 = vpop.trf.xlu0
    %v897 = vpop.trf.xlu0
    %v898 = vpop.trf.xlu0
    %v899 = vpop.trf.xlu0
    %900 = vxpose.xlu0.b32.start [1/16] %v283, 128
    %901 = vxpose.xlu0.b32.cont [2/16] 0.0, 128
    %902 = vxpose.xlu0.b32.cont [3/16] 0.0, 128
    %903 = vxpose.xlu0.b32.cont [4/16] 0.0, 128
    %904 = vxpose.xlu0.b32.cont [5/16] 0.0, 128
    %905 = vxpose.xlu0.b32.cont [6/16] 0.0, 128
    %906 = vxpose.xlu0.b32.cont [7/16] 0.0, 128
    %907 = vxpose.xlu0.b32.cont [8/16] 0.0, 128
    %908 = vxpose.xlu0.b32.cont [9/16] 0.0, 128
    %909 = vxpose.xlu0.b32.cont [10/16] 0.0, 128
    %910 = vxpose.xlu0.b32.cont [11/16] 0.0, 128
    %911 = vxpose.xlu0.b32.cont [12/16] 0.0, 128
    %912 = vxpose.xlu0.b32.cont [13/16] 0.0, 128
    %913 = vxpose.xlu0.b32.cont [14/16] 0.0, 128
    %914 = vxpose.xlu0.b32.cont [15/16] 0.0, 128
    %915 = vxpose.xlu0.b32.end [16/16] 0.0, 128
    %v916 = vpop.trf.xlu0
    %v917 = vpop.trf.xlu0
    %v918 = vpop.trf.xlu0
    %v919 = vpop.trf.xlu0
    %v920 = vpop.trf.xlu0
    %v921 = vpop.trf.xlu0
    %v922 = vpop.trf.xlu0
    %v923 = vpop.trf.xlu0
    %v924 = vpop.trf.xlu0
    %v925 = vpop.trf.xlu0
    %v926 = vpop.trf.xlu0
    %v927 = vpop.trf.xlu0
    %v928 = vpop.trf.xlu0
    %v929 = vpop.trf.xlu0
    %v930 = vpop.trf.xlu0
    %v931 = vpop.trf.xlu0
    %932 = vxpose.xlu0.b32.start [1/16] %v284, 128
    %933 = vxpose.xlu0.b32.cont [2/16] 0.0, 128
    %934 = vxpose.xlu0.b32.cont [3/16] 0.0, 128
    %935 = vxpose.xlu0.b32.cont [4/16] 0.0, 128
    %936 = vxpose.xlu0.b32.cont [5/16] 0.0, 128
    %937 = vxpose.xlu0.b32.cont [6/16] 0.0, 128
    %938 = vxpose.xlu0.b32.cont [7/16] 0.0, 128
    %939 = vxpose.xlu0.b32.cont [8/16] 0.0, 128
    %940 = vxpose.xlu0.b32.cont [9/16] 0.0, 128
    %941 = vxpose.xlu0.b32.cont [10/16] 0.0, 128
    %942 = vxpose.xlu0.b32.cont [11/16] 0.0, 128
    %943 = vxpose.xlu0.b32.cont [12/16] 0.0, 128
    %944 = vxpose.xlu0.b32.cont [13/16] 0.0, 128
    %945 = vxpose.xlu0.b32.cont [14/16] 0.0, 128
    %946 = vxpose.xlu0.b32.cont [15/16] 0.0, 128
    %947 = vxpose.xlu0.b32.end [16/16] 0.0, 128
    %v948 = vpop.trf.xlu0
    %v949 = vpop.trf.xlu0
    %v950 = vpop.trf.xlu0
    %v951 = vpop.trf.xlu0
    %v952 = vpop.trf.xlu0
    %v953 = vpop.trf.xlu0
    %v954 = vpop.trf.xlu0
    %v955 = vpop.trf.xlu0
    %v956 = vpop.trf.xlu0
    %v957 = vpop.trf.xlu0
    %v958 = vpop.trf.xlu0
    %v959 = vpop.trf.xlu0
    %v960 = vpop.trf.xlu0
    %v961 = vpop.trf.xlu0
    %v962 = vpop.trf.xlu0
    %v963 = vpop.trf.xlu0
    %964 = vxpose.xlu0.b32.start [1/16] %v285, 128
    %965 = vxpose.xlu0.b32.cont [2/16] 0.0, 128
    %966 = vxpose.xlu0.b32.cont [3/16] 0.0, 128
    %967 = vxpose.xlu0.b32.cont [4/16] 0.0, 128
    %968 = vxpose.xlu0.b32.cont [5/16] 0.0, 128
    %969 = vxpose.xlu0.b32.cont [6/16] 0.0, 128
    %970 = vxpose.xlu0.b32.cont [7/16] 0.0, 128
    %971 = vxpose.xlu0.b32.cont [8/16] 0.0, 128
    %972 = vxpose.xlu0.b32.cont [9/16] 0.0, 128
    %973 = vxpose.xlu0.b32.cont [10/16] 0.0, 128
    %974 = vxpose.xlu0.b32.cont [11/16] 0.0, 128
    %975 = vxpose.xlu0.b32.cont [12/16] 0.0, 128
    %976 = vxpose.xlu0.b32.cont [13/16] 0.0, 128
    %977 = vxpose.xlu0.b32.cont [14/16] 0.0, 128
    %978 = vxpose.xlu0.b32.cont [15/16] 0.0, 128
    %979 = vxpose.xlu0.b32.end [16/16] 0.0, 128
    %v980 = vpop.trf.xlu0
    %v981 = vpop.trf.xlu0
    %v982 = vpop.trf.xlu0
    %v983 = vpop.trf.xlu0
    %v984 = vpop.trf.xlu0
    %v985 = vpop.trf.xlu0
    %v986 = vpop.trf.xlu0
    %v987 = vpop.trf.xlu0
    %v988 = vpop.trf.xlu0
    %v989 = vpop.trf.xlu0
    %v990 = vpop.trf.xlu0
    %v991 = vpop.trf.xlu0
    %v992 = vpop.trf.xlu0
    %v993 = vpop.trf.xlu0
    %v994 = vpop.trf.xlu0
    %v995 = vpop.trf.xlu0
    %996 = vxpose.xlu0.b32.start [1/16] %v286, 128
    %997 = vxpose.xlu0.b32.cont [2/16] 0.0, 128
    %998 = vxpose.xlu0.b32.cont [3/16] 0.0, 128
    %999 = vxpose.xlu0.b32.cont [4/16] 0.0, 128
    %1000 = vxpose.xlu0.b32.cont [5/16] 0.0, 128
    %1001 = vxpose.xlu0.b32.cont [6/16] 0.0, 128
    %1002 = vxpose.xlu0.b32.cont [7/16] 0.0, 128
    %1003 = vxpose.xlu0.b32.cont [8/16] 0.0, 128
    %1004 = vxpose.xlu0.b32.cont [9/16] 0.0, 128
    %1005 = vxpose.xlu0.b32.cont [10/16] 0.0, 128
    %1006 = vxpose.xlu0.b32.cont [11/16] 0.0, 128
    %1007 = vxpose.xlu0.b32.cont [12/16] 0.0, 128
    %1008 = vxpose.xlu0.b32.cont [13/16] 0.0, 128
    %1009 = vxpose.xlu0.b32.cont [14/16] 0.0, 128
    %1010 = vxpose.xlu0.b32.cont [15/16] 0.0, 128
    %1011 = vxpose.xlu0.b32.end [16/16] 0.0, 128
    %v1012 = vpop.trf.xlu0
    %v1013 = vpop.trf.xlu0
    %v1014 = vpop.trf.xlu0
    %v1015 = vpop.trf.xlu0
    %v1016 = vpop.trf.xlu0
    %v1017 = vpop.trf.xlu0
    %v1018 = vpop.trf.xlu0
    %v1019 = vpop.trf.xlu0
    %v1020 = vpop.trf.xlu0
    %v1021 = vpop.trf.xlu0
    %v1022 = vpop.trf.xlu0
    %v1023 = vpop.trf.xlu0
    %v1024 = vpop.trf.xlu0
    %v1025 = vpop.trf.xlu0
    %v1026 = vpop.trf.xlu0
    %v1027 = vpop.trf.xlu0
    %1028 = vxpose.xlu0.b32.start [1/16] %v287, 128
    %1029 = vxpose.xlu0.b32.cont [2/16] 0.0, 128
    %1030 = vxpose.xlu0.b32.cont [3/16] 0.0, 128
    %1031 = vxpose.xlu0.b32.cont [4/16] 0.0, 128
    %1032 = vxpose.xlu0.b32.cont [5/16] 0.0, 128
    %1033 = vxpose.xlu0.b32.cont [6/16] 0.0, 128
    %1034 = vxpose.xlu0.b32.cont [7/16] 0.0, 128
    %1035 = vxpose.xlu0.b32.cont [8/16] 0.0, 128
    %1036 = vxpose.xlu0.b32.cont [9/16] 0.0, 128
    %1037 = vxpose.xlu0.b32.cont [10/16] 0.0, 128
    %1038 = vxpose.xlu0.b32.cont [11/16] 0.0, 128
    %1039 = vxpose.xlu0.b32.cont [12/16] 0.0, 128
    %1040 = vxpose.xlu0.b32.cont [13/16] 0.0, 128
    %1041 = vxpose.xlu0.b32.cont [14/16] 0.0, 128
    %1042 = vxpose.xlu0.b32.cont [15/16] 0.0, 128
    %1043 = vxpose.xlu0.b32.end [16/16] 0.0, 128
    %v1044 = vpop.trf.xlu0
    %v1045 = vpop.trf.xlu0
    %v1046 = vpop.trf.xlu0
    %v1047 = vpop.trf.xlu0
    %v1048 = vpop.trf.xlu0
    %v1049 = vpop.trf.xlu0
    %v1050 = vpop.trf.xlu0
    %v1051 = vpop.trf.xlu0
    %v1052 = vpop.trf.xlu0
    %v1053 = vpop.trf.xlu0
    %v1054 = vpop.trf.xlu0
    %v1055 = vpop.trf.xlu0
    %v1056 = vpop.trf.xlu0
    %v1057 = vpop.trf.xlu0
    %v1058 = vpop.trf.xlu0
    %v1059 = vpop.trf.xlu0
    %v1060 = vpack.c.bf16 %v309, %v308
    %v1061 = vpack.c.bf16 %v341, %v340
    %v1062 = vpack.c.bf16 %v373, %v372
    %v1063 = vpack.c.bf16 %v405, %v404
    %v1064 = vpack.c.bf16 %v693, %v692
    %v1065 = vpack.c.bf16 %v725, %v724
    %v1066 = vpack.c.bf16 %v757, %v756
    %v1067 = vpack.c.bf16 %v789, %v788
    %v1068 = vpack.c.bf16 %v437, %v436
    %v1069 = vpack.c.bf16 %v469, %v468
    %v1070 = vpack.c.bf16 %v501, %v500
    %v1071 = vpack.c.bf16 %v533, %v532
    %v1072 = vpack.c.bf16 %v821, %v820
    %v1073 = vpack.c.bf16 %v853, %v852
    %v1074 = vpack.c.bf16 %v885, %v884
    %v1075 = vpack.c.bf16 %v917, %v916
    %vm1076 = vcmask 64512
    %v1078 = vsel %vm1076, %v1060, 0
    %v1081 = vsel %vm1076, %v1068, 0
    %1083 = vmatprep.subr.bf16.mxu0 0
    %1084 = vmatpush1.bf16.xpose.msra.mxu0 %v1081
    %1085 = vmatprep.subr.bf16.mxu0 0
    %1086 = vmatpush1.bf16.xpose.msra.mxu0 0
    %1087 = vmatprep.subr.bf16.mxu0 0
    %1088 = vmatpush1.bf16.xpose.msra.mxu0 0
    %1089 = vmatprep.subr.bf16.mxu0 0
    %1090 = vmatpush1.bf16.xpose.msra.mxu0 0
    %1091 = vmatprep.subr.bf16.mxu0 0
    %1092 = vmatpush1.bf16.xpose.msra.mxu0 0
    %1093 = vmatprep.subr.bf16.mxu0 0
    %1094 = vmatpush1.bf16.xpose.msra.mxu0 0
    %1095 = vmatprep.subr.bf16.mxu0 0
    %1096 = vmatpush1.bf16.xpose.msra.mxu0 0
    %1097 = vmatprep.subr.bf16.mxu0 0
    %1098 = vmatpush1.bf16.xpose.msra.mxu0 0
    %1099 = vmatprep.subr.bf16.mxu0 0
    %1100 = vmatpush1.bf16.xpose.msra.mxu0 0
    %1101 = vmatprep.subr.bf16.mxu0 0
    %1102 = vmatpush1.bf16.xpose.msra.mxu0 0
    %1103 = vmatprep.subr.bf16.mxu0 0
    %1104 = vmatpush1.bf16.xpose.msra.mxu0 0
    %1105 = vmatprep.subr.bf16.mxu0 0
    %1106 = vmatpush1.bf16.xpose.msra.mxu0 0
    %1107 = vmatprep.subr.bf16.mxu0 0
    %1108 = vmatpush1.bf16.xpose.msra.mxu0 0
    %1109 = vmatprep.subr.bf16.mxu0 0
    %1110 = vmatpush1.bf16.xpose.msra.mxu0 0
    %1111 = vmatprep.subr.bf16.mxu0 0
    %1112 = vmatpush1.bf16.xpose.msra.mxu0 0
    %1113 = vmatprep.subr.bf16.mxu0 0
    %1114 = vmatpush1.bf16.xpose.msra.mxu0 0
    %1115 = vmatprep.mubr.bf16.mxu0 0
    %1116 = vmatmul.mubr.bf16.gmra.mrb[0].mxu0 %v1078
    %v1117 = vpop.f32.mrb[0].mxu0
    %v1118 = vadd.f32 0.0, %v1117
    %v1119 = vpop.f32.mrb[0].mxu0
    %v1120 = vpop.f32.mrb[0].mxu0
    %v1121 = vadd.f32 0.0, %v1120
    %v1122 = vpop.f32.mrb[0].mxu0
    %1123 = vdwg.mxu0
    %v1125 = vsel %vm1076, %v1061, 0
    %v1128 = vsel %vm1076, %v1069, 0
    %1130 = vmatprep.subr.bf16.mxu0 0
    %1131 = vmatpush1.bf16.xpose.msra.mxu0 %v1128
    %1132 = vmatprep.subr.bf16.mxu0 0
    %1133 = vmatpush1.bf16.xpose.msra.mxu0 0
    %1134 = vmatprep.subr.bf16.mxu0 0
    %1135 = vmatpush1.bf16.xpose.msra.mxu0 0
    %1136 = vmatprep.subr.bf16.mxu0 0
    %1137 = vmatpush1.bf16.xpose.msra.mxu0 0
    %1138 = vmatprep.subr.bf16.mxu0 0
    %1139 = vmatpush1.bf16.xpose.msra.mxu0 0
    %1140 = vmatprep.subr.bf16.mxu0 0
    %1141 = vmatpush1.bf16.xpose.msra.mxu0 0
    %1142 = vmatprep.subr.bf16.mxu0 0
    %1143 = vmatpush1.bf16.xpose.msra.mxu0 0
    %1144 = vmatprep.subr.bf16.mxu0 0
    %1145 = vmatpush1.bf16.xpose.msra.mxu0 0
    %1146 = vmatprep.subr.bf16.mxu0 0
    %1147 = vmatpush1.bf16.xpose.msra.mxu0 0
    %1148 = vmatprep.subr.bf16.mxu0 0
    %1149 = vmatpush1.bf16.xpose.msra.mxu0 0
    %1150 = vmatprep.subr.bf16.mxu0 0
    %1151 = vmatpush1.bf16.xpose.msra.mxu0 0
    %1152 = vmatprep.subr.bf16.mxu0 0
    %1153 = vmatpush1.bf16.xpose.msra.mxu0 0
    %1154 = vmatprep.subr.bf16.mxu0 0
    %1155 = vmatpush1.bf16.xpose.msra.mxu0 0
    %1156 = vmatprep.subr.bf16.mxu0 0
    %1157 = vmatpush1.bf16.xpose.msra.mxu0 0
    %1158 = vmatprep.subr.bf16.mxu0 0
    %1159 = vmatpush1.bf16.xpose.msra.mxu0 0
    %1160 = vmatprep.subr.bf16.mxu0 0
    %1161 = vmatpush1.bf16.xpose.msra.mxu0 0
    %1162 = vmatprep.mubr.bf16.mxu0 0
    %1163 = vmatmul.mubr.bf16.gmra.mrb[0].mxu0 %v1125
    %v1164 = vpop.f32.mrb[0].mxu0
    %v1165 = vadd.f32 0.0, %v1164
    %v1166 = vpop.f32.mrb[0].mxu0
    %v1167 = vpop.f32.mrb[0].mxu0
    %v1168 = vadd.f32 0.0, %v1167
    %v1169 = vpop.f32.mrb[0].mxu0
    %1170 = vdwg.mxu0
    %v1172 = vsel %vm1076, %v1062, 0
    %v1175 = vsel %vm1076, %v1070, 0
    %1177 = vmatprep.subr.bf16.mxu0 0
    %1178 = vmatpush1.bf16.xpose.msra.mxu0 %v1175
    %1179 = vmatprep.subr.bf16.mxu0 0
    %1180 = vmatpush1.bf16.xpose.msra.mxu0 0
    %1181 = vmatprep.subr.bf16.mxu0 0
    %1182 = vmatpush1.bf16.xpose.msra.mxu0 0
    %1183 = vmatprep.subr.bf16.mxu0 0
    %1184 = vmatpush1.bf16.xpose.msra.mxu0 0
    %1185 = vmatprep.subr.bf16.mxu0 0
    %1186 = vmatpush1.bf16.xpose.msra.mxu0 0
    %1187 = vmatprep.subr.bf16.mxu0 0
    %1188 = vmatpush1.bf16.xpose.msra.mxu0 0
    %1189 = vmatprep.subr.bf16.mxu0 0
    %1190 = vmatpush1.bf16.xpose.msra.mxu0 0
    %1191 = vmatprep.subr.bf16.mxu0 0
    %1192 = vmatpush1.bf16.xpose.msra.mxu0 0
    %1193 = vmatprep.subr.bf16.mxu0 0
    %1194 = vmatpush1.bf16.xpose.msra.mxu0 0
    %1195 = vmatprep.subr.bf16.mxu0 0
    %1196 = vmatpush1.bf16.xpose.msra.mxu0 0
    %1197 = vmatprep.subr.bf16.mxu0 0
    %1198 = vmatpush1.bf16.xpose.msra.mxu0 0
    %1199 = vmatprep.subr.bf16.mxu0 0
    %1200 = vmatpush1.bf16.xpose.msra.mxu0 0
    %1201 = vmatprep.subr.bf16.mxu0 0
    %1202 = vmatpush1.bf16.xpose.msra.mxu0 0
    %1203 = vmatprep.subr.bf16.mxu0 0
    %1204 = vmatpush1.bf16.xpose.msra.mxu0 0
    %1205 = vmatprep.subr.bf16.mxu0 0
    %1206 = vmatpush1.bf16.xpose.msra.mxu0 0
    %1207 = vmatprep.subr.bf16.mxu0 0
    %1208 = vmatpush1.bf16.xpose.msra.mxu0 0
    %1209 = vmatprep.mubr.bf16.mxu0 0
    %1210 = vmatmul.mubr.bf16.gmra.mrb[0].mxu0 %v1172
    %v1211 = vpop.f32.mrb[0].mxu0
    %v1212 = vadd.f32 0.0, %v1211
    %v1213 = vpop.f32.mrb[0].mxu0
    %v1214 = vpop.f32.mrb[0].mxu0
    %v1215 = vadd.f32 0.0, %v1214
    %v1216 = vpop.f32.mrb[0].mxu0
    %1217 = vdwg.mxu0
    %v1219 = vsel %vm1076, %v1063, 0
    %v1222 = vsel %vm1076, %v1071, 0
    %1224 = vmatprep.subr.bf16.mxu0 0
    %1225 = vmatpush1.bf16.xpose.msra.mxu0 %v1222
    %1226 = vmatprep.subr.bf16.mxu0 0
    %1227 = vmatpush1.bf16.xpose.msra.mxu0 0
    %1228 = vmatprep.subr.bf16.mxu0 0
    %1229 = vmatpush1.bf16.xpose.msra.mxu0 0
    %1230 = vmatprep.subr.bf16.mxu0 0
    %1231 = vmatpush1.bf16.xpose.msra.mxu0 0
    %1232 = vmatprep.subr.bf16.mxu0 0
    %1233 = vmatpush1.bf16.xpose.msra.mxu0 0
    %1234 = vmatprep.subr.bf16.mxu0 0
    %1235 = vmatpush1.bf16.xpose.msra.mxu0 0
    %1236 = vmatprep.subr.bf16.mxu0 0
    %1237 = vmatpush1.bf16.xpose.msra.mxu0 0
    %1238 = vmatprep.subr.bf16.mxu0 0
    %1239 = vmatpush1.bf16.xpose.msra.mxu0 0
    %1240 = vmatprep.subr.bf16.mxu0 0
    %1241 = vmatpush1.bf16.xpose.msra.mxu0 0
    %1242 = vmatprep.subr.bf16.mxu0 0
    %1243 = vmatpush1.bf16.xpose.msra.mxu0 0
    %1244 = vmatprep.subr.bf16.mxu0 0
    %1245 = vmatpush1.bf16.xpose.msra.mxu0 0
    %1246 = vmatprep.subr.bf16.mxu0 0
    %1247 = vmatpush1.bf16.xpose.msra.mxu0 0
    %1248 = vmatprep.subr.bf16.mxu0 0
    %1249 = vmatpush1.bf16.xpose.msra.mxu0 0
    %1250 = vmatprep.subr.bf16.mxu0 0
    %1251 = vmatpush1.bf16.xpose.msra.mxu0 0
    %1252 = vmatprep.subr.bf16.mxu0 0
    %1253 = vmatpush1.bf16.xpose.msra.mxu0 0
    %1254 = vmatprep.subr.bf16.mxu0 0
    %1255 = vmatpush1.bf16.xpose.msra.mxu0 0
    %1256 = vmatprep.mubr.bf16.mxu0 0
    %1257 = vmatmul.mubr.bf16.gmra.mrb[0].mxu0 %v1219
    %v1258 = vpop.f32.mrb[0].mxu0
    %v1259 = vadd.f32 0.0, %v1258
    %v1260 = vpop.f32.mrb[0].mxu0
    %v1261 = vpop.f32.mrb[0].mxu0
    %v1262 = vadd.f32 0.0, %v1261
    %v1263 = vpop.f32.mrb[0].mxu0
    %1264 = vdwg.mxu0
    %v1266 = vsel %vm1076, %v1064, 0
    %v1269 = vsel %vm1076, %v1072, 0
    %1271 = vmatprep.subr.bf16.mxu0 0
    %1272 = vmatpush1.bf16.xpose.msra.mxu0 %v1269
    %1273 = vmatprep.subr.bf16.mxu0 0
    %1274 = vmatpush1.bf16.xpose.msra.mxu0 0
    %1275 = vmatprep.subr.bf16.mxu0 0
    %1276 = vmatpush1.bf16.xpose.msra.mxu0 0
    %1277 = vmatprep.subr.bf16.mxu0 0
    %1278 = vmatpush1.bf16.xpose.msra.mxu0 0
    %1279 = vmatprep.subr.bf16.mxu0 0
    %1280 = vmatpush1.bf16.xpose.msra.mxu0 0
    %1281 = vmatprep.subr.bf16.mxu0 0
    %1282 = vmatpush1.bf16.xpose.msra.mxu0 0
    %1283 = vmatprep.subr.bf16.mxu0 0
    %1284 = vmatpush1.bf16.xpose.msra.mxu0 0
    %1285 = vmatprep.subr.bf16.mxu0 0
    %1286 = vmatpush1.bf16.xpose.msra.mxu0 0
    %1287 = vmatprep.subr.bf16.mxu0 0
    %1288 = vmatpush1.bf16.xpose.msra.mxu0 0
    %1289 = vmatprep.subr.bf16.mxu0 0
    %1290 = vmatpush1.bf16.xpose.msra.mxu0 0
    %1291 = vmatprep.subr.bf16.mxu0 0
    %1292 = vmatpush1.bf16.xpose.msra.mxu0 0
    %1293 = vmatprep.subr.bf16.mxu0 0
    %1294 = vmatpush1.bf16.xpose.msra.mxu0 0
    %1295 = vmatprep.subr.bf16.mxu0 0
    %1296 = vmatpush1.bf16.xpose.msra.mxu0 0
    %1297 = vmatprep.subr.bf16.mxu0 0
    %1298 = vmatpush1.bf16.xpose.msra.mxu0 0
    %1299 = vmatprep.subr.bf16.mxu0 0
    %1300 = vmatpush1.bf16.xpose.msra.mxu0 0
    %1301 = vmatprep.subr.bf16.mxu0 0
    %1302 = vmatpush1.bf16.xpose.msra.mxu0 0
    %1303 = vmatprep.mubr.bf16.mxu0 0
    %1304 = vmatmul.mubr.bf16.gmra.mrb[0].mxu0 %v1266
    %v1305 = vpop.f32.mrb[0].mxu0
    %v1306 = vadd.f32 0.0, %v1305
    %v1307 = vpop.f32.mrb[0].mxu0
    %v1308 = vpop.f32.mrb[0].mxu0
    %v1309 = vadd.f32 0.0, %v1308
    %v1310 = vpop.f32.mrb[0].mxu0
    %1311 = vdwg.mxu0
    %v1313 = vsel %vm1076, %v1065, 0
    %v1316 = vsel %vm1076, %v1073, 0
    %1318 = vmatprep.subr.bf16.mxu0 0
    %1319 = vmatpush1.bf16.xpose.msra.mxu0 %v1316
    %1320 = vmatprep.subr.bf16.mxu0 0
    %1321 = vmatpush1.bf16.xpose.msra.mxu0 0
    %1322 = vmatprep.subr.bf16.mxu0 0
    %1323 = vmatpush1.bf16.xpose.msra.mxu0 0
    %1324 = vmatprep.subr.bf16.mxu0 0
    %1325 = vmatpush1.bf16.xpose.msra.mxu0 0
    %1326 = vmatprep.subr.bf16.mxu0 0
    %1327 = vmatpush1.bf16.xpose.msra.mxu0 0
    %1328 = vmatprep.subr.bf16.mxu0 0
    %1329 = vmatpush1.bf16.xpose.msra.mxu0 0
    %1330 = vmatprep.subr.bf16.mxu0 0
    %1331 = vmatpush1.bf16.xpose.msra.mxu0 0
    %1332 = vmatprep.subr.bf16.mxu0 0
    %1333 = vmatpush1.bf16.xpose.msra.mxu0 0
    %1334 = vmatprep.subr.bf16.mxu0 0
    %1335 = vmatpush1.bf16.xpose.msra.mxu0 0
    %1336 = vmatprep.subr.bf16.mxu0 0
    %1337 = vmatpush1.bf16.xpose.msra.mxu0 0
    %1338 = vmatprep.subr.bf16.mxu0 0
    %1339 = vmatpush1.bf16.xpose.msra.mxu0 0
    %1340 = vmatprep.subr.bf16.mxu0 0
    %1341 = vmatpush1.bf16.xpose.msra.mxu0 0
    %1342 = vmatprep.subr.bf16.mxu0 0
    %1343 = vmatpush1.bf16.xpose.msra.mxu0 0
    %1344 = vmatprep.subr.bf16.mxu0 0
    %1345 = vmatpush1.bf16.xpose.msra.mxu0 0
    %1346 = vmatprep.subr.bf16.mxu0 0
    %1347 = vmatpush1.bf16.xpose.msra.mxu0 0
    %1348 = vmatprep.subr.bf16.mxu0 0
    %1349 = vmatpush1.bf16.xpose.msra.mxu0 0
    %1350 = vmatprep.mubr.bf16.mxu0 0
    %1351 = vmatmul.mubr.bf16.gmra.mrb[0].mxu0 %v1313
    %v1352 = vpop.f32.mrb[0].mxu0
    %v1353 = vadd.f32 0.0, %v1352
    %v1354 = vpop.f32.mrb[0].mxu0
    %v1355 = vpop.f32.mrb[0].mxu0
    %v1356 = vadd.f32 0.0, %v1355
    %v1357 = vpop.f32.mrb[0].mxu0
    %1358 = vdwg.mxu0
    %v1360 = vsel %vm1076, %v1066, 0
    %v1363 = vsel %vm1076, %v1074, 0
    %1365 = vmatprep.subr.bf16.mxu0 0
    %1366 = vmatpush1.bf16.xpose.msra.mxu0 %v1363
    %1367 = vmatprep.subr.bf16.mxu0 0
    %1368 = vmatpush1.bf16.xpose.msra.mxu0 0
    %1369 = vmatprep.subr.bf16.mxu0 0
    %1370 = vmatpush1.bf16.xpose.msra.mxu0 0
    %1371 = vmatprep.subr.bf16.mxu0 0
    %1372 = vmatpush1.bf16.xpose.msra.mxu0 0
    %1373 = vmatprep.subr.bf16.mxu0 0
    %1374 = vmatpush1.bf16.xpose.msra.mxu0 0
    %1375 = vmatprep.subr.bf16.mxu0 0
    %1376 = vmatpush1.bf16.xpose.msra.mxu0 0
    %1377 = vmatprep.subr.bf16.mxu0 0
    %1378 = vmatpush1.bf16.xpose.msra.mxu0 0
    %1379 = vmatprep.subr.bf16.mxu0 0
    %1380 = vmatpush1.bf16.xpose.msra.mxu0 0
    %1381 = vmatprep.subr.bf16.mxu0 0
    %1382 = vmatpush1.bf16.xpose.msra.mxu0 0
    %1383 = vmatprep.subr.bf16.mxu0 0
    %1384 = vmatpush1.bf16.xpose.msra.mxu0 0
    %1385 = vmatprep.subr.bf16.mxu0 0
    %1386 = vmatpush1.bf16.xpose.msra.mxu0 0
    %1387 = vmatprep.subr.bf16.mxu0 0
    %1388 = vmatpush1.bf16.xpose.msra.mxu0 0
    %1389 = vmatprep.subr.bf16.mxu0 0
    %1390 = vmatpush1.bf16.xpose.msra.mxu0 0
    %1391 = vmatprep.subr.bf16.mxu0 0
    %1392 = vmatpush1.bf16.xpose.msra.mxu0 0
    %1393 = vmatprep.subr.bf16.mxu0 0
    %1394 = vmatpush1.bf16.xpose.msra.mxu0 0
    %1395 = vmatprep.subr.bf16.mxu0 0
    %1396 = vmatpush1.bf16.xpose.msra.mxu0 0
    %1397 = vmatprep.mubr.bf16.mxu0 0
    %1398 = vmatmul.mubr.bf16.gmra.mrb[0].mxu0 %v1360
    %v1399 = vpop.f32.mrb[0].mxu0
    %v1400 = vadd.f32 0.0, %v1399
    %v1401 = vpop.f32.mrb[0].mxu0
    %v1402 = vpop.f32.mrb[0].mxu0
    %v1403 = vadd.f32 0.0, %v1402
    %v1404 = vpop.f32.mrb[0].mxu0
    %1405 = vdwg.mxu0
    %v1407 = vsel %vm1076, %v1067, 0
    %v1410 = vsel %vm1076, %v1075, 0
    %1412 = vmatprep.subr.bf16.mxu0 0
    %1413 = vmatpush1.bf16.xpose.msra.mxu0 %v1410
    %1414 = vmatprep.subr.bf16.mxu0 0
    %1415 = vmatpush1.bf16.xpose.msra.mxu0 0
    %1416 = vmatprep.subr.bf16.mxu0 0
    %1417 = vmatpush1.bf16.xpose.msra.mxu0 0
    %1418 = vmatprep.subr.bf16.mxu0 0
    %1419 = vmatpush1.bf16.xpose.msra.mxu0 0
    %1420 = vmatprep.subr.bf16.mxu0 0
    %1421 = vmatpush1.bf16.xpose.msra.mxu0 0
    %1422 = vmatprep.subr.bf16.mxu0 0
    %1423 = vmatpush1.bf16.xpose.msra.mxu0 0
    %1424 = vmatprep.subr.bf16.mxu0 0
    %1425 = vmatpush1.bf16.xpose.msra.mxu0 0
    %1426 = vmatprep.subr.bf16.mxu0 0
    %1427 = vmatpush1.bf16.xpose.msra.mxu0 0
    %1428 = vmatprep.subr.bf16.mxu0 0
    %1429 = vmatpush1.bf16.xpose.msra.mxu0 0
    %1430 = vmatprep.subr.bf16.mxu0 0
    %1431 = vmatpush1.bf16.xpose.msra.mxu0 0
    %1432 = vmatprep.subr.bf16.mxu0 0
    %1433 = vmatpush1.bf16.xpose.msra.mxu0 0
    %1434 = vmatprep.subr.bf16.mxu0 0
    %1435 = vmatpush1.bf16.xpose.msra.mxu0 0
    %1436 = vmatprep.subr.bf16.mxu0 0
    %1437 = vmatpush1.bf16.xpose.msra.mxu0 0
    %1438 = vmatprep.subr.bf16.mxu0 0
    %1439 = vmatpush1.bf16.xpose.msra.mxu0 0
    %1440 = vmatprep.subr.bf16.mxu0 0
    %1441 = vmatpush1.bf16.xpose.msra.mxu0 0
    %1442 = vmatprep.subr.bf16.mxu0 0
    %1443 = vmatpush1.bf16.xpose.msra.mxu0 0
    %1444 = vmatprep.mubr.bf16.mxu0 0
    %1445 = vmatmul.mubr.bf16.gmra.mrb[0].mxu0 %v1407
    %v1446 = vpop.f32.mrb[0].mxu0
    %v1447 = vadd.f32 0.0, %v1446
    %v1448 = vpop.f32.mrb[0].mxu0
    %v1449 = vpop.f32.mrb[0].mxu0
    %v1450 = vadd.f32 0.0, %v1449
    %v1451 = vpop.f32.mrb[0].mxu0
    %1452 = vdwg.mxu0
    %vm1453 = vcmask 130048
    %v1454 = vsel %vm1453, %v1118, -inf
    %1455 = vmax.xlane.f32.xlu0 %v1454
    %v1456 = vpop.xlane.xlu0 %1455
    %v1457 = vsel %vm1453, %v1121, -inf
    %1458 = vmax.xlane.f32.xlu0 %v1457
    %v1459 = vpop.xlane.xlu0 %1458
    %v1460 = vsel %vm1453, %v1165, -inf
    %1461 = vmax.xlane.f32.xlu0 %v1460
    %v1462 = vpop.xlane.xlu0 %1461
    %v1463 = vsel %vm1453, %v1168, -inf
    %1464 = vmax.xlane.f32.xlu0 %v1463
    %v1465 = vpop.xlane.xlu0 %1464
    %v1466 = vsel %vm1453, %v1212, -inf
    %1467 = vmax.xlane.f32.xlu0 %v1466
    %v1468 = vpop.xlane.xlu0 %1467
    %v1469 = vsel %vm1453, %v1215, -inf
    %1470 = vmax.xlane.f32.xlu0 %v1469
    %v1471 = vpop.xlane.xlu0 %1470
    %v1472 = vsel %vm1453, %v1259, -inf
    %1473 = vmax.xlane.f32.xlu0 %v1472
    %v1474 = vpop.xlane.xlu0 %1473
    %v1475 = vsel %vm1453, %v1262, -inf
    %1476 = vmax.xlane.f32.xlu0 %v1475
    %v1477 = vpop.xlane.xlu0 %1476
    %v1478 = vsel %vm1453, %v1306, -inf
    %1479 = vmax.xlane.f32.xlu0 %v1478
    %v1480 = vpop.xlane.xlu0 %1479
    %v1481 = vsel %vm1453, %v1309, -inf
    %1482 = vmax.xlane.f32.xlu0 %v1481
    %v1483 = vpop.xlane.xlu0 %1482
    %v1484 = vsel %vm1453, %v1353, -inf
    %1485 = vmax.xlane.f32.xlu0 %v1484
    %v1486 = vpop.xlane.xlu0 %1485
    %v1487 = vsel %vm1453, %v1356, -inf
    %1488 = vmax.xlane.f32.xlu0 %v1487
    %v1489 = vpop.xlane.xlu0 %1488
    %v1490 = vsel %vm1453, %v1400, -inf
    %1491 = vmax.xlane.f32.xlu0 %v1490
    %v1492 = vpop.xlane.xlu0 %1491
    %v1493 = vsel %vm1453, %v1403, -inf
    %1494 = vmax.xlane.f32.xlu0 %v1493
    %v1495 = vpop.xlane.xlu0 %1494
    %v1496 = vsel %vm1453, %v1447, -inf
    %1497 = vmax.xlane.f32.xlu0 %v1496
    %v1498 = vpop.xlane.xlu0 %1497
    %v1499 = vsel %vm1453, %v1450, -inf
    %1500 = vmax.xlane.f32.xlu0 %v1499
    %v1501 = vpop.xlane.xlu0 %1500
    %v1502 = vsub.f32 %v1118, %v1456
    %v1503 = vsub.f32 %v1121, %v1459
    %v1504 = vsub.f32 %v1165, %v1462
    %v1505 = vsub.f32 %v1168, %v1465
    %v1506 = vsub.f32 %v1212, %v1468
    %v1507 = vsub.f32 %v1215, %v1471
    %v1508 = vsub.f32 %v1259, %v1474
    %v1509 = vsub.f32 %v1262, %v1477
    %v1510 = vsub.f32 %v1306, %v1480
    %v1511 = vsub.f32 %v1309, %v1483
    %v1512 = vsub.f32 %v1353, %v1486
    %v1513 = vsub.f32 %v1356, %v1489
    %v1514 = vsub.f32 %v1400, %v1492
    %v1515 = vsub.f32 %v1403, %v1495
    %v1516 = vsub.f32 %v1447, %v1498
    %v1517 = vsub.f32 %v1450, %v1501
    %v1518 = vmul.f32 %v1502, 1.442695
    %v1519 = vpow.pop %v1518
    %v1520 = vmul.f32 %v1503, 1.442695
    %v1521 = vpow.pop %v1520
    %v1522 = vmul.f32 %v1504, 1.442695
    %v1523 = vpow.pop %v1522
    %v1524 = vmul.f32 %v1505, 1.442695
    %v1525 = vpow.pop %v1524
    %v1526 = vmul.f32 %v1506, 1.442695
    %v1527 = vpow.pop %v1526
    %v1528 = vmul.f32 %v1507, 1.442695
    %v1529 = vpow.pop %v1528
    %v1530 = vmul.f32 %v1508, 1.442695
    %v1531 = vpow.pop %v1530
    %v1532 = vmul.f32 %v1509, 1.442695
    %v1533 = vpow.pop %v1532
    %v1534 = vmul.f32 %v1510, 1.442695
    %v1535 = vpow.pop %v1534
    %v1536 = vmul.f32 %v1511, 1.442695
    %v1537 = vpow.pop %v1536
    %v1538 = vmul.f32 %v1512, 1.442695
    %v1539 = vpow.pop %v1538
    %v1540 = vmul.f32 %v1513, 1.442695
    %v1541 = vpow.pop %v1540
    %v1542 = vmul.f32 %v1514, 1.442695
    %v1543 = vpow.pop %v1542
    %v1544 = vmul.f32 %v1515, 1.442695
    %v1545 = vpow.pop %v1544
    %v1546 = vmul.f32 %v1516, 1.442695
    %v1547 = vpow.pop %v1546
    %v1548 = vmul.f32 %v1517, 1.442695
    %v1549 = vpow.pop %v1548
    %v1550 = vsel %vm1453, %v1519, 0.0
    %1551 = vadd.xlane.f32.xlu0 %v1550
    %v1552 = vpop.xlane.xlu0 %1551
    %v1553 = vsel %vm1453, %v1521, 0.0
    %1554 = vadd.xlane.f32.xlu0 %v1553
    %v1555 = vpop.xlane.xlu0 %1554
    %v1556 = vsel %vm1453, %v1523, 0.0
    %1557 = vadd.xlane.f32.xlu0 %v1556
    %v1558 = vpop.xlane.xlu0 %1557
    %v1559 = vsel %vm1453, %v1525, 0.0
    %1560 = vadd.xlane.f32.xlu0 %v1559
    %v1561 = vpop.xlane.xlu0 %1560
    %v1562 = vsel %vm1453, %v1527, 0.0
    %1563 = vadd.xlane.f32.xlu0 %v1562
    %v1564 = vpop.xlane.xlu0 %1563
    %v1565 = vsel %vm1453, %v1529, 0.0
    %1566 = vadd.xlane.f32.xlu0 %v1565
    %v1567 = vpop.xlane.xlu0 %1566
    %v1568 = vsel %vm1453, %v1531, 0.0
    %1569 = vadd.xlane.f32.xlu0 %v1568
    %v1570 = vpop.xlane.xlu0 %1569
    %v1571 = vsel %vm1453, %v1533, 0.0
    %1572 = vadd.xlane.f32.xlu0 %v1571
    %v1573 = vpop.xlane.xlu0 %1572
    %v1574 = vsel %vm1453, %v1535, 0.0
    %1575 = vadd.xlane.f32.xlu0 %v1574
    %v1576 = vpop.xlane.xlu0 %1575
    %v1577 = vsel %vm1453, %v1537, 0.0
    %1578 = vadd.xlane.f32.xlu0 %v1577
    %v1579 = vpop.xlane.xlu0 %1578
    %v1580 = vsel %vm1453, %v1539, 0.0
    %1581 = vadd.xlane.f32.xlu0 %v1580
    %v1582 = vpop.xlane.xlu0 %1581
    %v1583 = vsel %vm1453, %v1541, 0.0
    %1584 = vadd.xlane.f32.xlu0 %v1583
    %v1585 = vpop.xlane.xlu0 %1584
    %v1586 = vsel %vm1453, %v1543, 0.0
    %1587 = vadd.xlane.f32.xlu0 %v1586
    %v1588 = vpop.xlane.xlu0 %1587
    %v1589 = vsel %vm1453, %v1545, 0.0
    %1590 = vadd.xlane.f32.xlu0 %v1589
    %v1591 = vpop.xlane.xlu0 %1590
    %v1592 = vsel %vm1453, %v1547, 0.0
    %1593 = vadd.xlane.f32.xlu0 %v1592
    %v1594 = vpop.xlane.xlu0 %1593
    %v1595 = vsel %vm1453, %v1549, 0.0
    %1596 = vadd.xlane.f32.xlu0 %v1595
    %v1597 = vpop.xlane.xlu0 %1596
    %v1598 = vrcp.pop %v1552
    %v1599 = vrcp.pop %v1555
    %v1600 = vrcp.pop %v1558
    %v1601 = vrcp.pop %v1561
    %v1602 = vrcp.pop %v1564
    %v1603 = vrcp.pop %v1567
    %v1604 = vrcp.pop %v1570
    %v1605 = vrcp.pop %v1573
    %v1606 = vrcp.pop %v1576
    %v1607 = vrcp.pop %v1579
    %v1608 = vrcp.pop %v1582
    %v1609 = vrcp.pop %v1585
    %v1610 = vrcp.pop %v1588
    %v1611 = vrcp.pop %v1591
    %v1612 = vrcp.pop %v1594
    %v1613 = vrcp.pop %v1597
    %v1614 = vmul.f32 %v1519, %v1598
    %v1615 = vmul.f32 %v1521, %v1599
    %v1616 = vmul.f32 %v1523, %v1600
    %v1617 = vmul.f32 %v1525, %v1601
    %v1618 = vmul.f32 %v1527, %v1602
    %v1619 = vmul.f32 %v1529, %v1603
    %v1620 = vmul.f32 %v1531, %v1604
    %v1621 = vmul.f32 %v1533, %v1605
    %v1622 = vmul.f32 %v1535, %v1606
    %v1623 = vmul.f32 %v1537, %v1607
    %v1624 = vmul.f32 %v1539, %v1608
    %v1625 = vmul.f32 %v1541, %v1609
    %v1626 = vmul.f32 %v1543, %v1610
    %v1627 = vmul.f32 %v1545, %v1611
    %v1628 = vmul.f32 %v1547, %v1612
    %v1629 = vmul.f32 %v1549, %v1613
    %v1630 = vld [vmem:[%s4] sm:$0xff]
    %v1631 = vld [vmem:[%s4 + $0x8] sm:$0xff]
    %v1632 = vld [vmem:[%s4 + $0x10] sm:$0xff]
    %v1633 = vld [vmem:[%s4 + $0x18] sm:$0xff]
    %v1634 = vld [vmem:[%s4 + $0x20] sm:$0xff]
    %v1635 = vld [vmem:[%s4 + $0x28] sm:$0xff]
    %v1636 = vld [vmem:[%s4 + $0x30] sm:$0xff]
    %v1637 = vld [vmem:[%s4 + $0x38] sm:$0xff]
    %v1638 = vadd.f32 %v1614, %v1630
    %v1639 = vadd.f32 %v1615, %v1631
    %v1640 = vadd.f32 %v1616, %v1632
    %v1641 = vadd.f32 %v1617, %v1633
    %v1642 = vadd.f32 %v1618, %v1634
    %v1643 = vadd.f32 %v1619, %v1635
    %v1644 = vadd.f32 %v1620, %v1636
    %v1645 = vadd.f32 %v1621, %v1637
    %v1646 = vadd.f32 %v1622, %v1630
    %v1647 = vadd.f32 %v1623, %v1631
    %v1648 = vadd.f32 %v1624, %v1632
    %v1649 = vadd.f32 %v1625, %v1633
    %v1650 = vadd.f32 %v1626, %v1634
    %v1651 = vadd.f32 %v1627, %v1635
    %v1652 = vadd.f32 %v1628, %v1636
    %v1653 = vadd.f32 %v1629, %v1637
    %v1654 = vpack.c.bf16 %v1639, %v1638
    %v1655 = vpack.c.bf16 %v1641, %v1640
    %v1656 = vpack.c.bf16 %v1643, %v1642
    %v1657 = vpack.c.bf16 %v1645, %v1644
    %v1658 = vpack.c.bf16 %v1647, %v1646
    %v1659 = vpack.c.bf16 %v1649, %v1648
    %v1660 = vpack.c.bf16 %v1651, %v1650
    %v1661 = vpack.c.bf16 %v1653, %v1652
    %v1662 = vpack.c.bf16 %v565, %v564
    %v1663 = vpack.c.bf16 %v597, %v596
    %v1664 = vpack.c.bf16 %v629, %v628
    %v1665 = vpack.c.bf16 %v661, %v660
    %v1666 = vpack.c.bf16 %v949, %v948
    %v1667 = vpack.c.bf16 %v981, %v980
    %v1668 = vpack.c.bf16 %v1013, %v1012
    %v1669 = vpack.c.bf16 %v1045, %v1044
    %v1671 = vsel %vm1453, %v1654, 0
    %1673 = vmatprep.subr.bf16.mxu0 0
    %1674 = vmatpush1.bf16.msra.mxu0 %v1662
    %1675 = vmatprep.subr.bf16.mxu0 0
    %1676 = vmatpush1.bf16.msra.mxu0 0
    %1677 = vmatprep.subr.bf16.mxu0 0
    %1678 = vmatpush1.bf16.msra.mxu0 0
    %1679 = vmatprep.subr.bf16.mxu0 0
    %1680 = vmatpush1.bf16.msra.mxu0 0
    %1681 = vmatprep.subr.bf16.mxu0 0
    %1682 = vmatpush1.bf16.msra.mxu0 0
    %1683 = vmatprep.subr.bf16.mxu0 0
    %1684 = vmatpush1.bf16.msra.mxu0 0
    %1685 = vmatprep.subr.bf16.mxu0 0
    %1686 = vmatpush1.bf16.msra.mxu0 0
    %1687 = vmatprep.subr.bf16.mxu0 0
    %1688 = vmatpush1.bf16.msra.mxu0 0
    %1689 = vmatprep.subr.bf16.mxu0 0
    %1690 = vmatpush1.bf16.msra.mxu0 0
    %1691 = vmatprep.subr.bf16.mxu0 0
    %1692 = vmatpush1.bf16.msra.mxu0 0
    %1693 = vmatprep.subr.bf16.mxu0 0
    %1694 = vmatpush1.bf16.msra.mxu0 0
    %1695 = vmatprep.subr.bf16.mxu0 0
    %1696 = vmatpush1.bf16.msra.mxu0 0
    %1697 = vmatprep.subr.bf16.mxu0 0
    %1698 = vmatpush1.bf16.msra.mxu0 0
    %1699 = vmatprep.subr.bf16.mxu0 0
    %1700 = vmatpush1.bf16.msra.mxu0 0
    %1701 = vmatprep.subr.bf16.mxu0 0
    %1702 = vmatpush1.bf16.msra.mxu0 0
    %1703 = vmatprep.subr.bf16.mxu0 0
    %1704 = vmatpush1.bf16.msra.mxu0 0
    %1705 = vmatprep.mubr.bf16.mxu0 0
    %1706 = vmatmul.mubr.bf16.gmra.mrb[0].mxu0 %v1671
    %v1707 = vpop.f32.mrb[0].mxu0
    %v1708 = vadd.f32 0.0, %v1707
    %v1709 = vpop.f32.mrb[0].mxu0
    %v1710 = vpop.f32.mrb[0].mxu0
    %v1711 = vadd.f32 0.0, %v1710
    %v1712 = vpop.f32.mrb[0].mxu0
    %1713 = vdwg.mxu0
    %v1715 = vsel %vm1453, %v1655, 0
    %1717 = vmatprep.subr.bf16.mxu0 0
    %1718 = vmatpush1.bf16.msra.mxu0 %v1663
    %1719 = vmatprep.subr.bf16.mxu0 0
    %1720 = vmatpush1.bf16.msra.mxu0 0
    %1721 = vmatprep.subr.bf16.mxu0 0
    %1722 = vmatpush1.bf16.msra.mxu0 0
    %1723 = vmatprep.subr.bf16.mxu0 0
    %1724 = vmatpush1.bf16.msra.mxu0 0
    %1725 = vmatprep.subr.bf16.mxu0 0
    %1726 = vmatpush1.bf16.msra.mxu0 0
    %1727 = vmatprep.subr.bf16.mxu0 0
    %1728 = vmatpush1.bf16.msra.mxu0 0
    %1729 = vmatprep.subr.bf16.mxu0 0
    %1730 = vmatpush1.bf16.msra.mxu0 0
    %1731 = vmatprep.subr.bf16.mxu0 0
    %1732 = vmatpush1.bf16.msra.mxu0 0
    %1733 = vmatprep.subr.bf16.mxu0 0
    %1734 = vmatpush1.bf16.msra.mxu0 0
    %1735 = vmatprep.subr.bf16.mxu0 0
    %1736 = vmatpush1.bf16.msra.mxu0 0
    %1737 = vmatprep.subr.bf16.mxu0 0
    %1738 = vmatpush1.bf16.msra.mxu0 0
    %1739 = vmatprep.subr.bf16.mxu0 0
    %1740 = vmatpush1.bf16.msra.mxu0 0
    %1741 = vmatprep.subr.bf16.mxu0 0
    %1742 = vmatpush1.bf16.msra.mxu0 0
    %1743 = vmatprep.subr.bf16.mxu0 0
    %1744 = vmatpush1.bf16.msra.mxu0 0
    %1745 = vmatprep.subr.bf16.mxu0 0
    %1746 = vmatpush1.bf16.msra.mxu0 0
    %1747 = vmatprep.subr.bf16.mxu0 0
    %1748 = vmatpush1.bf16.msra.mxu0 0
    %1749 = vmatprep.mubr.bf16.mxu0 0
    %1750 = vmatmul.mubr.bf16.gmra.mrb[0].mxu0 %v1715
    %v1751 = vpop.f32.mrb[0].mxu0
    %v1752 = vadd.f32 0.0, %v1751
    %v1753 = vpop.f32.mrb[0].mxu0
    %v1754 = vpop.f32.mrb[0].mxu0
    %v1755 = vadd.f32 0.0, %v1754
    %v1756 = vpop.f32.mrb[0].mxu0
    %1757 = vdwg.mxu0
    %v1759 = vsel %vm1453, %v1656, 0
    %1761 = vmatprep.subr.bf16.mxu0 0
    %1762 = vmatpush1.bf16.msra.mxu0 %v1664
    %1763 = vmatprep.subr.bf16.mxu0 0
    %1764 = vmatpush1.bf16.msra.mxu0 0
    %1765 = vmatprep.subr.bf16.mxu0 0
    %1766 = vmatpush1.bf16.msra.mxu0 0
    %1767 = vmatprep.subr.bf16.mxu0 0
    %1768 = vmatpush1.bf16.msra.mxu0 0
    %1769 = vmatprep.subr.bf16.mxu0 0
    %1770 = vmatpush1.bf16.msra.mxu0 0
    %1771 = vmatprep.subr.bf16.mxu0 0
    %1772 = vmatpush1.bf16.msra.mxu0 0
    %1773 = vmatprep.subr.bf16.mxu0 0
    %1774 = vmatpush1.bf16.msra.mxu0 0
    %1775 = vmatprep.subr.bf16.mxu0 0
    %1776 = vmatpush1.bf16.msra.mxu0 0
    %1777 = vmatprep.subr.bf16.mxu0 0
    %1778 = vmatpush1.bf16.msra.mxu0 0
    %1779 = vmatprep.subr.bf16.mxu0 0
    %1780 = vmatpush1.bf16.msra.mxu0 0
    %1781 = vmatprep.subr.bf16.mxu0 0
    %1782 = vmatpush1.bf16.msra.mxu0 0
    %1783 = vmatprep.subr.bf16.mxu0 0
    %1784 = vmatpush1.bf16.msra.mxu0 0
    %1785 = vmatprep.subr.bf16.mxu0 0
    %1786 = vmatpush1.bf16.msra.mxu0 0
    %1787 = vmatprep.subr.bf16.mxu0 0
    %1788 = vmatpush1.bf16.msra.mxu0 0
    %1789 = vmatprep.subr.bf16.mxu0 0
    %1790 = vmatpush1.bf16.msra.mxu0 0
    %1791 = vmatprep.subr.bf16.mxu0 0
    %1792 = vmatpush1.bf16.msra.mxu0 0
    %1793 = vmatprep.mubr.bf16.mxu0 0
    %1794 = vmatmul.mubr.bf16.gmra.mrb[0].mxu0 %v1759
    %v1795 = vpop.f32.mrb[0].mxu0
    %v1796 = vadd.f32 0.0, %v1795
    %v1797 = vpop.f32.mrb[0].mxu0
    %v1798 = vpop.f32.mrb[0].mxu0
    %v1799 = vadd.f32 0.0, %v1798
    %v1800 = vpop.f32.mrb[0].mxu0
    %1801 = vdwg.mxu0
    %v1803 = vsel %vm1453, %v1657, 0
    %1805 = vmatprep.subr.bf16.mxu0 0
    %1806 = vmatpush1.bf16.msra.mxu0 %v1665
    %1807 = vmatprep.subr.bf16.mxu0 0
    %1808 = vmatpush1.bf16.msra.mxu0 0
    %1809 = vmatprep.subr.bf16.mxu0 0
    %1810 = vmatpush1.bf16.msra.mxu0 0
    %1811 = vmatprep.subr.bf16.mxu0 0
    %1812 = vmatpush1.bf16.msra.mxu0 0
    %1813 = vmatprep.subr.bf16.mxu0 0
    %1814 = vmatpush1.bf16.msra.mxu0 0
    %1815 = vmatprep.subr.bf16.mxu0 0
    %1816 = vmatpush1.bf16.msra.mxu0 0
    %1817 = vmatprep.subr.bf16.mxu0 0
    %1818 = vmatpush1.bf16.msra.mxu0 0
    %1819 = vmatprep.subr.bf16.mxu0 0
    %1820 = vmatpush1.bf16.msra.mxu0 0
    %1821 = vmatprep.subr.bf16.mxu0 0
    %1822 = vmatpush1.bf16.msra.mxu0 0
    %1823 = vmatprep.subr.bf16.mxu0 0
    %1824 = vmatpush1.bf16.msra.mxu0 0
    %1825 = vmatprep.subr.bf16.mxu0 0
    %1826 = vmatpush1.bf16.msra.mxu0 0
    %1827 = vmatprep.subr.bf16.mxu0 0
    %1828 = vmatpush1.bf16.msra.mxu0 0
    %1829 = vmatprep.subr.bf16.mxu0 0
    %1830 = vmatpush1.bf16.msra.mxu0 0
    %1831 = vmatprep.subr.bf16.mxu0 0
    %1832 = vmatpush1.bf16.msra.mxu0 0
    %1833 = vmatprep.subr.bf16.mxu0 0
    %1834 = vmatpush1.bf16.msra.mxu0 0
    %1835 = vmatprep.subr.bf16.mxu0 0
    %1836 = vmatpush1.bf16.msra.mxu0 0
    %1837 = vmatprep.mubr.bf16.mxu0 0
    %1838 = vmatmul.mubr.bf16.gmra.mrb[0].mxu0 %v1803
    %v1839 = vpop.f32.mrb[0].mxu0
    %v1840 = vadd.f32 0.0, %v1839
    %v1841 = vpop.f32.mrb[0].mxu0
    %v1842 = vpop.f32.mrb[0].mxu0
    %v1843 = vadd.f32 0.0, %v1842
    %v1844 = vpop.f32.mrb[0].mxu0
    %1845 = vdwg.mxu0
    %v1847 = vsel %vm1453, %v1658, 0
    %1849 = vmatprep.subr.bf16.mxu0 0
    %1850 = vmatpush1.bf16.msra.mxu0 %v1666
    %1851 = vmatprep.subr.bf16.mxu0 0
    %1852 = vmatpush1.bf16.msra.mxu0 0
    %1853 = vmatprep.subr.bf16.mxu0 0
    %1854 = vmatpush1.bf16.msra.mxu0 0
    %1855 = vmatprep.subr.bf16.mxu0 0
    %1856 = vmatpush1.bf16.msra.mxu0 0
    %1857 = vmatprep.subr.bf16.mxu0 0
    %1858 = vmatpush1.bf16.msra.mxu0 0
    %1859 = vmatprep.subr.bf16.mxu0 0
    %1860 = vmatpush1.bf16.msra.mxu0 0
    %1861 = vmatprep.subr.bf16.mxu0 0
    %1862 = vmatpush1.bf16.msra.mxu0 0
    %1863 = vmatprep.subr.bf16.mxu0 0
    %1864 = vmatpush1.bf16.msra.mxu0 0
    %1865 = vmatprep.subr.bf16.mxu0 0
    %1866 = vmatpush1.bf16.msra.mxu0 0
    %1867 = vmatprep.subr.bf16.mxu0 0
    %1868 = vmatpush1.bf16.msra.mxu0 0
    %1869 = vmatprep.subr.bf16.mxu0 0
    %1870 = vmatpush1.bf16.msra.mxu0 0
    %1871 = vmatprep.subr.bf16.mxu0 0
    %1872 = vmatpush1.bf16.msra.mxu0 0
    %1873 = vmatprep.subr.bf16.mxu0 0
    %1874 = vmatpush1.bf16.msra.mxu0 0
    %1875 = vmatprep.subr.bf16.mxu0 0
    %1876 = vmatpush1.bf16.msra.mxu0 0
    %1877 = vmatprep.subr.bf16.mxu0 0
    %1878 = vmatpush1.bf16.msra.mxu0 0
    %1879 = vmatprep.subr.bf16.mxu0 0
    %1880 = vmatpush1.bf16.msra.mxu0 0
    %1881 = vmatprep.mubr.bf16.mxu0 0
    %1882 = vmatmul.mubr.bf16.gmra.mrb[0].mxu0 %v1847
    %v1883 = vpop.f32.mrb[0].mxu0
    %v1884 = vadd.f32 0.0, %v1883
    %v1885 = vpop.f32.mrb[0].mxu0
    %v1886 = vpop.f32.mrb[0].mxu0
    %v1887 = vadd.f32 0.0, %v1886
    %v1888 = vpop.f32.mrb[0].mxu0
    %1889 = vdwg.mxu0
    %v1891 = vsel %vm1453, %v1659, 0
    %1893 = vmatprep.subr.bf16.mxu0 0
    %1894 = vmatpush1.bf16.msra.mxu0 %v1667
    %1895 = vmatprep.subr.bf16.mxu0 0
    %1896 = vmatpush1.bf16.msra.mxu0 0
    %1897 = vmatprep.subr.bf16.mxu0 0
    %1898 = vmatpush1.bf16.msra.mxu0 0
    %1899 = vmatprep.subr.bf16.mxu0 0
    %1900 = vmatpush1.bf16.msra.mxu0 0
    %1901 = vmatprep.subr.bf16.mxu0 0
    %1902 = vmatpush1.bf16.msra.mxu0 0
    %1903 = vmatprep.subr.bf16.mxu0 0
    %1904 = vmatpush1.bf16.msra.mxu0 0
    %1905 = vmatprep.subr.bf16.mxu0 0
    %1906 = vmatpush1.bf16.msra.mxu0 0
    %1907 = vmatprep.subr.bf16.mxu0 0
    %1908 = vmatpush1.bf16.msra.mxu0 0
    %1909 = vmatprep.subr.bf16.mxu0 0
    %1910 = vmatpush1.bf16.msra.mxu0 0
    %1911 = vmatprep.subr.bf16.mxu0 0
    %1912 = vmatpush1.bf16.msra.mxu0 0
    %1913 = vmatprep.subr.bf16.mxu0 0
    %1914 = vmatpush1.bf16.msra.mxu0 0
    %1915 = vmatprep.subr.bf16.mxu0 0
    %1916 = vmatpush1.bf16.msra.mxu0 0
    %1917 = vmatprep.subr.bf16.mxu0 0
    %1918 = vmatpush1.bf16.msra.mxu0 0
    %1919 = vmatprep.subr.bf16.mxu0 0
    %1920 = vmatpush1.bf16.msra.mxu0 0
    %1921 = vmatprep.subr.bf16.mxu0 0
    %1922 = vmatpush1.bf16.msra.mxu0 0
    %1923 = vmatprep.subr.bf16.mxu0 0
    %1924 = vmatpush1.bf16.msra.mxu0 0
    %1925 = vmatprep.mubr.bf16.mxu0 0
    %1926 = vmatmul.mubr.bf16.gmra.mrb[0].mxu0 %v1891
    %v1927 = vpop.f32.mrb[0].mxu0
    %v1928 = vadd.f32 0.0, %v1927
    %v1929 = vpop.f32.mrb[0].mxu0
    %v1930 = vpop.f32.mrb[0].mxu0
    %v1931 = vadd.f32 0.0, %v1930
    %v1932 = vpop.f32.mrb[0].mxu0
    %1933 = vdwg.mxu0
    %v1935 = vsel %vm1453, %v1660, 0
    %1937 = vmatprep.subr.bf16.mxu0 0
    %1938 = vmatpush1.bf16.msra.mxu0 %v1668
    %1939 = vmatprep.subr.bf16.mxu0 0
    %1940 = vmatpush1.bf16.msra.mxu0 0
    %1941 = vmatprep.subr.bf16.mxu0 0
    %1942 = vmatpush1.bf16.msra.mxu0 0
    %1943 = vmatprep.subr.bf16.mxu0 0
    %1944 = vmatpush1.bf16.msra.mxu0 0
    %1945 = vmatprep.subr.bf16.mxu0 0
    %1946 = vmatpush1.bf16.msra.mxu0 0
    %1947 = vmatprep.subr.bf16.mxu0 0
    %1948 = vmatpush1.bf16.msra.mxu0 0
    %1949 = vmatprep.subr.bf16.mxu0 0
    %1950 = vmatpush1.bf16.msra.mxu0 0
    %1951 = vmatprep.subr.bf16.mxu0 0
    %1952 = vmatpush1.bf16.msra.mxu0 0
    %1953 = vmatprep.subr.bf16.mxu0 0
    %1954 = vmatpush1.bf16.msra.mxu0 0
    %1955 = vmatprep.subr.bf16.mxu0 0
    %1956 = vmatpush1.bf16.msra.mxu0 0
    %1957 = vmatprep.subr.bf16.mxu0 0
    %1958 = vmatpush1.bf16.msra.mxu0 0
    %1959 = vmatprep.subr.bf16.mxu0 0
    %1960 = vmatpush1.bf16.msra.mxu0 0
    %1961 = vmatprep.subr.bf16.mxu0 0
    %1962 = vmatpush1.bf16.msra.mxu0 0
    %1963 = vmatprep.subr.bf16.mxu0 0
    %1964 = vmatpush1.bf16.msra.mxu0 0
    %1965 = vmatprep.subr.bf16.mxu0 0
    %1966 = vmatpush1.bf16.msra.mxu0 0
    %1967 = vmatprep.subr.bf16.mxu0 0
    %1968 = vmatpush1.bf16.msra.mxu0 0
    %1969 = vmatprep.mubr.bf16.mxu0 0
    %1970 = vmatmul.mubr.bf16.gmra.mrb[0].mxu0 %v1935
    %v1971 = vpop.f32.mrb[0].mxu0
    %v1972 = vadd.f32 0.0, %v1971
    %v1973 = vpop.f32.mrb[0].mxu0
    %v1974 = vpop.f32.mrb[0].mxu0
    %v1975 = vadd.f32 0.0, %v1974
    %v1976 = vpop.f32.mrb[0].mxu0
    %1977 = vdwg.mxu0
    %v1979 = vsel %vm1453, %v1661, 0
    %1981 = vmatprep.subr.bf16.mxu0 0
    %1982 = vmatpush1.bf16.msra.mxu0 %v1669
    %1983 = vmatprep.subr.bf16.mxu0 0
    %1984 = vmatpush1.bf16.msra.mxu0 0
    %1985 = vmatprep.subr.bf16.mxu0 0
    %1986 = vmatpush1.bf16.msra.mxu0 0
    %1987 = vmatprep.subr.bf16.mxu0 0
    %1988 = vmatpush1.bf16.msra.mxu0 0
    %1989 = vmatprep.subr.bf16.mxu0 0
    %1990 = vmatpush1.bf16.msra.mxu0 0
    %1991 = vmatprep.subr.bf16.mxu0 0
    %1992 = vmatpush1.bf16.msra.mxu0 0
    %1993 = vmatprep.subr.bf16.mxu0 0
    %1994 = vmatpush1.bf16.msra.mxu0 0
    %1995 = vmatprep.subr.bf16.mxu0 0
    %1996 = vmatpush1.bf16.msra.mxu0 0
    %1997 = vmatprep.subr.bf16.mxu0 0
    %1998 = vmatpush1.bf16.msra.mxu0 0
    %1999 = vmatprep.subr.bf16.mxu0 0
    %2000 = vmatpush1.bf16.msra.mxu0 0
    %2001 = vmatprep.subr.bf16.mxu0 0
    %2002 = vmatpush1.bf16.msra.mxu0 0
    %2003 = vmatprep.subr.bf16.mxu0 0
    %2004 = vmatpush1.bf16.msra.mxu0 0
    %2005 = vmatprep.subr.bf16.mxu0 0
    %2006 = vmatpush1.bf16.msra.mxu0 0
    %2007 = vmatprep.subr.bf16.mxu0 0
    %2008 = vmatpush1.bf16.msra.mxu0 0
    %2009 = vmatprep.subr.bf16.mxu0 0
    %2010 = vmatpush1.bf16.msra.mxu0 0
    %2011 = vmatprep.subr.bf16.mxu0 0
    %2012 = vmatpush1.bf16.msra.mxu0 0
    %2013 = vmatprep.mubr.bf16.mxu0 0
    %2014 = vmatmul.mubr.bf16.gmra.mrb[0].mxu0 %v1979
    %v2015 = vpop.f32.mrb[0].mxu0
    %v2016 = vadd.f32 0.0, %v2015
    %v2017 = vpop.f32.mrb[0].mxu0
    %v2018 = vpop.f32.mrb[0].mxu0
    %v2019 = vadd.f32 0.0, %v2018
    %v2020 = vpop.f32.mrb[0].mxu0
    %2021 = vdwg.mxu0
    %2022 = vxpose.xlu0.b32.start [1/16] %v1708, 128
    %2023 = vxpose.xlu0.b32.cont [2/16] %v1711, 128
    %2024 = vxpose.xlu0.b32.cont [3/16] 0.0, 128
    %2025 = vxpose.xlu0.b32.cont [4/16] 0.0, 128
    %2026 = vxpose.xlu0.b32.cont [5/16] 0.0, 128
    %2027 = vxpose.xlu0.b32.cont [6/16] 0.0, 128
    %2028 = vxpose.xlu0.b32.cont [7/16] 0.0, 128
    %2029 = vxpose.xlu0.b32.cont [8/16] 0.0, 128
    %2030 = vxpose.xlu0.b32.cont [9/16] 0.0, 128
    %2031 = vxpose.xlu0.b32.cont [10/16] 0.0, 128
    %2032 = vxpose.xlu0.b32.cont [11/16] 0.0, 128
    %2033 = vxpose.xlu0.b32.cont [12/16] 0.0, 128
    %2034 = vxpose.xlu0.b32.cont [13/16] 0.0, 128
    %2035 = vxpose.xlu0.b32.cont [14/16] 0.0, 128
    %2036 = vxpose.xlu0.b32.cont [15/16] 0.0, 128
    %2037 = vxpose.xlu0.b32.end [16/16] 0.0, 128
    %v2038 = vpop.trf.xlu0
    %v2039 = vpop.trf.xlu0
    %v2040 = vpop.trf.xlu0
    %v2041 = vpop.trf.xlu0
    %v2042 = vpop.trf.xlu0
    %v2043 = vpop.trf.xlu0
    %v2044 = vpop.trf.xlu0
    %v2045 = vpop.trf.xlu0
    %v2046 = vpop.trf.xlu0
    %v2047 = vpop.trf.xlu0
    %v2048 = vpop.trf.xlu0
    %v2049 = vpop.trf.xlu0
    %v2050 = vpop.trf.xlu0
    %v2051 = vpop.trf.xlu0
    %v2052 = vpop.trf.xlu0
    %v2053 = vpop.trf.xlu0
    %2054 = vxpose.xlu0.b32.start [1/16] %v1752, 128
    %2055 = vxpose.xlu0.b32.cont [2/16] %v1755, 128
    %2056 = vxpose.xlu0.b32.cont [3/16] 0.0, 128
    %2057 = vxpose.xlu0.b32.cont [4/16] 0.0, 128
    %2058 = vxpose.xlu0.b32.cont [5/16] 0.0, 128
    %2059 = vxpose.xlu0.b32.cont [6/16] 0.0, 128
    %2060 = vxpose.xlu0.b32.cont [7/16] 0.0, 128
    %2061 = vxpose.xlu0.b32.cont [8/16] 0.0, 128
    %2062 = vxpose.xlu0.b32.cont [9/16] 0.0, 128
    %2063 = vxpose.xlu0.b32.cont [10/16] 0.0, 128
    %2064 = vxpose.xlu0.b32.cont [11/16] 0.0, 128
    %2065 = vxpose.xlu0.b32.cont [12/16] 0.0, 128
    %2066 = vxpose.xlu0.b32.cont [13/16] 0.0, 128
    %2067 = vxpose.xlu0.b32.cont [14/16] 0.0, 128
    %2068 = vxpose.xlu0.b32.cont [15/16] 0.0, 128
    %2069 = vxpose.xlu0.b32.end [16/16] 0.0, 128
    %v2070 = vpop.trf.xlu0
    %v2071 = vpop.trf.xlu0
    %v2072 = vpop.trf.xlu0
    %v2073 = vpop.trf.xlu0
    %v2074 = vpop.trf.xlu0
    %v2075 = vpop.trf.xlu0
    %v2076 = vpop.trf.xlu0
    %v2077 = vpop.trf.xlu0
    %v2078 = vpop.trf.xlu0
    %v2079 = vpop.trf.xlu0
    %v2080 = vpop.trf.xlu0
    %v2081 = vpop.trf.xlu0
    %v2082 = vpop.trf.xlu0
    %v2083 = vpop.trf.xlu0
    %v2084 = vpop.trf.xlu0
    %v2085 = vpop.trf.xlu0
    %2086 = vxpose.xlu0.b32.start [1/16] %v1796, 128
    %2087 = vxpose.xlu0.b32.cont [2/16] %v1799, 128
    %2088 = vxpose.xlu0.b32.cont [3/16] 0.0, 128
    %2089 = vxpose.xlu0.b32.cont [4/16] 0.0, 128
    %2090 = vxpose.xlu0.b32.cont [5/16] 0.0, 128
    %2091 = vxpose.xlu0.b32.cont [6/16] 0.0, 128
    %2092 = vxpose.xlu0.b32.cont [7/16] 0.0, 128
    %2093 = vxpose.xlu0.b32.cont [8/16] 0.0, 128
    %2094 = vxpose.xlu0.b32.cont [9/16] 0.0, 128
    %2095 = vxpose.xlu0.b32.cont [10/16] 0.0, 128
    %2096 = vxpose.xlu0.b32.cont [11/16] 0.0, 128
    %2097 = vxpose.xlu0.b32.cont [12/16] 0.0, 128
    %2098 = vxpose.xlu0.b32.cont [13/16] 0.0, 128
    %2099 = vxpose.xlu0.b32.cont [14/16] 0.0, 128
    %2100 = vxpose.xlu0.b32.cont [15/16] 0.0, 128
    %2101 = vxpose.xlu0.b32.end [16/16] 0.0, 128
    %v2102 = vpop.trf.xlu0
    %v2103 = vpop.trf.xlu0
    %v2104 = vpop.trf.xlu0
    %v2105 = vpop.trf.xlu0
    %v2106 = vpop.trf.xlu0
    %v2107 = vpop.trf.xlu0
    %v2108 = vpop.trf.xlu0
    %v2109 = vpop.trf.xlu0
    %v2110 = vpop.trf.xlu0
    %v2111 = vpop.trf.xlu0
    %v2112 = vpop.trf.xlu0
    %v2113 = vpop.trf.xlu0
    %v2114 = vpop.trf.xlu0
    %v2115 = vpop.trf.xlu0
    %v2116 = vpop.trf.xlu0
    %v2117 = vpop.trf.xlu0
    %2118 = vxpose.xlu0.b32.start [1/16] %v1840, 128
    %2119 = vxpose.xlu0.b32.cont [2/16] %v1843, 128
    %2120 = vxpose.xlu0.b32.cont [3/16] 0.0, 128
    %2121 = vxpose.xlu0.b32.cont [4/16] 0.0, 128
    %2122 = vxpose.xlu0.b32.cont [5/16] 0.0, 128
    %2123 = vxpose.xlu0.b32.cont [6/16] 0.0, 128
    %2124 = vxpose.xlu0.b32.cont [7/16] 0.0, 128
    %2125 = vxpose.xlu0.b32.cont [8/16] 0.0, 128
    %2126 = vxpose.xlu0.b32.cont [9/16] 0.0, 128
    %2127 = vxpose.xlu0.b32.cont [10/16] 0.0, 128
    %2128 = vxpose.xlu0.b32.cont [11/16] 0.0, 128
    %2129 = vxpose.xlu0.b32.cont [12/16] 0.0, 128
    %2130 = vxpose.xlu0.b32.cont [13/16] 0.0, 128
    %2131 = vxpose.xlu0.b32.cont [14/16] 0.0, 128
    %2132 = vxpose.xlu0.b32.cont [15/16] 0.0, 128
    %2133 = vxpose.xlu0.b32.end [16/16] 0.0, 128
    %v2134 = vpop.trf.xlu0
    %v2135 = vpop.trf.xlu0
    %v2136 = vpop.trf.xlu0
    %v2137 = vpop.trf.xlu0
    %v2138 = vpop.trf.xlu0
    %v2139 = vpop.trf.xlu0
    %v2140 = vpop.trf.xlu0
    %v2141 = vpop.trf.xlu0
    %v2142 = vpop.trf.xlu0
    %v2143 = vpop.trf.xlu0
    %v2144 = vpop.trf.xlu0
    %v2145 = vpop.trf.xlu0
    %v2146 = vpop.trf.xlu0
    %v2147 = vpop.trf.xlu0
    %v2148 = vpop.trf.xlu0
    %v2149 = vpop.trf.xlu0
    %2150 = vxpose.xlu0.b32.start [1/16] %v1884, 128
    %2151 = vxpose.xlu0.b32.cont [2/16] %v1887, 128
    %2152 = vxpose.xlu0.b32.cont [3/16] 0.0, 128
    %2153 = vxpose.xlu0.b32.cont [4/16] 0.0, 128
    %2154 = vxpose.xlu0.b32.cont [5/16] 0.0, 128
    %2155 = vxpose.xlu0.b32.cont [6/16] 0.0, 128
    %2156 = vxpose.xlu0.b32.cont [7/16] 0.0, 128
    %2157 = vxpose.xlu0.b32.cont [8/16] 0.0, 128
    %2158 = vxpose.xlu0.b32.cont [9/16] 0.0, 128
    %2159 = vxpose.xlu0.b32.cont [10/16] 0.0, 128
    %2160 = vxpose.xlu0.b32.cont [11/16] 0.0, 128
    %2161 = vxpose.xlu0.b32.cont [12/16] 0.0, 128
    %2162 = vxpose.xlu0.b32.cont [13/16] 0.0, 128
    %2163 = vxpose.xlu0.b32.cont [14/16] 0.0, 128
    %2164 = vxpose.xlu0.b32.cont [15/16] 0.0, 128
    %2165 = vxpose.xlu0.b32.end [16/16] 0.0, 128
    %v2166 = vpop.trf.xlu0
    %v2167 = vpop.trf.xlu0
    %v2168 = vpop.trf.xlu0
    %v2169 = vpop.trf.xlu0
    %v2170 = vpop.trf.xlu0
    %v2171 = vpop.trf.xlu0
    %v2172 = vpop.trf.xlu0
    %v2173 = vpop.trf.xlu0
    %v2174 = vpop.trf.xlu0
    %v2175 = vpop.trf.xlu0
    %v2176 = vpop.trf.xlu0
    %v2177 = vpop.trf.xlu0
    %v2178 = vpop.trf.xlu0
    %v2179 = vpop.trf.xlu0
    %v2180 = vpop.trf.xlu0
    %v2181 = vpop.trf.xlu0
    %2182 = vxpose.xlu0.b32.start [1/16] %v1928, 128
    %2183 = vxpose.xlu0.b32.cont [2/16] %v1931, 128
    %2184 = vxpose.xlu0.b32.cont [3/16] 0.0, 128
    %2185 = vxpose.xlu0.b32.cont [4/16] 0.0, 128
    %2186 = vxpose.xlu0.b32.cont [5/16] 0.0, 128
    %2187 = vxpose.xlu0.b32.cont [6/16] 0.0, 128
    %2188 = vxpose.xlu0.b32.cont [7/16] 0.0, 128
    %2189 = vxpose.xlu0.b32.cont [8/16] 0.0, 128
    %2190 = vxpose.xlu0.b32.cont [9/16] 0.0, 128
    %2191 = vxpose.xlu0.b32.cont [10/16] 0.0, 128
    %2192 = vxpose.xlu0.b32.cont [11/16] 0.0, 128
    %2193 = vxpose.xlu0.b32.cont [12/16] 0.0, 128
    %2194 = vxpose.xlu0.b32.cont [13/16] 0.0, 128
    %2195 = vxpose.xlu0.b32.cont [14/16] 0.0, 128
    %2196 = vxpose.xlu0.b32.cont [15/16] 0.0, 128
    %2197 = vxpose.xlu0.b32.end [16/16] 0.0, 128
    %v2198 = vpop.trf.xlu0
    %v2199 = vpop.trf.xlu0
    %v2200 = vpop.trf.xlu0
    %v2201 = vpop.trf.xlu0
    %v2202 = vpop.trf.xlu0
    %v2203 = vpop.trf.xlu0
    %v2204 = vpop.trf.xlu0
    %v2205 = vpop.trf.xlu0
    %v2206 = vpop.trf.xlu0
    %v2207 = vpop.trf.xlu0
    %v2208 = vpop.trf.xlu0
    %v2209 = vpop.trf.xlu0
    %v2210 = vpop.trf.xlu0
    %v2211 = vpop.trf.xlu0
    %v2212 = vpop.trf.xlu0
    %v2213 = vpop.trf.xlu0
    %2214 = vxpose.xlu0.b32.start [1/16] %v1972, 128
    %2215 = vxpose.xlu0.b32.cont [2/16] %v1975, 128
    %2216 = vxpose.xlu0.b32.cont [3/16] 0.0, 128
    %2217 = vxpose.xlu0.b32.cont [4/16] 0.0, 128
    %2218 = vxpose.xlu0.b32.cont [5/16] 0.0, 128
    %2219 = vxpose.xlu0.b32.cont [6/16] 0.0, 128
    %2220 = vxpose.xlu0.b32.cont [7/16] 0.0, 128
    %2221 = vxpose.xlu0.b32.cont [8/16] 0.0, 128
    %2222 = vxpose.xlu0.b32.cont [9/16] 0.0, 128
    %2223 = vxpose.xlu0.b32.cont [10/16] 0.0, 128
    %2224 = vxpose.xlu0.b32.cont [11/16] 0.0, 128
    %2225 = vxpose.xlu0.b32.cont [12/16] 0.0, 128
    %2226 = vxpose.xlu0.b32.cont [13/16] 0.0, 128
    %2227 = vxpose.xlu0.b32.cont [14/16] 0.0, 128
    %2228 = vxpose.xlu0.b32.cont [15/16] 0.0, 128
    %2229 = vxpose.xlu0.b32.end [16/16] 0.0, 128
    %v2230 = vpop.trf.xlu0
    %v2231 = vpop.trf.xlu0
    %v2232 = vpop.trf.xlu0
    %v2233 = vpop.trf.xlu0
    %v2234 = vpop.trf.xlu0
    %v2235 = vpop.trf.xlu0
    %v2236 = vpop.trf.xlu0
    %v2237 = vpop.trf.xlu0
    %v2238 = vpop.trf.xlu0
    %v2239 = vpop.trf.xlu0
    %v2240 = vpop.trf.xlu0
    %v2241 = vpop.trf.xlu0
    %v2242 = vpop.trf.xlu0
    %v2243 = vpop.trf.xlu0
    %v2244 = vpop.trf.xlu0
    %v2245 = vpop.trf.xlu0
    %2246 = vxpose.xlu0.b32.start [1/16] %v2016, 128
    %2247 = vxpose.xlu0.b32.cont [2/16] %v2019, 128
    %2248 = vxpose.xlu0.b32.cont [3/16] 0.0, 128
    %2249 = vxpose.xlu0.b32.cont [4/16] 0.0, 128
    %2250 = vxpose.xlu0.b32.cont [5/16] 0.0, 128
    %2251 = vxpose.xlu0.b32.cont [6/16] 0.0, 128
    %2252 = vxpose.xlu0.b32.cont [7/16] 0.0, 128
    %2253 = vxpose.xlu0.b32.cont [8/16] 0.0, 128
    %2254 = vxpose.xlu0.b32.cont [9/16] 0.0, 128
    %2255 = vxpose.xlu0.b32.cont [10/16] 0.0, 128
    %2256 = vxpose.xlu0.b32.cont [11/16] 0.0, 128
    %2257 = vxpose.xlu0.b32.cont [12/16] 0.0, 128
    %2258 = vxpose.xlu0.b32.cont [13/16] 0.0, 128
    %2259 = vxpose.xlu0.b32.cont [14/16] 0.0, 128
    %2260 = vxpose.xlu0.b32.cont [15/16] 0.0, 128
    %2261 = vxpose.xlu0.b32.end [16/16] 0.0, 128
    %v2262 = vpop.trf.xlu0
    %v2263 = vpop.trf.xlu0
    %v2264 = vpop.trf.xlu0
    %v2265 = vpop.trf.xlu0
    %v2266 = vpop.trf.xlu0
    %v2267 = vpop.trf.xlu0
    %v2268 = vpop.trf.xlu0
    %v2269 = vpop.trf.xlu0
    %v2270 = vpop.trf.xlu0
    %v2271 = vpop.trf.xlu0
    %v2272 = vpop.trf.xlu0
    %v2273 = vpop.trf.xlu0
    %v2274 = vpop.trf.xlu0
    %v2275 = vpop.trf.xlu0
    %v2276 = vpop.trf.xlu0
    %v2277 = vpop.trf.xlu0
    %2278 = vxpose.xlu0.b32.start [1/16] %v2038, 128
    %2279 = vxpose.xlu0.b32.cont [2/16] %v2070, 128
    %2280 = vxpose.xlu0.b32.cont [3/16] %v2102, 128
    %2281 = vxpose.xlu0.b32.cont [4/16] %v2134, 128
    %2282 = vxpose.xlu0.b32.cont [5/16] 0.0, 128
    %2283 = vxpose.xlu0.b32.cont [6/16] 0.0, 128
    %2284 = vxpose.xlu0.b32.cont [7/16] 0.0, 128
    %2285 = vxpose.xlu0.b32.cont [8/16] 0.0, 128
    %2286 = vxpose.xlu0.b32.cont [9/16] 0.0, 128
    %2287 = vxpose.xlu0.b32.cont [10/16] 0.0, 128
    %2288 = vxpose.xlu0.b32.cont [11/16] 0.0, 128
    %2289 = vxpose.xlu0.b32.cont [12/16] 0.0, 128
    %2290 = vxpose.xlu0.b32.cont [13/16] 0.0, 128
    %2291 = vxpose.xlu0.b32.cont [14/16] 0.0, 128
    %2292 = vxpose.xlu0.b32.cont [15/16] 0.0, 128
    %2293 = vxpose.xlu0.b32.end [16/16] 0.0, 128
    %v2294 = vpop.trf.xlu0
    %v2295 = vpop.trf.xlu0
    %v2296 = vpop.trf.xlu0
    %v2297 = vpop.trf.xlu0
    %v2298 = vpop.trf.xlu0
    %v2299 = vpop.trf.xlu0
    %v2300 = vpop.trf.xlu0
    %v2301 = vpop.trf.xlu0
    %v2302 = vpop.trf.xlu0
    %v2303 = vpop.trf.xlu0
    %v2304 = vpop.trf.xlu0
    %v2305 = vpop.trf.xlu0
    %v2306 = vpop.trf.xlu0
    %v2307 = vpop.trf.xlu0
    %v2308 = vpop.trf.xlu0
    %v2309 = vpop.trf.xlu0
    %2310 = vxpose.xlu0.b32.start [1/16] %v2166, 128
    %2311 = vxpose.xlu0.b32.cont [2/16] %v2198, 128
    %2312 = vxpose.xlu0.b32.cont [3/16] %v2230, 128
    %2313 = vxpose.xlu0.b32.cont [4/16] %v2262, 128
    %2314 = vxpose.xlu0.b32.cont [5/16] 0.0, 128
    %2315 = vxpose.xlu0.b32.cont [6/16] 0.0, 128
    %2316 = vxpose.xlu0.b32.cont [7/16] 0.0, 128
    %2317 = vxpose.xlu0.b32.cont [8/16] 0.0, 128
    %2318 = vxpose.xlu0.b32.cont [9/16] 0.0, 128
    %2319 = vxpose.xlu0.b32.cont [10/16] 0.0, 128
    %2320 = vxpose.xlu0.b32.cont [11/16] 0.0, 128
    %2321 = vxpose.xlu0.b32.cont [12/16] 0.0, 128
    %2322 = vxpose.xlu0.b32.cont [13/16] 0.0, 128
    %2323 = vxpose.xlu0.b32.cont [14/16] 0.0, 128
    %2324 = vxpose.xlu0.b32.cont [15/16] 0.0, 128
    %2325 = vxpose.xlu0.b32.end [16/16] 0.0, 128
    %v2326 = vpop.trf.xlu0
    %v2327 = vpop.trf.xlu0
    %v2328 = vpop.trf.xlu0
    %v2329 = vpop.trf.xlu0
    %v2330 = vpop.trf.xlu0
    %v2331 = vpop.trf.xlu0
    %v2332 = vpop.trf.xlu0
    %v2333 = vpop.trf.xlu0
    %v2334 = vpop.trf.xlu0
    %v2335 = vpop.trf.xlu0
    %v2336 = vpop.trf.xlu0
    %v2337 = vpop.trf.xlu0
    %v2338 = vpop.trf.xlu0
    %v2339 = vpop.trf.xlu0
    %v2340 = vpop.trf.xlu0
    %v2341 = vpop.trf.xlu0
    %v2342 = vsel %vm79, %v2294, 0.0
    %2343 = vadd.xlane.f32.xlu0 %v2342
    %v2344 = vpop.xlane.xlu0 %2343
    %v2345 = vsel %vm79, %v2295, 0.0
    %2346 = vadd.xlane.f32.xlu0 %v2345
    %v2347 = vpop.xlane.xlu0 %2346
    %v2348 = vsel %vm79, %v2326, 0.0
    %2349 = vadd.xlane.f32.xlu0 %v2348
    %v2350 = vpop.xlane.xlu0 %2349
    %v2351 = vsel %vm79, %v2327, 0.0
    %2352 = vadd.xlane.f32.xlu0 %v2351
    %v2353 = vpop.xlane.xlu0 %2352
    %v2354 = vmul.f32 %v2344, %v92
    %v2355 = vmul.f32 %v2347, %v92
    %v2356 = vmul.f32 %v2350, %v92
    %v2357 = vmul.f32 %v2353, %v92
    %v2358 = vsub.f32 %v2294, %v2354
    %v2359 = vsub.f32 %v2295, %v2355
    %v2360 = vsub.f32 %v2326, %v2356
    %v2361 = vsub.f32 %v2327, %v2357
    %v2362 = vmul.f32 %v2358, %v2358
    %v2363 = vmul.f32 %v2359, %v2359
    %v2364 = vmul.f32 %v2360, %v2360
    %v2365 = vmul.f32 %v2361, %v2361
    %v2366 = vsel %vm79, %v2362, 0.0
    %2367 = vadd.xlane.f32.xlu0 %v2366
    %v2368 = vpop.xlane.xlu0 %2367
    %v2369 = vsel %vm79, %v2363, 0.0
    %2370 = vadd.xlane.f32.xlu0 %v2369
    %v2371 = vpop.xlane.xlu0 %2370
    %v2372 = vsel %vm79, %v2364, 0.0
    %2373 = vadd.xlane.f32.xlu0 %v2372
    %v2374 = vpop.xlane.xlu0 %2373
    %v2375 = vsel %vm79, %v2365, 0.0
    %2376 = vadd.xlane.f32.xlu0 %v2375
    %v2377 = vpop.xlane.xlu0 %2376
    %v2378 = vmul.f32 %v2368, %v92
    %v2379 = vmul.f32 %v2371, %v92
    %v2380 = vmul.f32 %v2374, %v92
    %v2381 = vmul.f32 %v2377, %v92
    %v2382 = vadd.f32 %v2378, 1e-05
    %v2383 = vadd.f32 %v2379, 1e-05
    %v2384 = vadd.f32 %v2380, 1e-05
    %v2385 = vadd.f32 %v2381, 1e-05
    %v2386 = vrsqrt.pop %v2382
    %v2387 = vrsqrt.pop %v2383
    %v2388 = vrsqrt.pop %v2384
    %v2389 = vrsqrt.pop %v2385
    %v2390 = vmul.f32 %v2358, %v2386
    %v2391 = vmul.f32 %v2359, %v2387
    %v2392 = vmul.f32 %v2360, %v2388
    %v2393 = vmul.f32 %v2361, %v2389
    %v2394 = vlaneseq
    %v2395 = vshrl.u32 %v2394, 7
    %v2396 = vsub.s32 3, %v2395
    %v2397 = vrot.slane %v34, %v2396
    %v2398 = vmul.f32 %v2390, %v2397
    %v2399 = vmul.f32 %v2391, %v2397
    %v2400 = vmul.f32 %v2392, %v2397
    %v2401 = vmul.f32 %v2393, %v2397
    %v2402 = vlaneseq
    %v2403 = vshrl.u32 %v2402, 7
    %v2404 = vsub.s32 4, %v2403
    %v2405 = vrot.slane %v34, %v2404
    %v2406 = vadd.f32 %v2398, %v2405
    %v2407 = vadd.f32 %v2399, %v2405
    %v2408 = vadd.f32 %v2400, %v2405
    %v2409 = vadd.f32 %v2401, %v2405
    %v2410 = vadd.f32 %v151, %v2406
    %v2411 = vadd.f32 %v152, %v2407
    %v2412 = vadd.f32 %v153, %v2408
    %v2413 = vadd.f32 %v154, %v2409
    %v2414 = vsel %vm79, %v2410, 0.0
    %2415 = vadd.xlane.f32.xlu0 %v2414
    %v2416 = vpop.xlane.xlu0 %2415
    %v2417 = vsel %vm79, %v2411, 0.0
    %2418 = vadd.xlane.f32.xlu0 %v2417
    %v2419 = vpop.xlane.xlu0 %2418
    %v2420 = vsel %vm79, %v2412, 0.0
    %2421 = vadd.xlane.f32.xlu0 %v2420
    %v2422 = vpop.xlane.xlu0 %2421
    %v2423 = vsel %vm79, %v2413, 0.0
    %2424 = vadd.xlane.f32.xlu0 %v2423
    %v2425 = vpop.xlane.xlu0 %2424
    %v2426 = vmul.f32 %v2416, %v92
    %v2427 = vmul.f32 %v2419, %v92
    %v2428 = vmul.f32 %v2422, %v92
    %v2429 = vmul.f32 %v2425, %v92
    %v2430 = vsub.f32 %v2410, %v2426
    %v2431 = vsub.f32 %v2411, %v2427
    %v2432 = vsub.f32 %v2412, %v2428
    %v2433 = vsub.f32 %v2413, %v2429
    %v2434 = vmul.f32 %v2430, %v2430
    %v2435 = vmul.f32 %v2431, %v2431
    %v2436 = vmul.f32 %v2432, %v2432
    %v2437 = vmul.f32 %v2433, %v2433
    %v2438 = vsel %vm79, %v2434, 0.0
    %2439 = vadd.xlane.f32.xlu0 %v2438
    %v2440 = vpop.xlane.xlu0 %2439
    %v2441 = vsel %vm79, %v2435, 0.0
    %2442 = vadd.xlane.f32.xlu0 %v2441
    %v2443 = vpop.xlane.xlu0 %2442
    %v2444 = vsel %vm79, %v2436, 0.0
    %2445 = vadd.xlane.f32.xlu0 %v2444
    %v2446 = vpop.xlane.xlu0 %2445
    %v2447 = vsel %vm79, %v2437, 0.0
    %2448 = vadd.xlane.f32.xlu0 %v2447
    %v2449 = vpop.xlane.xlu0 %2448
    %v2450 = vmul.f32 %v2440, %v92
    %v2451 = vmul.f32 %v2443, %v92
    %v2452 = vmul.f32 %v2446, %v92
    %v2453 = vmul.f32 %v2449, %v92
    %v2454 = vadd.f32 %v2450, 1e-05
    %v2455 = vadd.f32 %v2451, 1e-05
    %v2456 = vadd.f32 %v2452, 1e-05
    %v2457 = vadd.f32 %v2453, 1e-05
    %v2458 = vrsqrt.pop %v2454
    %v2459 = vrsqrt.pop %v2455
    %v2460 = vrsqrt.pop %v2456
    %v2461 = vrsqrt.pop %v2457
    %v2462 = vmul.f32 %v2430, %v2458
    %v2463 = vmul.f32 %v2431, %v2459
    %v2464 = vmul.f32 %v2432, %v2460
    %v2465 = vmul.f32 %v2433, %v2461
    %v2466 = vlaneseq
    %v2467 = vshrl.u32 %v2466, 7
    %v2468 = vsub.s32 5, %v2467
    %v2469 = vrot.slane %v34, %v2468
    %v2470 = vmul.f32 %v2462, %v2469
    %v2471 = vmul.f32 %v2463, %v2469
    %v2472 = vmul.f32 %v2464, %v2469
    %v2473 = vmul.f32 %v2465, %v2469
    %v2474 = vlaneseq
    %v2475 = vshrl.u32 %v2474, 7
    %v2476 = vsub.s32 6, %v2475
    %v2477 = vrot.slane %v34, %v2476
    %v2478 = vadd.f32 %v2470, %v2477
    %v2479 = vadd.f32 %v2471, %v2477
    %v2480 = vadd.f32 %v2472, %v2477
    %v2481 = vadd.f32 %v2473, %v2477
    %v2482 = vpack.c.bf16 %v2479, %v2478
    %v2483 = vpack.c.bf16 %v2481, %v2480
    %v2484 = vld [vmem:[%s5] sm:$0xf]
    %v2485 = vld [vmem:[%s5 + $0x4] sm:$0xf]
    %v2486 = vld [vmem:[%s5 + $0x8] sm:$0xf]
    %v2487 = vld [vmem:[%s5 + $0xc] sm:$0xf]
    %v2488 = vlaneseq
    %v2489 = vshrl.u32 %v2488, 7
    %v2490 = vsub.s32 2, %v2489
    %v2491 = vrot.slane %v35, %v2490
    %v2496 = vunpack.c.l.b16 %v2484
    %v2497 = vunpack.c.l.b16 %v2485
    %v2498 = vunpack.c.l.b16 %v2486
    %v2499 = vunpack.c.l.b16 %v2487
    %v2500 = vpack.c.b16 %v2497, %v2496
    %v2501 = vpack.c.b16 %v2499, %v2498
    %v2505 = vsel %vm79, %v2482, 0
    %v2508 = vsel %vm79, %v2483, 0
    %2510 = vmatprep.subr.bf16.mxu0 0
    %2511 = vmatpush1.bf16.msra.mxu0 %v2500
    %2512 = vmatprep.subr.bf16.mxu0 0
    %2513 = vmatpush1.bf16.msra.mxu0 %v2501
    %2514 = vmatprep.subr.bf16.mxu0 0
    %2515 = vmatpush1.bf16.msra.mxu0 0
    %2516 = vmatprep.subr.bf16.mxu0 0
    %2517 = vmatpush1.bf16.msra.mxu0 0
    %2518 = vmatprep.subr.bf16.mxu0 0
    %2519 = vmatpush1.bf16.msra.mxu0 0
    %2520 = vmatprep.subr.bf16.mxu0 0
    %2521 = vmatpush1.bf16.msra.mxu0 0
    %2522 = vmatprep.subr.bf16.mxu0 0
    %2523 = vmatpush1.bf16.msra.mxu0 0
    %2524 = vmatprep.subr.bf16.mxu0 0
    %2525 = vmatpush1.bf16.msra.mxu0 0
    %2526 = vmatprep.subr.bf16.mxu0 0
    %2527 = vmatpush1.bf16.msra.mxu0 0
    %2528 = vmatprep.subr.bf16.mxu0 0
    %2529 = vmatpush1.bf16.msra.mxu0 0
    %2530 = vmatprep.subr.bf16.mxu0 0
    %2531 = vmatpush1.bf16.msra.mxu0 0
    %2532 = vmatprep.subr.bf16.mxu0 0
    %2533 = vmatpush1.bf16.msra.mxu0 0
    %2534 = vmatprep.subr.bf16.mxu0 0
    %2535 = vmatpush1.bf16.msra.mxu0 0
    %2536 = vmatprep.subr.bf16.mxu0 0
    %2537 = vmatpush1.bf16.msra.mxu0 0
    %2538 = vmatprep.subr.bf16.mxu0 0
    %2539 = vmatpush1.bf16.msra.mxu0 0
    %2540 = vmatprep.subr.bf16.mxu0 0
    %2541 = vmatpush1.bf16.msra.mxu0 0
    %2542 = vmatprep.mubr.bf16.mxu0 0
    %2543 = vmatmul.mubr.bf16.gmra.mrb[0].mxu0 %v2505
    %v2544 = vpop.f32.mrb[0].mxu0
    %v2545 = vadd.f32 %v2491, %v2544
    %v2546 = vpop.f32.mrb[0].mxu0
    %v2547 = vpop.f32.mrb[0].mxu0
    %v2548 = vadd.f32 %v2491, %v2547
    %v2549 = vpop.f32.mrb[0].mxu0
    %2550 = vmatprep.mubr.bf16.mxu0 0
    %2551 = vmatmul.mubr.bf16.gmra.mrb[0].mxu0 %v2508
    %v2552 = vpop.f32.mrb[0].mxu0
    %v2553 = vadd.f32 %v2491, %v2552
    %v2554 = vpop.f32.mrb[0].mxu0
    %v2555 = vpop.f32.mrb[0].mxu0
    %v2556 = vadd.f32 %v2491, %v2555
    %v2557 = vpop.f32.mrb[0].mxu0
    %2558 = vdwg.mxu0
    %v2559 = vmax.f32 %v2545, 0.0
    %v2560 = vmax.f32 %v2548, 0.0
    %v2561 = vmax.f32 %v2553, 0.0
    %v2562 = vmax.f32 %v2556, 0.0
    %v2563 = vpack.c.bf16 %v2560, %v2559
    %v2564 = vpack.c.bf16 %v2562, %v2561
    %v2565 = vld [vmem:[%s6] sm:$0xf]
    %v2566 = vld [vmem:[%s6 + $0x4] sm:$0xf]
    %v2567 = vld [vmem:[%s6 + $0x8] sm:$0xf]
    %v2568 = vld [vmem:[%s6 + $0xc] sm:$0xf]
    %v2569 = vld [vmem:[%s6 + $0x10] sm:$0xf]
    %v2570 = vld [vmem:[%s6 + $0x14] sm:$0xf]
    %v2571 = vld [vmem:[%s6 + $0x18] sm:$0xf]
    %v2572 = vld [vmem:[%s6 + $0x1c] sm:$0xf]
    %v2573 = vlaneseq
    %v2574 = vshrl.u32 %v2573, 7
    %v2575 = vsub.s32 7, %v2574
    %v2576 = vrot.slane %v34, %v2575
    %v2585 = vunpack.c.l.b16 %v2565
    %v2586 = vunpack.c.l.b16 %v2566
    %v2587 = vunpack.c.l.b16 %v2567
    %v2588 = vunpack.c.l.b16 %v2568
    %v2589 = vunpack.c.l.b16 %v2569
    %v2590 = vunpack.c.l.b16 %v2570
    %v2591 = vunpack.c.l.b16 %v2571
    %v2592 = vunpack.c.l.b16 %v2572
    %v2593 = vpack.c.b16 %v2586, %v2585
    %v2594 = vpack.c.b16 %v2588, %v2587
    %v2595 = vpack.c.b16 %v2590, %v2589
    %v2596 = vpack.c.b16 %v2592, %v2591
    %vm2601 = vcmask 523264
    %v2603 = vsel %vm2601, %v2563, 0
    %v2606 = vsel %vm2601, %v2564, 0
    %2608 = vmatprep.subr.bf16.mxu0 0
    %2609 = vmatpush1.bf16.msra.mxu0 %v2593
    %2610 = vmatprep.subr.bf16.mxu0 0
    %2611 = vmatpush1.bf16.msra.mxu0 %v2594
    %2612 = vmatprep.subr.bf16.mxu0 0
    %2613 = vmatpush1.bf16.msra.mxu0 %v2595
    %2614 = vmatprep.subr.bf16.mxu0 0
    %2615 = vmatpush1.bf16.msra.mxu0 %v2596
    %2616 = vmatprep.subr.bf16.mxu0 0
    %2617 = vmatpush1.bf16.msra.mxu0 0
    %2618 = vmatprep.subr.bf16.mxu0 0
    %2619 = vmatpush1.bf16.msra.mxu0 0
    %2620 = vmatprep.subr.bf16.mxu0 0
    %2621 = vmatpush1.bf16.msra.mxu0 0
    %2622 = vmatprep.subr.bf16.mxu0 0
    %2623 = vmatpush1.bf16.msra.mxu0 0
    %2624 = vmatprep.subr.bf16.mxu0 0
    %2625 = vmatpush1.bf16.msra.mxu0 0
    %2626 = vmatprep.subr.bf16.mxu0 0
    %2627 = vmatpush1.bf16.msra.mxu0 0
    %2628 = vmatprep.subr.bf16.mxu0 0
    %2629 = vmatpush1.bf16.msra.mxu0 0
    %2630 = vmatprep.subr.bf16.mxu0 0
    %2631 = vmatpush1.bf16.msra.mxu0 0
    %2632 = vmatprep.subr.bf16.mxu0 0
    %2633 = vmatpush1.bf16.msra.mxu0 0
    %2634 = vmatprep.subr.bf16.mxu0 0
    %2635 = vmatpush1.bf16.msra.mxu0 0
    %2636 = vmatprep.subr.bf16.mxu0 0
    %2637 = vmatpush1.bf16.msra.mxu0 0
    %2638 = vmatprep.subr.bf16.mxu0 0
    %2639 = vmatpush1.bf16.msra.mxu0 0
    %2640 = vmatprep.mubr.bf16.mxu0 0
    %2641 = vmatmul.mubr.bf16.gmra.mrb[0].mxu0 %v2603
    %v2642 = vpop.f32.mrb[0].mxu0
    %v2643 = vadd.f32 %v2576, %v2642
    %v2644 = vpop.f32.mrb[0].mxu0
    %v2645 = vpop.f32.mrb[0].mxu0
    %v2646 = vadd.f32 %v2576, %v2645
    %v2647 = vpop.f32.mrb[0].mxu0
    %2648 = vmatprep.mubr.bf16.mxu0 0
    %2649 = vmatmul.mubr.bf16.gmra.mrb[0].mxu0 %v2606
    %v2650 = vpop.f32.mrb[0].mxu0
    %v2651 = vadd.f32 %v2576, %v2650
    %v2652 = vpop.f32.mrb[0].mxu0
    %v2653 = vpop.f32.mrb[0].mxu0
    %v2654 = vadd.f32 %v2576, %v2653
    %v2655 = vpop.f32.mrb[0].mxu0
    %2656 = vdwg.mxu0
    %v2657 = vadd.f32 %v2478, %v2643
    %v2658 = vadd.f32 %v2479, %v2646
    %v2659 = vadd.f32 %v2480, %v2651
    %v2660 = vadd.f32 %v2481, %v2654
    %v2661 = vsel %vm79, %v2657, 0.0
    %2662 = vadd.xlane.f32.xlu0 %v2661
    %v2663 = vpop.xlane.xlu0 %2662
    %v2664 = vsel %vm79, %v2658, 0.0
    %2665 = vadd.xlane.f32.xlu0 %v2664
    %v2666 = vpop.xlane.xlu0 %2665
    %v2667 = vsel %vm79, %v2659, 0.0
    %2668 = vadd.xlane.f32.xlu0 %v2667
    %v2669 = vpop.xlane.xlu0 %2668
    %v2670 = vsel %vm79, %v2660, 0.0
    %2671 = vadd.xlane.f32.xlu0 %v2670
    %v2672 = vpop.xlane.xlu0 %2671
    %v2673 = vmul.f32 %v2663, %v92
    %v2674 = vmul.f32 %v2666, %v92
    %v2675 = vmul.f32 %v2669, %v92
    %v2676 = vmul.f32 %v2672, %v92
    %v2677 = vsub.f32 %v2657, %v2673
    %v2678 = vsub.f32 %v2658, %v2674
    %v2679 = vsub.f32 %v2659, %v2675
    %v2680 = vsub.f32 %v2660, %v2676
    %v2681 = vmul.f32 %v2677, %v2677
    %v2682 = vmul.f32 %v2678, %v2678
    %v2683 = vmul.f32 %v2679, %v2679
    %v2684 = vmul.f32 %v2680, %v2680
    %v2685 = vsel %vm79, %v2681, 0.0
    %2686 = vadd.xlane.f32.xlu0 %v2685
    %v2687 = vpop.xlane.xlu0 %2686
    %v2688 = vsel %vm79, %v2682, 0.0
    %2689 = vadd.xlane.f32.xlu0 %v2688
    %v2690 = vpop.xlane.xlu0 %2689
    %v2691 = vsel %vm79, %v2683, 0.0
    %2692 = vadd.xlane.f32.xlu0 %v2691
    %v2693 = vpop.xlane.xlu0 %2692
    %v2694 = vsel %vm79, %v2684, 0.0
    %2695 = vadd.xlane.f32.xlu0 %v2694
    %v2696 = vpop.xlane.xlu0 %2695
    %v2697 = vmul.f32 %v2687, %v92
    %v2698 = vmul.f32 %v2690, %v92
    %v2699 = vmul.f32 %v2693, %v92
    %v2700 = vmul.f32 %v2696, %v92
    %v2701 = vadd.f32 %v2697, 1e-05
    %v2702 = vadd.f32 %v2698, 1e-05
    %v2703 = vadd.f32 %v2699, 1e-05
    %v2704 = vadd.f32 %v2700, 1e-05
    %v2705 = vrsqrt.pop %v2701
    %v2706 = vrsqrt.pop %v2702
    %v2707 = vrsqrt.pop %v2703
    %v2708 = vrsqrt.pop %v2704
    %v2709 = vmul.f32 %v2677, %v2705
    %v2710 = vmul.f32 %v2678, %v2706
    %v2711 = vmul.f32 %v2679, %v2707
    %v2712 = vmul.f32 %v2680, %v2708
    %v2713 = vlaneseq
    %v2714 = vshrl.u32 %v2713, 7
    %v2715 = vsub.s32 0, %v2714
    %v2716 = vrot.slane %v35, %v2715
    %v2717 = vmul.f32 %v2709, %v2716
    %v2718 = vmul.f32 %v2710, %v2716
    %v2719 = vmul.f32 %v2711, %v2716
    %v2720 = vmul.f32 %v2712, %v2716
    %v2721 = vlaneseq
    %v2722 = vshrl.u32 %v2721, 7
    %v2723 = vsub.s32 1, %v2722
    %v2724 = vrot.slane %v35, %v2723
    %v2725 = vadd.f32 %v2717, %v2724
    %v2726 = vadd.f32 %v2718, %v2724
    %v2727 = vadd.f32 %v2719, %v2724
    %v2728 = vadd.f32 %v2720, %v2724
    %v2729 = vsel %vm79, %v2725, 0.0
    %v2730 = vsel %vm79, %v2726, 0.0
    %v2731 = vadd.f32 %v2729, %v2730
    %v2732 = vrot.slane %v2731, 4
    %v2733 = vadd.f32 %v2731, %v2732
    %v2734 = vrot.slane %v2733, 2
    %v2735 = vadd.f32 %v2733, %v2734
    %v2736 = vrot.slane %v2735, 1
    %v2737 = vadd.f32 %v2735, %v2736
    %v2738 = vsel %vm79, %v2727, 0.0
    %v2739 = vsel %vm79, %v2728, 0.0
    %v2740 = vadd.f32 %v2738, %v2739
    %v2741 = vrot.slane %v2740, 4
    %v2742 = vadd.f32 %v2740, %v2741
    %v2743 = vrot.slane %v2742, 2
    %v2744 = vadd.f32 %v2742, %v2743
    %v2745 = vrot.slane %v2744, 1
    %v2746 = vadd.f32 %v2744, %v2745
    %v2747 = vrcp.pop 16.0
    %v2748 = vmul.f32 %v2737, %v2747
    %v2749 = vmul.f32 %v2746, %v2747
    %v2750 = vpack.c.bf16 %v2748, %v2748
    %v2751 = vpack.c.bf16 %v2749, %v2749
    %v2752 = vld [vmem:[%s7] sm:$0xf]
    %v2753 = vld [vmem:[%s7 + $0x4] sm:$0xf]
    %v2754 = vld [vmem:[%s7 + $0x8] sm:$0xf]
    %v2755 = vld [vmem:[%s7 + $0xc] sm:$0xf]
    %v2756 = vlaneseq
    %v2757 = vshrl.u32 %v2756, 7
    %v2758 = vsub.s32 3, %v2757
    %v2759 = vrot.slane %v35, %v2758
    %v2762 = vunpack.c.l.b16 %v2750
    %v2763 = vunpack.c.l.b16 %v2751
    %vm2764 = vcmask 1041409
    %v2765 = vsel %vm2764, %v2763, %v2762
    %v2766 = vpack.c.b16 %v2765, %v2765
    %v2771 = vunpack.c.l.b16 %v2752
    %v2772 = vunpack.c.l.b16 %v2753
    %v2773 = vunpack.c.l.b16 %v2754
    %v2774 = vunpack.c.l.b16 %v2755
    %v2775 = vpack.c.b16 %v2772, %v2771
    %v2776 = vpack.c.b16 %v2774, %v2773
    %v2780 = vsel %vm79, %v2766, 0
    %2782 = vmatprep.subr.bf16.mxu0 0
    %2783 = vmatpush1.bf16.msra.mxu0 %v2775
    %2784 = vmatprep.subr.bf16.mxu0 0
    %2785 = vmatpush1.bf16.msra.mxu0 %v2776
    %2786 = vmatprep.subr.bf16.mxu0 0
    %2787 = vmatpush1.bf16.msra.mxu0 0
    %2788 = vmatprep.subr.bf16.mxu0 0
    %2789 = vmatpush1.bf16.msra.mxu0 0
    %2790 = vmatprep.subr.bf16.mxu0 0
    %2791 = vmatpush1.bf16.msra.mxu0 0
    %2792 = vmatprep.subr.bf16.mxu0 0
    %2793 = vmatpush1.bf16.msra.mxu0 0
    %2794 = vmatprep.subr.bf16.mxu0 0
    %2795 = vmatpush1.bf16.msra.mxu0 0
    %2796 = vmatprep.subr.bf16.mxu0 0
    %2797 = vmatpush1.bf16.msra.mxu0 0
    %2798 = vmatprep.subr.bf16.mxu0 0
    %2799 = vmatpush1.bf16.msra.mxu0 0
    %2800 = vmatprep.subr.bf16.mxu0 0
    %2801 = vmatpush1.bf16.msra.mxu0 0
    %2802 = vmatprep.subr.bf16.mxu0 0
    %2803 = vmatpush1.bf16.msra.mxu0 0
    %2804 = vmatprep.subr.bf16.mxu0 0
    %2805 = vmatpush1.bf16.msra.mxu0 0
    %2806 = vmatprep.subr.bf16.mxu0 0
    %2807 = vmatpush1.bf16.msra.mxu0 0
    %2808 = vmatprep.subr.bf16.mxu0 0
    %2809 = vmatpush1.bf16.msra.mxu0 0
    %2810 = vmatprep.subr.bf16.mxu0 0
    %2811 = vmatpush1.bf16.msra.mxu0 0
    %2812 = vmatprep.subr.bf16.mxu0 0
    %2813 = vmatpush1.bf16.msra.mxu0 0
    %2814 = vmatprep.mubr.bf16.mxu0 0
    %2815 = vmatmul.mubr.bf16.gmra.mrb[0].mxu0 %v2780
    %v2816 = vpop.f32.mrb[0].mxu0
    %v2817 = vadd.f32 %v2759, %v2816
    %v2818 = vpop.f32.mrb[0].mxu0
    %v2819 = vpop.f32.mrb[0].mxu0
    %v2820 = vpop.f32.mrb[0].mxu0
    %2821 = vdwg.mxu0
    %2822 = vst [vmem:[#allocation2] sm:$0x3] %v2817
    // Predicated region
    $region38: #{transformer_forward.1} parent=1 // pred_check
      _
    $region39: #{transformer_forward.1} parent=1 // pred_check_branch
      %2824 = sbr.rel (0) target = $region41
    $region40: #{transformer_forward.1} parent=1 // pred_region
      %s2826 = ssub.s32 32, 32
      %2827 = vsyncadd [#allocation3], %s2826
      %s2829 = sshll.u32 [#allocation2], 4
      %s2830 = int_to_ptr.vmem [resolvable:$true] %s2829
      %2832 = dma.vmem_to_hbm [thread:$0]  %s2830, 32, %s9, [#allocation3]
    $region41: #{transformer_forward.1} parent=1 // pred_fallthru
      _
    // Predicated region
    $region42: #{transformer_forward.1} parent=1 // pred_check
      _
    $region43: #{transformer_forward.1} parent=1 // pred_check_branch
      %2834 = sbr.rel (0) target = $region45
    $region44: #{transformer_forward.1} parent=1 // pred_region
      %2835 = dma.done [#allocation3], 32
    $region45: #{transformer_forward.1} parent=1 // pred_fallthru
      _
    %2836 = vsyncpa [#allocation3], 1

</llo_original>
